<compile_context>
chip_gen: v7x
topology: tpu7x:2x2x1
jax: 0.10.0
libtpu: 0.0.40
codegen_flags: <defaults>
</compile_context>

<pallas_src>
import math
from functools import partial

import numpy as np
import jax
import jax.numpy as jnp
from jax.experimental import pallas as pl
from jax.experimental.pallas import tpu as pltpu


def _rmsnorm(x, w, eps):
    # x: (R, D) f32, w: (1, D) f32 -- stats in f32
    ms = jnp.mean(x * x, axis=-1, keepdims=True)
    return x * jax.lax.rsqrt(ms + eps) * w


def transformer_block_kernel(x_ref, cos_ref, sin_ref,
                             wq_ref, wk_ref, wv_ref, woh_ref,
                             w1_ref, w2_ref, w3_ref,
                             anw_ref, fnw_ref,
                             o_ref, *, seq_len, eps):
    f32 = jnp.float32
    bf16 = jnp.bfloat16

    R, D = x_ref.shape                      # R = B * S (batch folded into rows)
    S = seq_len
    B = R // S
    n_heads, head_dim, _ = woh_ref.shape
    hh = head_dim // 2

    x = x_ref[...]                          # (R, D) f32
    cosf = cos_ref[...]                     # (S, head_dim) f32 = [cos, cos]
    sinf = sin_ref[...]                     # (S, head_dim) f32 = [-sin, sin]

    # ---- causal mask (start_pos == 0), generated in-kernel
    row = jax.lax.broadcasted_iota(jnp.int32, (S, S), 0)
    col = jax.lax.broadcasted_iota(jnp.int32, (S, S), 1)
    mask = jnp.where(col > row, -1e30, 0.0).astype(f32)

    # ---- attention_norm + q/k/v projections (bf16 MXU, f32 accumulation)
    xn = _rmsnorm(x, anw_ref[...], eps).astype(bf16)
    q = jnp.dot(xn, wq_ref[...], preferred_element_type=f32)
    q = q * (1.0 / math.sqrt(head_dim))     # fold softmax scale into q once
    k = jnp.dot(xn, wk_ref[...], preferred_element_type=f32)
    v = jnp.dot(xn, wv_ref[...], preferred_element_type=f32)

    # ---- gather (head, batch) onto one leading batch axis: (H*B, S, head_dim)
    # head-major order so the later (n_heads, B*S, head_dim) view is a free
    # leading-dim regroup (S is a multiple of 8).
    def split_heads(t):
        return jnp.stack(
            [t[b * S:(b + 1) * S, h * head_dim:(h + 1) * head_dim]
             for h in range(n_heads) for b in range(B)], axis=0)

    qh, kh, vh = split_heads(q), split_heads(k), split_heads(v)

    # ---- RoPE in half-split layout: t*[cos,cos] + roll(t, hd/2)*[-sin,sin]
    def rope(t):
        return t * cosf[None] + pltpu.roll(t, shift=hh, axis=2) * sinf[None]

    qh = rope(qh).astype(bf16)
    kh = rope(kh).astype(bf16)
    vh = vh.astype(bf16)

    # ---- attention, batched over all (head, batch) pairs (bf16 MXU, f32 stats)
    scores = jax.lax.dot_general(qh, kh, (((2,), (2,)), ((0,), (0,))),
                                 preferred_element_type=f32)      # (HB, S, S)
    scores = scores + mask[None]
    m = jnp.max(scores, axis=-1, keepdims=True)
    p = jnp.exp(scores - m)
    p = p * pl.reciprocal(jnp.sum(p, axis=-1, keepdims=True), approx=True)
    oh = jax.lax.dot_general(p.astype(bf16), vh, (((2,), (1,)), ((0,), (0,))),
                             preferred_element_type=f32)          # (HB, S, hd)

    # ---- output projection fused over heads: no (S, D) scratch, no scatter
    oh = oh.reshape(n_heads, R, head_dim).astype(bf16)            # free regroup
    proj = jax.lax.dot_general(oh, woh_ref[...], (((2,), (1,)), ((0,), (0,))),
                               preferred_element_type=f32)        # (H, R, D)
    h1 = x + jnp.sum(proj, axis=0)                                # f32 residual

    # ---- ffn_norm + SwiGLU feed-forward (bf16 MXU, f32 elsewhere)
    hn = _rmsnorm(h1, fnw_ref[...], eps).astype(bf16)
    a = jnp.dot(hn, w1_ref[...], preferred_element_type=f32)
    b = jnp.dot(hn, w3_ref[...], preferred_element_type=f32)
    g = (a * (1.0 / (1.0 + jnp.exp(-a)))) * b                     # silu(a) * b
    out = h1 + jnp.dot(g.astype(bf16), w2_ref[...], preferred_element_type=f32)

    o_ref[...] = out.astype(o_ref.dtype)


def _half_split_perm(n_heads, head_dim):
    # per head: [even dims..., odd dims...] -- applied to wq/wk output columns
    within = np.concatenate([np.arange(0, head_dim, 2),
                             np.arange(1, head_dim, 2)])
    return np.concatenate([h * head_dim + within for h in range(n_heads)])


def prepare_params(params, *, n_heads, head_dim):
    """One-time weight preprocessing (hoisted off the per-forward path)."""
    bf16 = jnp.bfloat16
    f32 = jnp.float32
    D = n_heads * head_dim
    perm = _half_split_perm(n_heads, head_dim)
    return {
        "wq": params["wq"][:, perm].astype(bf16),
        "wk": params["wk"][:, perm].astype(bf16),
        "wv": params["wv"].astype(bf16),
        "wo_h": params["wo"].reshape(n_heads, head_dim, D).astype(bf16),
        "w1": params["w1"].astype(bf16),
        "w2": params["w2"].astype(bf16),
        "w3": params["w3"].astype(bf16),
        "attn_norm_w": params["attn_norm_w"].astype(f32),
        "ffn_norm_w": params["ffn_norm_w"].astype(f32),
    }


def transformer_block(x, freqs_cos, freqs_sin, prepared, *, eps):
    B, S, D = x.shape
    # half-split RoPE tables: [cos, cos] and [-sin, sin], shape (S, head_dim)
    cosf = jnp.concatenate([freqs_cos, freqs_cos], axis=-1)
    sinf = jnp.concatenate([-freqs_sin, freqs_sin], axis=-1)
    x2 = x.reshape(B * S, D)                       # fold batch into rows

    vmem = pl.BlockSpec(memory_space=pltpu.MemorySpace.VMEM)
    out2 = pl.pallas_call(
        partial(transformer_block_kernel, seq_len=S, eps=eps),
        out_shape=jax.ShapeDtypeStruct((B * S, D), x.dtype),
        in_specs=[vmem] * 12,
        out_specs=vmem,
        compiler_params=pltpu.CompilerParams(
            vmem_limit_bytes=32 * 1024 * 1024),
    )(x2, cosf, sinf,
      prepared["wq"], prepared["wk"], prepared["wv"], prepared["wo_h"],
      prepared["w1"], prepared["w2"], prepared["w3"],
      prepared["attn_norm_w"], prepared["ffn_norm_w"])
    return out2.reshape(B, S, D)


# ---------------- pure-JAX reference (mirrors the PyTorch forward) ----------
def reference_block(x, freqs_cos, freqs_sin, mask, params, n_heads, head_dim, eps):
    B, S, D = x.shape

    def rmsnorm(t, w):
        return t * jax.lax.rsqrt(jnp.mean(t * t, -1, keepdims=True) + eps) * w

    xn = rmsnorm(x, params["attn_norm_w"][0])
    q = (xn @ params["wq"]).reshape(B, S, n_heads, head_dim)
    k = (xn @ params["wk"]).reshape(B, S, n_heads, head_dim)
    v = (xn @ params["wv"]).reshape(B, S, n_heads, head_dim)

    def rope(t):
        tr = t.reshape(B, S, n_heads, head_dim // 2, 2)
        xr, xi = tr[..., 0], tr[..., 1]
        c = freqs_cos[None, :, None, :]
        s = freqs_sin[None, :, None, :]
        return jnp.stack([xr * c - xi * s, xr * s + xi * c], -1).reshape(
            B, S, n_heads, head_dim)

    q, k = rope(q), rope(k)
    qt, kt, vt = (t.transpose(0, 2, 1, 3) for t in (q, k, v))
    scores = jnp.einsum("bhqd,bhkd->bhqk", qt, kt) / math.sqrt(head_dim) + mask
    p = jax.nn.softmax(scores, axis=-1)
    o = jnp.einsum("bhqk,bhkd->bhqd", p, vt).transpose(0, 2, 1, 3).reshape(B, S, D)
    h = x + o @ params["wo"]
    hn = rmsnorm(h, params["ffn_norm_w"][0])
    a = hn @ params["w1"]
    b = hn @ params["w3"]
    return h + (jax.nn.silu(a) * b) @ params["w2"]


if __name__ == "__main__":
    # small ModelArgs-consistent shapes; head_dim = 128 as in real LLaMA models
    B, S, D, n_heads = 2, 8, 256, 2
    head_dim = D // n_heads                    # 128
    multiple_of = 128
    hidden = int(2 * (4 * D) / 3)
    hidden = multiple_of * ((hidden + multiple_of - 1) // multiple_of)   # 768
    eps = 1e-5
    start_pos = 0

    key = jax.random.PRNGKey(0)
    ks = jax.random.split(key, 12)
    sc = 0.05
    f32 = jnp.float32
    bf16 = jnp.bfloat16

    def bfround(a):
        # bf16-representable f32 values so the bf16 kernel and the f32
        # reference use identical weight values
        return a.astype(bf16).astype(f32)

    params = {
        "wq": bfround(jax.random.normal(ks[0], (D, D), f32) * sc),
        "wk": bfround(jax.random.normal(ks[1], (D, D), f32) * sc),
        "wv": bfround(jax.random.normal(ks[2], (D, D), f32) * sc),
        "wo": bfround(jax.random.normal(ks[3], (D, D), f32) * sc),
        "w1": bfround(jax.random.normal(ks[4], (D, hidden), f32) * sc),
        "w2": bfround(jax.random.normal(ks[5], (hidden, D), f32) * sc),
        "w3": bfround(jax.random.normal(ks[6], (D, hidden), f32) * sc),
        "attn_norm_w": 1.0 + 0.1 * jax.random.normal(ks[7], (1, D), f32),
        "ffn_norm_w": 1.0 + 0.1 * jax.random.normal(ks[8], (1, D), f32),
    }
    x = jax.random.normal(ks[9], (B, S, D), f32)

    # rotary frequencies (theta = 10000), first S positions: (S, head_dim//2)
    inv = 1.0 / (10000.0 ** (jnp.arange(0, head_dim, 2, dtype=f32) / head_dim))
    ang = jnp.outer(jnp.arange(S, dtype=f32), inv)
    freqs_cos, freqs_sin = jnp.cos(ang), jnp.sin(ang)

    # one-time weight preprocessing (column permutation, bf16 cast, wo reshape)
    prepared = prepare_params(params, n_heads=n_heads, head_dim=head_dim)

    out = transformer_block(x, freqs_cos, freqs_sin, prepared, eps=eps)
    out = jax.block_until_ready(out)

    # reference: pure f32, original interleaved RoPE layout, explicit mask
    idx = jnp.arange(S)
    mask = jnp.where(idx[None, :] > idx[:, None] + start_pos,
                     -1e30, 0.0).astype(f32)
    with jax.default_matmul_precision("highest"):
        ref = reference_block(x, freqs_cos, freqs_sin, mask, params,
                              n_heads, head_dim, eps)
    ref = jax.block_until_ready(ref)

    err = float(jnp.max(jnp.abs(out - ref)))
    assert out.shape == (B, S, D)
    assert bool(jnp.all(jnp.isfinite(out)))
    assert err < 5e-2, f"max abs err {err}"
    print("KERNEL_OK")
</pallas_src>

<mosaic_0001>
module attributes {stable_mosaic.version = 11 : i64} {
  func.func @transformer_block_kernel(%arg0: memref<16x256xf32, #tpu.memory_space<vmem>>, %arg1: memref<8x128xf32, #tpu.memory_space<vmem>>, %arg2: memref<8x128xf32, #tpu.memory_space<vmem>>, %arg3: memref<256x256xbf16, #tpu.memory_space<vmem>>, %arg4: memref<256x256xbf16, #tpu.memory_space<vmem>>, %arg5: memref<256x256xbf16, #tpu.memory_space<vmem>>, %arg6: memref<2x128x256xbf16, #tpu.memory_space<vmem>>, %arg7: memref<256x768xbf16, #tpu.memory_space<vmem>>, %arg8: memref<768x256xbf16, #tpu.memory_space<vmem>>, %arg9: memref<256x768xbf16, #tpu.memory_space<vmem>>, %arg10: memref<1x256xf32, #tpu.memory_space<vmem>>, %arg11: memref<1x256xf32, #tpu.memory_space<vmem>>, %arg12: memref<16x256xf32, #tpu.memory_space<vmem>>) attributes {dimension_semantics = [], scalar_prefetch = 0 : i64, scratch_operands = 0 : i64, tpu.core_type = #tpu.core_type<tc>} {
    %c0 = arith.constant 0 : index
    %c0_0 = arith.constant 0 : index
    %0 = vector.load %arg0[%c0, %c0_0] : memref<16x256xf32, #tpu.memory_space<vmem>>, vector<16x256xf32>
    %c0_1 = arith.constant 0 : index
    %c0_2 = arith.constant 0 : index
    %1 = vector.load %arg1[%c0_1, %c0_2] : memref<8x128xf32, #tpu.memory_space<vmem>>, vector<8x128xf32>
    %c0_3 = arith.constant 0 : index
    %c0_4 = arith.constant 0 : index
    %2 = vector.load %arg2[%c0_3, %c0_4] : memref<8x128xf32, #tpu.memory_space<vmem>>, vector<8x128xf32>
    %3 = tpu.iota {dimensions = array<i32: 0>} : vector<8x8xi32>
    %4 = tpu.iota {dimensions = array<i32: 1>} : vector<8x8xi32>
    %5 = arith.cmpi sgt, %4, %3 : vector<8x8xi32>
    %cst = arith.constant -1.000000e+30 : f32
    %cst_5 = arith.constant 0.000000e+00 : f32
    %6 = vector.broadcast %cst : f32 to vector<8x8xf32>
    %7 = vector.broadcast %cst_5 : f32 to vector<8x8xf32>
    %8 = arith.select %5, %6, %7 : vector<8x8xi1>, vector<8x8xf32>
    %c0_6 = arith.constant 0 : index
    %c0_7 = arith.constant 0 : index
    %9 = vector.load %arg10[%c0_6, %c0_7] : memref<1x256xf32, #tpu.memory_space<vmem>>, vector<1x256xf32>
    %10 = arith.mulf %0, %0 : vector<16x256xf32>
    %cst_8 = arith.constant dense<0.000000e+00> : vector<16xf32>
    %11 = vector.multi_reduction <add>, %10, %cst_8 [1] : vector<16x256xf32> to vector<16xf32>
    %12 = vector.shape_cast %11 : vector<16xf32> to vector<16x1xf32>
    %cst_9 = arith.constant 2.560000e+02 : f32
    %13 = vector.broadcast %cst_9 : f32 to vector<16x1xf32>
    %14 = arith.divf %12, %13 : vector<16x1xf32>
    %cst_10 = arith.constant 9.99999974E-6 : f32
    %15 = vector.broadcast %cst_10 : f32 to vector<16x1xf32>
    %16 = arith.addf %14, %15 : vector<16x1xf32>
    %17 = math.rsqrt %16 : vector<16x1xf32>
    %18 = vector.broadcast %17 : vector<16x1xf32> to vector<16x256xf32>
    %19 = arith.mulf %0, %18 : vector<16x256xf32>
    %20 = vector.broadcast %9 : vector<1x256xf32> to vector<16x256xf32>
    %21 = arith.mulf %19, %20 : vector<16x256xf32>
    %22 = arith.truncf %21 : vector<16x256xf32> to vector<16x256xbf16>
    %c0_11 = arith.constant 0 : index
    %c0_12 = arith.constant 0 : index
    %23 = vector.load %arg3[%c0_11, %c0_12] : memref<256x256xbf16, #tpu.memory_space<vmem>>, vector<256x256xbf16>
    %cst_13 = arith.constant dense<0.000000e+00> : vector<16x256xf32>
    %24 = tpu.matmul %22, %23, %cst_13 {dimension_numbers = #tpu.dot_dimension_numbers<[1], [0], [0], [1], [0, 0, 1, 1], [], []>} : vector<16x256xbf16>, vector<256x256xbf16>, vector<16x256xf32> -> vector<16x256xf32>
    %cst_14 = arith.constant 0.0883883461 : f32
    %25 = vector.broadcast %cst_14 : f32 to vector<16x256xf32>
    %26 = arith.mulf %24, %25 : vector<16x256xf32>
    %c0_15 = arith.constant 0 : index
    %c0_16 = arith.constant 0 : index
    %27 = vector.load %arg4[%c0_15, %c0_16] : memref<256x256xbf16, #tpu.memory_space<vmem>>, vector<256x256xbf16>
    %cst_17 = arith.constant dense<0.000000e+00> : vector<16x256xf32>
    %28 = tpu.matmul %22, %27, %cst_17 {dimension_numbers = #tpu.dot_dimension_numbers<[1], [0], [0], [1], [0, 0, 1, 1], [], []>} : vector<16x256xbf16>, vector<256x256xbf16>, vector<16x256xf32> -> vector<16x256xf32>
    %c0_18 = arith.constant 0 : index
    %c0_19 = arith.constant 0 : index
    %29 = vector.load %arg5[%c0_18, %c0_19] : memref<256x256xbf16, #tpu.memory_space<vmem>>, vector<256x256xbf16>
    %cst_20 = arith.constant dense<0.000000e+00> : vector<16x256xf32>
    %30 = tpu.matmul %22, %29, %cst_20 {dimension_numbers = #tpu.dot_dimension_numbers<[1], [0], [0], [1], [0, 0, 1, 1], [], []>} : vector<16x256xbf16>, vector<256x256xbf16>, vector<16x256xf32> -> vector<16x256xf32>
    %31 = vector.extract_strided_slice %26 {offsets = [0, 0], sizes = [8, 128], strides = [1, 1]} : vector<16x256xf32> to vector<8x128xf32>
    %32 = vector.extract_strided_slice %26 {offsets = [8, 0], sizes = [8, 128], strides = [1, 1]} : vector<16x256xf32> to vector<8x128xf32>
    %33 = vector.extract_strided_slice %26 {offsets = [0, 128], sizes = [8, 128], strides = [1, 1]} : vector<16x256xf32> to vector<8x128xf32>
    %34 = vector.extract_strided_slice %26 {offsets = [8, 128], sizes = [8, 128], strides = [1, 1]} : vector<16x256xf32> to vector<8x128xf32>
    %35 = vector.shape_cast %31 : vector<8x128xf32> to vector<1x8x128xf32>
    %36 = vector.shape_cast %32 : vector<8x128xf32> to vector<1x8x128xf32>
    %37 = vector.shape_cast %33 : vector<8x128xf32> to vector<1x8x128xf32>
    %38 = vector.shape_cast %34 : vector<8x128xf32> to vector<1x8x128xf32>
    %39 = tpu.concatenate %35, %36, %37, %38 in 0 : vector<1x8x128xf32>, vector<1x8x128xf32>, vector<1x8x128xf32>, vector<1x8x128xf32> -> vector<4x8x128xf32>
    %40 = vector.extract_strided_slice %28 {offsets = [0, 0], sizes = [8, 128], strides = [1, 1]} : vector<16x256xf32> to vector<8x128xf32>
    %41 = vector.extract_strided_slice %28 {offsets = [8, 0], sizes = [8, 128], strides = [1, 1]} : vector<16x256xf32> to vector<8x128xf32>
    %42 = vector.extract_strided_slice %28 {offsets = [0, 128], sizes = [8, 128], strides = [1, 1]} : vector<16x256xf32> to vector<8x128xf32>
    %43 = vector.extract_strided_slice %28 {offsets = [8, 128], sizes = [8, 128], strides = [1, 1]} : vector<16x256xf32> to vector<8x128xf32>
    %44 = vector.shape_cast %40 : vector<8x128xf32> to vector<1x8x128xf32>
    %45 = vector.shape_cast %41 : vector<8x128xf32> to vector<1x8x128xf32>
    %46 = vector.shape_cast %42 : vector<8x128xf32> to vector<1x8x128xf32>
    %47 = vector.shape_cast %43 : vector<8x128xf32> to vector<1x8x128xf32>
    %48 = tpu.concatenate %44, %45, %46, %47 in 0 : vector<1x8x128xf32>, vector<1x8x128xf32>, vector<1x8x128xf32>, vector<1x8x128xf32> -> vector<4x8x128xf32>
    %49 = vector.extract_strided_slice %30 {offsets = [0, 0], sizes = [8, 128], strides = [1, 1]} : vector<16x256xf32> to vector<8x128xf32>
    %50 = vector.extract_strided_slice %30 {offsets = [8, 0], sizes = [8, 128], strides = [1, 1]} : vector<16x256xf32> to vector<8x128xf32>
    %51 = vector.extract_strided_slice %30 {offsets = [0, 128], sizes = [8, 128], strides = [1, 1]} : vector<16x256xf32> to vector<8x128xf32>
    %52 = vector.extract_strided_slice %30 {offsets = [8, 128], sizes = [8, 128], strides = [1, 1]} : vector<16x256xf32> to vector<8x128xf32>
    %53 = vector.shape_cast %49 : vector<8x128xf32> to vector<1x8x128xf32>
    %54 = vector.shape_cast %50 : vector<8x128xf32> to vector<1x8x128xf32>
    %55 = vector.shape_cast %51 : vector<8x128xf32> to vector<1x8x128xf32>
    %56 = vector.shape_cast %52 : vector<8x128xf32> to vector<1x8x128xf32>
    %57 = tpu.concatenate %53, %54, %55, %56 in 0 : vector<1x8x128xf32>, vector<1x8x128xf32>, vector<1x8x128xf32>, vector<1x8x128xf32> -> vector<4x8x128xf32>
    %58 = vector.shape_cast %1 : vector<8x128xf32> to vector<1x8x128xf32>
    %59 = vector.broadcast %58 : vector<1x8x128xf32> to vector<4x8x128xf32>
    %60 = arith.mulf %39, %59 : vector<4x8x128xf32>
    %c64_i32 = arith.constant 64 : i32
    %61 = tpu.dynamic_rotate %39 by %c64_i32 dim 2 : vector<4x8x128xf32>, i32 -> vector<4x8x128xf32>
    %62 = vector.shape_cast %2 : vector<8x128xf32> to vector<1x8x128xf32>
    %63 = vector.broadcast %62 : vector<1x8x128xf32> to vector<4x8x128xf32>
    %64 = arith.mulf %61, %63 : vector<4x8x128xf32>
    %65 = arith.addf %60, %64 : vector<4x8x128xf32>
    %66 = arith.truncf %65 : vector<4x8x128xf32> to vector<4x8x128xbf16>
    %67 = vector.shape_cast %1 : vector<8x128xf32> to vector<1x8x128xf32>
    %68 = vector.broadcast %67 : vector<1x8x128xf32> to vector<4x8x128xf32>
    %69 = arith.mulf %48, %68 : vector<4x8x128xf32>
    %c64_i32_21 = arith.constant 64 : i32
    %70 = tpu.dynamic_rotate %48 by %c64_i32_21 dim 2 : vector<4x8x128xf32>, i32 -> vector<4x8x128xf32>
    %71 = vector.shape_cast %2 : vector<8x128xf32> to vector<1x8x128xf32>
    %72 = vector.broadcast %71 : vector<1x8x128xf32> to vector<4x8x128xf32>
    %73 = arith.mulf %70, %72 : vector<4x8x128xf32>
    %74 = arith.addf %69, %73 : vector<4x8x128xf32>
    %75 = arith.truncf %74 : vector<4x8x128xf32> to vector<4x8x128xbf16>
    %76 = arith.truncf %57 : vector<4x8x128xf32> to vector<4x8x128xbf16>
    %cst_22 = arith.constant dense<0.000000e+00> : vector<4x8x8xf32>
    %77 = tpu.matmul %66, %75, %cst_22 {dimension_numbers = #tpu.dot_dimension_numbers<[2], [2], [1], [1], [0, 0, 0, 1, 1, 1], [0], [0]>} : vector<4x8x128xbf16>, vector<4x8x128xbf16>, vector<4x8x8xf32> -> vector<4x8x8xf32>
    %78 = vector.shape_cast %8 : vector<8x8xf32> to vector<1x8x8xf32>
    %79 = vector.broadcast %78 : vector<1x8x8xf32> to vector<4x8x8xf32>
    %80 = arith.addf %77, %79 : vector<4x8x8xf32>
    %cst_23 = arith.constant dense<0xFF800000> : vector<4x8xf32>
    %81 = vector.multi_reduction <maximumf>, %80, %cst_23 [2] : vector<4x8x8xf32> to vector<4x8xf32>
    %82 = vector.shape_cast %81 : vector<4x8xf32> to vector<4x8x1xf32>
    %83 = vector.broadcast %82 : vector<4x8x1xf32> to vector<4x8x8xf32>
    %84 = arith.subf %80, %83 : vector<4x8x8xf32>
    %85 = math.exp %84 : vector<4x8x8xf32>
    %cst_24 = arith.constant dense<0.000000e+00> : vector<4x8xf32>
    %86 = vector.multi_reduction <add>, %85, %cst_24 [2] : vector<4x8x8xf32> to vector<4x8xf32>
    %87 = vector.shape_cast %86 : vector<4x8xf32> to vector<4x8x1xf32>
    %88 = tpu.reciprocal %87 {approx = true} : vector<4x8x1xf32> -> vector<4x8x1xf32>
    %89 = vector.broadcast %88 : vector<4x8x1xf32> to vector<4x8x8xf32>
    %90 = arith.mulf %85, %89 : vector<4x8x8xf32>
    %91 = arith.truncf %90 : vector<4x8x8xf32> to vector<4x8x8xbf16>
    %cst_25 = arith.constant dense<0.000000e+00> : vector<4x8x128xf32>
    %92 = tpu.matmul %91, %76, %cst_25 {dimension_numbers = #tpu.dot_dimension_numbers<[2], [1], [1], [2], [0, 0, 0, 1, 1, 2], [0], [0]>} : vector<4x8x8xbf16>, vector<4x8x128xbf16>, vector<4x8x128xf32> -> vector<4x8x128xf32>
    %93 = vector.shape_cast %92 : vector<4x8x128xf32> to vector<2x16x128xf32>
    %94 = arith.truncf %93 : vector<2x16x128xf32> to vector<2x16x128xbf16>
    %c0_26 = arith.constant 0 : index
    %c0_27 = arith.constant 0 : index
    %c0_28 = arith.constant 0 : index
    %95 = vector.load %arg6[%c0_26, %c0_27, %c0_28] : memref<2x128x256xbf16, #tpu.memory_space<vmem>>, vector<2x128x256xbf16>
    %cst_29 = arith.constant dense<0.000000e+00> : vector<2x16x256xf32>
    %96 = tpu.matmul %94, %95, %cst_29 {dimension_numbers = #tpu.dot_dimension_numbers<[2], [1], [1], [2], [0, 0, 0, 1, 1, 2], [0], [0]>} : vector<2x16x128xbf16>, vector<2x128x256xbf16>, vector<2x16x256xf32> -> vector<2x16x256xf32>
    %cst_30 = arith.constant dense<0.000000e+00> : vector<16x256xf32>
    %97 = vector.multi_reduction <add>, %96, %cst_30 [0] : vector<2x16x256xf32> to vector<16x256xf32>
    %98 = arith.addf %0, %97 : vector<16x256xf32>
    %c0_31 = arith.constant 0 : index
    %c0_32 = arith.constant 0 : index
    %99 = vector.load %arg11[%c0_31, %c0_32] : memref<1x256xf32, #tpu.memory_space<vmem>>, vector<1x256xf32>
    %100 = arith.mulf %98, %98 : vector<16x256xf32>
    %cst_33 = arith.constant dense<0.000000e+00> : vector<16xf32>
    %101 = vector.multi_reduction <add>, %100, %cst_33 [1] : vector<16x256xf32> to vector<16xf32>
    %102 = vector.shape_cast %101 : vector<16xf32> to vector<16x1xf32>
    %cst_34 = arith.constant 2.560000e+02 : f32
    %103 = vector.broadcast %cst_34 : f32 to vector<16x1xf32>
    %104 = arith.divf %102, %103 : vector<16x1xf32>
    %cst_35 = arith.constant 9.99999974E-6 : f32
    %105 = vector.broadcast %cst_35 : f32 to vector<16x1xf32>
    %106 = arith.addf %104, %105 : vector<16x1xf32>
    %107 = math.rsqrt %106 : vector<16x1xf32>
    %108 = vector.broadcast %107 : vector<16x1xf32> to vector<16x256xf32>
    %109 = arith.mulf %98, %108 : vector<16x256xf32>
    %110 = vector.broadcast %99 : vector<1x256xf32> to vector<16x256xf32>
    %111 = arith.mulf %109, %110 : vector<16x256xf32>
    %112 = arith.truncf %111 : vector<16x256xf32> to vector<16x256xbf16>
    %c0_36 = arith.constant 0 : index
    %c0_37 = arith.constant 0 : index
    %113 = vector.load %arg7[%c0_36, %c0_37] : memref<256x768xbf16, #tpu.memory_space<vmem>>, vector<256x768xbf16>
    %cst_38 = arith.constant dense<0.000000e+00> : vector<16x768xf32>
    %114 = tpu.matmul %112, %113, %cst_38 {dimension_numbers = #tpu.dot_dimension_numbers<[1], [0], [0], [1], [0, 0, 1, 1], [], []>} : vector<16x256xbf16>, vector<256x768xbf16>, vector<16x768xf32> -> vector<16x768xf32>
    %c0_39 = arith.constant 0 : index
    %c0_40 = arith.constant 0 : index
    %115 = vector.load %arg9[%c0_39, %c0_40] : memref<256x768xbf16, #tpu.memory_space<vmem>>, vector<256x768xbf16>
    %cst_41 = arith.constant dense<0.000000e+00> : vector<16x768xf32>
    %116 = tpu.matmul %112, %115, %cst_41 {dimension_numbers = #tpu.dot_dimension_numbers<[1], [0], [0], [1], [0, 0, 1, 1], [], []>} : vector<16x256xbf16>, vector<256x768xbf16>, vector<16x768xf32> -> vector<16x768xf32>
    %cst_42 = arith.constant 0.000000e+00 : f32
    %117 = vector.broadcast %cst_42 : f32 to vector<16x768xf32>
    %118 = arith.subf %117, %114 : vector<16x768xf32>
    %119 = math.exp %118 : vector<16x768xf32>
    %cst_43 = arith.constant 1.000000e+00 : f32
    %120 = vector.broadcast %cst_43 : f32 to vector<16x768xf32>
    %121 = arith.addf %120, %119 : vector<16x768xf32>
    %cst_44 = arith.constant 1.000000e+00 : f32
    %122 = vector.broadcast %cst_44 : f32 to vector<16x768xf32>
    %123 = arith.divf %122, %121 : vector<16x768xf32>
    %124 = arith.mulf %114, %123 : vector<16x768xf32>
    %125 = arith.mulf %124, %116 : vector<16x768xf32>
    %126 = arith.truncf %125 : vector<16x768xf32> to vector<16x768xbf16>
    %c0_45 = arith.constant 0 : index
    %c0_46 = arith.constant 0 : index
    %127 = vector.load %arg8[%c0_45, %c0_46] : memref<768x256xbf16, #tpu.memory_space<vmem>>, vector<768x256xbf16>
    %cst_47 = arith.constant dense<0.000000e+00> : vector<16x256xf32>
    %128 = tpu.matmul %126, %127, %cst_47 {dimension_numbers = #tpu.dot_dimension_numbers<[1], [0], [0], [1], [0, 0, 1, 1], [], []>} : vector<16x768xbf16>, vector<768x256xbf16>, vector<16x256xf32> -> vector<16x256xf32>
    %129 = arith.addf %98, %128 : vector<16x256xf32>
    %c0_48 = arith.constant 0 : index
    %c0_49 = arith.constant 0 : index
    %130 = vector.load %arg12[%c0_48, %c0_49] : memref<16x256xf32, #tpu.memory_space<vmem>>, vector<16x256xf32>
    tpu.vector_store %arg12[%c0_48, %c0_49], %129 {strides = array<i32>} : memref<16x256xf32, #tpu.memory_space<vmem>>, vector<16x256xf32>,
    return
  }
}

</mosaic_0001>

<llo_original>
// kernel: tpu_custom_call.1
$region0: #{tpu_custom_call.1}
  #allocation0 [shape = 'u32[]', space=smem, size = 0x4, offset = 0x4, fixed_abs, tag = 'smem constant byte address 0x4 - core index']
  #allocation1 [shape = 'u32[144,128]{1,0:T(1,128)}', space=vmem, size = 0x12000, scoped, tag = 'internal scratch']
  %s0 = inlined_call_operand.hbm [shape: f32[16,256], index: 0, kind: input, shape index: {}]
  %s1 = inlined_call_operand.hbm [shape: f32[8,128], index: 1, kind: input, shape index: {}]
  %s2 = inlined_call_operand.hbm [shape: f32[8,128], index: 2, kind: input, shape index: {}]
  %s3 = inlined_call_operand.hbm [shape: bf16[256,256], index: 3, kind: input, shape index: {}]
  %s4 = inlined_call_operand.hbm [shape: bf16[256,256], index: 4, kind: input, shape index: {}]
  %s5 = inlined_call_operand.hbm [shape: bf16[256,256], index: 5, kind: input, shape index: {}]
  %s6 = inlined_call_operand.hbm [shape: bf16[2,128,256], index: 6, kind: input, shape index: {}]
  %s7 = inlined_call_operand.hbm [shape: bf16[256,768], index: 7, kind: input, shape index: {}]
  %s8 = inlined_call_operand.hbm [shape: bf16[768,256], index: 8, kind: input, shape index: {}]
  %s9 = inlined_call_operand.hbm [shape: bf16[256,768], index: 9, kind: input, shape index: {}]
  %s10 = inlined_call_operand.vmem [shape: f32[1,256], index: 10, kind: input, shape index: {}]
  %s11 = inlined_call_operand.vmem [shape: f32[1,256], index: 11, kind: input, shape index: {}]
  %s12 = inlined_call_operand.hbm [shape: f32[16,256], index: 12, kind: output, shape index: {}]
  %s13 = sld [smem:[#allocation0]]
  $region98: #{tpu_custom_call.1} parent=0
    _
  %s15 = ssub.s32 1, %s13
  %s16 = scalar_select 0, %s15, %s13
  $region1: #{tpu_custom_call.1} parent=0
    #allocation2 [shape = 'u8[16384]{0}', space=vmem, size = 0x4000, scoped, tag = 'input window, operand 0, single buffered']
    #allocation3 [shape = 's32[1]{0}', space=sflag, size = 0x4, scoped, tag = 'scoped memory for tpu_custom_call.1']
    #allocation4 [shape = 's32[1]{0}', space=sflag, size = 0x4, scoped, tag = 'scoped memory for tpu_custom_call.1']
    #allocation5 [shape = 'u8[4096]{0}', space=vmem, size = 0x1000, scoped, tag = 'input window, operand 1, single buffered']
    #allocation6 [shape = 's32[1]{0}', space=sflag, size = 0x4, scoped, tag = 'scoped memory for tpu_custom_call.1']
    #allocation7 [shape = 'u8[4096]{0}', space=vmem, size = 0x1000, scoped, tag = 'input window, operand 2, single buffered']
    #allocation8 [shape = 'u8[131072]{0}', space=vmem, size = 0x20000, scoped, tag = 'input window, operand 3, single buffered']
    #allocation9 [shape = 's32[1]{0}', space=sflag, size = 0x4, scoped, tag = 'scoped memory for tpu_custom_call.1']
    #allocation10 [shape = 'u8[131072]{0}', space=vmem, size = 0x20000, scoped, tag = 'input window, operand 4, single buffered']
    #allocation11 [shape = 'u8[131072]{0}', space=vmem, size = 0x20000, scoped, tag = 'input window, operand 5, single buffered']
    #allocation12 [shape = 's32[1]{0}', space=sflag, size = 0x4, scoped, tag = 'scoped memory for tpu_custom_call.1']
    #allocation13 [shape = 'u8[131072]{0}', space=vmem, size = 0x20000, scoped, tag = 'input window, operand 6, single buffered']
    #allocation14 [shape = 'u8[393216]{0}', space=vmem, size = 0x60000, scoped, tag = 'input window, operand 7, single buffered']
    #allocation15 [shape = 's32[1]{0}', space=sflag, size = 0x4, scoped, tag = 'scoped memory for tpu_custom_call.1']
    #allocation16 [shape = 'u8[393216]{0}', space=vmem, size = 0x60000, scoped, tag = 'input window, operand 8, single buffered']
    #allocation17 [shape = 'u8[393216]{0}', space=vmem, size = 0x60000, scoped, tag = 'input window, operand 9, single buffered']
    #allocation18 [shape = 's32[1]{0}', space=sflag, size = 0x4, scoped, tag = 'scoped memory for tpu_custom_call.1']
    #allocation19 [shape = 'u8[16384]{0}', space=vmem, size = 0x4000, scoped, tag = 'output window, operand 0, single buffered']
    %17 = vsyncpa [#allocation3], 0
    %18 = vsyncpa [#allocation6], 0
    %19 = vsyncpa [#allocation9], 0
    %20 = vsyncpa [#allocation12], 0
    %21 = vsyncpa [#allocation15], 0
    %22 = vsyncpa [#allocation18], 0
    %23 = vsyncpa [#allocation4], 0
    // Predicated region
    $region2: #{tpu_custom_call.1} parent=1 // pred_check
      _
    $region3: #{tpu_custom_call.1} parent=1 // pred_check_branch
      %25 = sbr.rel (0) target = $region5
    $region4: #{tpu_custom_call.1} parent=1 // pred_region
      %s27 = ssub.s32 512, 512
      %28 = vsyncadd [#allocation3], %s27
      %s29 = sshll.u32 [#allocation2], 4
      %s30 = int_to_ptr.vmem [resolvable:$true] %s29
      %35 = dma.hbm_to_vmem [thread:$0]  %s0, 512, %s30, [#allocation3], 256, 256, 16
    $region5: #{tpu_custom_call.1} parent=1 // pred_fallthru
      _
    // Predicated region
    $region6: #{tpu_custom_call.1} parent=1 // pred_check
      _
    $region7: #{tpu_custom_call.1} parent=1 // pred_check_branch
      %37 = sbr.rel (0) target = $region9
    $region8: #{tpu_custom_call.1} parent=1 // pred_region
      %s39 = ssub.s32 128, 128
      %40 = vsyncadd [#allocation6], %s39
      %s42 = sshll.u32 [#allocation5], 4
      %s43 = int_to_ptr.vmem [resolvable:$true] %s42
      %45 = dma.hbm_to_vmem [thread:$0]  %s1, 128, %s43, [#allocation6]
    $region9: #{tpu_custom_call.1} parent=1 // pred_fallthru
      _
    // Predicated region
    $region10: #{tpu_custom_call.1} parent=1 // pred_check
      _
    $region11: #{tpu_custom_call.1} parent=1 // pred_check_branch
      %47 = sbr.rel (0) target = $region13
    $region12: #{tpu_custom_call.1} parent=1 // pred_region
      %s49 = ssub.s32 128, 128
      %50 = vsyncadd [#allocation6], %s49
      %s52 = sshll.u32 [#allocation7], 4
      %s53 = int_to_ptr.vmem [resolvable:$true] %s52
      %55 = dma.hbm_to_vmem [thread:$0]  %s2, 128, %s53, [#allocation6]
    $region13: #{tpu_custom_call.1} parent=1 // pred_fallthru
      _
    // Predicated region
    $region14: #{tpu_custom_call.1} parent=1 // pred_check
      _
    $region15: #{tpu_custom_call.1} parent=1 // pred_check_branch
      %57 = sbr.rel (0) target = $region17
    $region16: #{tpu_custom_call.1} parent=1 // pred_region
      %s59 = ssub.s32 4096, 4096
      %60 = vsyncadd [#allocation9], %s59
      %s61 = sshll.u32 [#allocation8], 4
      %s62 = int_to_ptr.vmem [resolvable:$true] %s61
      %67 = dma.hbm_to_vmem [thread:$0]  %s3, 4096, %s62, [#allocation9], 128, 128, 8
    $region17: #{tpu_custom_call.1} parent=1 // pred_fallthru
      _
    // Predicated region
    $region18: #{tpu_custom_call.1} parent=1 // pred_check
      _
    $region19: #{tpu_custom_call.1} parent=1 // pred_check_branch
      %69 = sbr.rel (0) target = $region21
    $region20: #{tpu_custom_call.1} parent=1 // pred_region
      %s71 = ssub.s32 4096, 4096
      %72 = vsyncadd [#allocation9], %s71
      %s73 = sshll.u32 [#allocation10], 4
      %s74 = int_to_ptr.vmem [resolvable:$true] %s73
      %79 = dma.hbm_to_vmem [thread:$0]  %s4, 4096, %s74, [#allocation9], 128, 128, 8
    $region21: #{tpu_custom_call.1} parent=1 // pred_fallthru
      _
    // Predicated region
    $region22: #{tpu_custom_call.1} parent=1 // pred_check
      _
    $region23: #{tpu_custom_call.1} parent=1 // pred_check_branch
      %81 = sbr.rel (0) target = $region25
    $region24: #{tpu_custom_call.1} parent=1 // pred_region
      %s83 = ssub.s32 4096, 4096
      %84 = vsyncadd [#allocation12], %s83
      %s85 = sshll.u32 [#allocation11], 4
      %s86 = int_to_ptr.vmem [resolvable:$true] %s85
      %91 = dma.hbm_to_vmem [thread:$0]  %s5, 4096, %s86, [#allocation12], 128, 128, 8
    $region25: #{tpu_custom_call.1} parent=1 // pred_fallthru
      _
    // Predicated region
    $region26: #{tpu_custom_call.1} parent=1 // pred_check
      _
    $region27: #{tpu_custom_call.1} parent=1 // pred_check_branch
      %93 = sbr.rel (0) target = $region29
    $region28: #{tpu_custom_call.1} parent=1 // pred_region
      %s95 = ssub.s32 4096, 4096
      %96 = vsyncadd [#allocation12], %s95
      %s97 = sshll.u32 [#allocation13], 4
      %s98 = int_to_ptr.vmem [resolvable:$true] %s97
      %103 = dma.hbm_to_vmem [thread:$0]  %s6, 4096, %s98, [#allocation12], 128, 128, 8
    $region29: #{tpu_custom_call.1} parent=1 // pred_fallthru
      _
    // Predicated region
    $region30: #{tpu_custom_call.1} parent=1 // pred_check
      _
    $region31: #{tpu_custom_call.1} parent=1 // pred_check_branch
      %105 = sbr.rel (0) target = $region33
    $region32: #{tpu_custom_call.1} parent=1 // pred_region
      %s107 = ssub.s32 12288, 12288
      %108 = vsyncadd [#allocation15], %s107
      %s109 = sshll.u32 [#allocation14], 4
      %s110 = int_to_ptr.vmem [resolvable:$true] %s109
      %115 = dma.hbm_to_vmem [thread:$0]  %s7, 12288, %s110, [#allocation15], 384, 384, 24
    $region33: #{tpu_custom_call.1} parent=1 // pred_fallthru
      _
    // Predicated region
    $region34: #{tpu_custom_call.1} parent=1 // pred_check
      _
    $region35: #{tpu_custom_call.1} parent=1 // pred_check_branch
      %117 = sbr.rel (0) target = $region37
    $region36: #{tpu_custom_call.1} parent=1 // pred_region
      %s119 = ssub.s32 12288, 12288
      %120 = vsyncadd [#allocation15], %s119
      %s121 = sshll.u32 [#allocation16], 4
      %s122 = int_to_ptr.vmem [resolvable:$true] %s121
      %127 = dma.hbm_to_vmem [thread:$0]  %s8, 12288, %s122, [#allocation15], 128, 128, 8
    $region37: #{tpu_custom_call.1} parent=1 // pred_fallthru
      _
    // Predicated region
    $region38: #{tpu_custom_call.1} parent=1 // pred_check
      _
    $region39: #{tpu_custom_call.1} parent=1 // pred_check_branch
      %129 = sbr.rel (0) target = $region41
    $region40: #{tpu_custom_call.1} parent=1 // pred_region
      %s131 = ssub.s32 12288, 12288
      %132 = vsyncadd [#allocation18], %s131
      %s133 = sshll.u32 [#allocation17], 4
      %s134 = int_to_ptr.vmem [resolvable:$true] %s133
      %139 = dma.hbm_to_vmem [thread:$0]  %s9, 12288, %s134, [#allocation18], 384, 384, 24
    $region41: #{tpu_custom_call.1} parent=1 // pred_fallthru
      _
    // Predicated region
    $region42: #{tpu_custom_call.1} parent=1 // pred_check
      _
    $region43: #{tpu_custom_call.1} parent=1 // pred_check_branch
      %141 = sbr.rel (0) target = $region45
    $region44: #{tpu_custom_call.1} parent=1 // pred_region
      _
    $region45: #{tpu_custom_call.1} parent=1 // pred_fallthru
      _
    // Predicated region
    $region46: #{tpu_custom_call.1} parent=1 // pred_check
      _
    $region47: #{tpu_custom_call.1} parent=1 // pred_check_branch
      %143 = sbr.rel (0) target = $region49
    $region48: #{tpu_custom_call.1} parent=1 // pred_region
      _
    $region49: #{tpu_custom_call.1} parent=1 // pred_fallthru
      _
    // Predicated region
    $region50: #{tpu_custom_call.1} parent=1 // pred_check
      _
    $region51: #{tpu_custom_call.1} parent=1 // pred_check_branch
      %145 = sbr.rel (0) target = $region53
    $region52: #{tpu_custom_call.1} parent=1 // pred_region
      %146 = dma.done [#allocation3], 512
    $region53: #{tpu_custom_call.1} parent=1 // pred_fallthru
      _
    // Predicated region
    $region54: #{tpu_custom_call.1} parent=1 // pred_check
      _
    $region55: #{tpu_custom_call.1} parent=1 // pred_check_branch
      %148 = sbr.rel (0) target = $region57
    $region56: #{tpu_custom_call.1} parent=1 // pred_region
      %149 = dma.done [#allocation6], 128
    $region57: #{tpu_custom_call.1} parent=1 // pred_fallthru
      _
    // Predicated region
    $region58: #{tpu_custom_call.1} parent=1 // pred_check
      _
    $region59: #{tpu_custom_call.1} parent=1 // pred_check_branch
      %151 = sbr.rel (0) target = $region61
    $region60: #{tpu_custom_call.1} parent=1 // pred_region
      %152 = dma.done [#allocation6], 128
    $region61: #{tpu_custom_call.1} parent=1 // pred_fallthru
      _
    // Predicated region
    $region62: #{tpu_custom_call.1} parent=1 // pred_check
      _
    $region63: #{tpu_custom_call.1} parent=1 // pred_check_branch
      %154 = sbr.rel (0) target = $region65
    $region64: #{tpu_custom_call.1} parent=1 // pred_region
      %155 = dma.done [#allocation9], 4096
    $region65: #{tpu_custom_call.1} parent=1 // pred_fallthru
      _
    // Predicated region
    $region66: #{tpu_custom_call.1} parent=1 // pred_check
      _
    $region67: #{tpu_custom_call.1} parent=1 // pred_check_branch
      %157 = sbr.rel (0) target = $region69
    $region68: #{tpu_custom_call.1} parent=1 // pred_region
      %158 = dma.done [#allocation9], 4096
    $region69: #{tpu_custom_call.1} parent=1 // pred_fallthru
      _
    // Predicated region
    $region70: #{tpu_custom_call.1} parent=1 // pred_check
      _
    $region71: #{tpu_custom_call.1} parent=1 // pred_check_branch
      %160 = sbr.rel (0) target = $region73
    $region72: #{tpu_custom_call.1} parent=1 // pred_region
      %161 = dma.done [#allocation12], 4096
    $region73: #{tpu_custom_call.1} parent=1 // pred_fallthru
      _
    // Predicated region
    $region74: #{tpu_custom_call.1} parent=1 // pred_check
      _
    $region75: #{tpu_custom_call.1} parent=1 // pred_check_branch
      %163 = sbr.rel (0) target = $region77
    $region76: #{tpu_custom_call.1} parent=1 // pred_region
      %164 = dma.done [#allocation12], 4096
    $region77: #{tpu_custom_call.1} parent=1 // pred_fallthru
      _
    // Predicated region
    $region78: #{tpu_custom_call.1} parent=1 // pred_check
      _
    $region79: #{tpu_custom_call.1} parent=1 // pred_check_branch
      %166 = sbr.rel (0) target = $region81
    $region80: #{tpu_custom_call.1} parent=1 // pred_region
      %167 = dma.done [#allocation15], 12288
    $region81: #{tpu_custom_call.1} parent=1 // pred_fallthru
      _
    // Predicated region
    $region82: #{tpu_custom_call.1} parent=1 // pred_check
      _
    $region83: #{tpu_custom_call.1} parent=1 // pred_check_branch
      %169 = sbr.rel (0) target = $region85
    $region84: #{tpu_custom_call.1} parent=1 // pred_region
      %170 = dma.done [#allocation15], 12288
    $region85: #{tpu_custom_call.1} parent=1 // pred_fallthru
      _
    // Predicated region
    $region86: #{tpu_custom_call.1} parent=1 // pred_check
      _
    $region87: #{tpu_custom_call.1} parent=1 // pred_check_branch
      %172 = sbr.rel (0) target = $region89
    $region88: #{tpu_custom_call.1} parent=1 // pred_region
      %173 = dma.done [#allocation18], 12288
    $region89: #{tpu_custom_call.1} parent=1 // pred_fallthru
      _
    %v175 = vld [vmem:[#allocation2] sm:$0xff]
    %v176 = vld [vmem:[#allocation2 + $0x8] sm:$0xff]
    %v177 = vld [vmem:[#allocation2 + $0x10] sm:$0xff]
    %v178 = vld [vmem:[#allocation2 + $0x18] sm:$0xff]
    %v179 = vld [vmem:[#allocation5] sm:$0xff]
    %v180 = vld [vmem:[#allocation7] sm:$0xff]
    %v181 = vlaneseq
    %v182 = vshrl.u32 %v181, 7
    %v183 = vlaneseq
    %v184 = vand.u32 %v183, 127
    %vm185 = vcmp.gt.s32.totalorder %v184, %v182
    %v186 = vsel %vm185, -1e+30, 0.0
    %v187 = vld [vmem:[%s10] sm:$0x3]
    %v188 = vmul.f32 %v175, %v175
    %v189 = vmul.f32 %v176, %v176
    %v190 = vmul.f32 %v177, %v177
    %v191 = vmul.f32 %v178, %v178
    %v192 = vadd.f32 %v188, %v189
    %193 = vadd.xlane.f32.xlu0 %v192
    %v194 = vpop.xlane.xlu0 %193
    %v195 = vadd.f32 %v190, %v191
    %196 = vadd.xlane.f32.xlu0 %v195
    %v197 = vpop.xlane.xlu0 %196
    %v198 = vrcp.pop 256.0
    %v199 = vmul.f32 %v194, %v198
    %v200 = vmul.f32 %v197, %v198
    %v201 = vadd.f32 %v199, 1e-05
    %v202 = vadd.f32 %v200, 1e-05
    %v203 = vrsqrt.pop %v201
    %v204 = vrsqrt.pop %v202
    %v205 = vmul.f32 %v175, %v203
    %v206 = vmul.f32 %v176, %v203
    %v207 = vmul.f32 %v177, %v204
    %v208 = vmul.f32 %v178, %v204
    %v210 = vlaneseq
    %v211 = vshrl.u32 %v210, 7
    %v212 = vsub.s32 0, %v211
    %v213 = vrot.slane %v187, %v212
    %v214 = vlaneseq
    %v215 = vshrl.u32 %v214, 7
    %v216 = vsub.s32 1, %v215
    %v217 = vrot.slane %v187, %v216
    %v220 = vmul.f32 %v205, %v213
    %v221 = vmul.f32 %v206, %v217
    %v222 = vmul.f32 %v207, %v213
    %v223 = vmul.f32 %v208, %v217
    %v224 = vpack.c.bf16 %v222, %v220
    %v225 = vpack.c.bf16 %v223, %v221
    %v226 = vld [vmem:[#allocation8] sm:$0xff]
    %v227 = vld [vmem:[#allocation8 + $0x8] sm:$0xff]
    %v228 = vld [vmem:[#allocation8 + $0x10] sm:$0xff]
    %v229 = vld [vmem:[#allocation8 + $0x18] sm:$0xff]
    %v230 = vld [vmem:[#allocation8 + $0x20] sm:$0xff]
    %v231 = vld [vmem:[#allocation8 + $0x28] sm:$0xff]
    %v232 = vld [vmem:[#allocation8 + $0x30] sm:$0xff]
    %v233 = vld [vmem:[#allocation8 + $0x38] sm:$0xff]
    %v234 = vld [vmem:[#allocation8 + $0x40] sm:$0xff]
    %v235 = vld [vmem:[#allocation8 + $0x48] sm:$0xff]
    %v236 = vld [vmem:[#allocation8 + $0x50] sm:$0xff]
    %v237 = vld [vmem:[#allocation8 + $0x58] sm:$0xff]
    %v238 = vld [vmem:[#allocation8 + $0x60] sm:$0xff]
    %v239 = vld [vmem:[#allocation8 + $0x68] sm:$0xff]
    %v240 = vld [vmem:[#allocation8 + $0x70] sm:$0xff]
    %v241 = vld [vmem:[#allocation8 + $0x78] sm:$0xff]
    %v242 = vld [vmem:[#allocation8 + $0x80] sm:$0xff]
    %v243 = vld [vmem:[#allocation8 + $0x88] sm:$0xff]
    %v244 = vld [vmem:[#allocation8 + $0x90] sm:$0xff]
    %v245 = vld [vmem:[#allocation8 + $0x98] sm:$0xff]
    %v246 = vld [vmem:[#allocation8 + $0xa0] sm:$0xff]
    %v247 = vld [vmem:[#allocation8 + $0xa8] sm:$0xff]
    %v248 = vld [vmem:[#allocation8 + $0xb0] sm:$0xff]
    %v249 = vld [vmem:[#allocation8 + $0xb8] sm:$0xff]
    %v250 = vld [vmem:[#allocation8 + $0xc0] sm:$0xff]
    %v251 = vld [vmem:[#allocation8 + $0xc8] sm:$0xff]
    %v252 = vld [vmem:[#allocation8 + $0xd0] sm:$0xff]
    %v253 = vld [vmem:[#allocation8 + $0xd8] sm:$0xff]
    %v254 = vld [vmem:[#allocation8 + $0xe0] sm:$0xff]
    %v255 = vld [vmem:[#allocation8 + $0xe8] sm:$0xff]
    %v256 = vld [vmem:[#allocation8 + $0xf0] sm:$0xff]
    %v257 = vld [vmem:[#allocation8 + $0xf8] sm:$0xff]
    %v290 = vunpack.c.l.b16 %v226
    %v291 = vunpack.c.h.b16 %v226
    %v292 = vunpack.c.l.b16 %v227
    %v293 = vunpack.c.h.b16 %v227
    %v294 = vunpack.c.l.b16 %v228
    %v295 = vunpack.c.h.b16 %v228
    %v296 = vunpack.c.l.b16 %v229
    %v297 = vunpack.c.h.b16 %v229
    %v298 = vunpack.c.l.b16 %v230
    %v299 = vunpack.c.h.b16 %v230
    %v300 = vunpack.c.l.b16 %v231
    %v301 = vunpack.c.h.b16 %v231
    %v302 = vunpack.c.l.b16 %v232
    %v303 = vunpack.c.h.b16 %v232
    %v304 = vunpack.c.l.b16 %v233
    %v305 = vunpack.c.h.b16 %v233
    %v306 = vunpack.c.l.b16 %v234
    %v307 = vunpack.c.h.b16 %v234
    %v308 = vunpack.c.l.b16 %v235
    %v309 = vunpack.c.h.b16 %v235
    %v310 = vunpack.c.l.b16 %v236
    %v311 = vunpack.c.h.b16 %v236
    %v312 = vunpack.c.l.b16 %v237
    %v313 = vunpack.c.h.b16 %v237
    %v314 = vunpack.c.l.b16 %v238
    %v315 = vunpack.c.h.b16 %v238
    %v316 = vunpack.c.l.b16 %v239
    %v317 = vunpack.c.h.b16 %v239
    %v318 = vunpack.c.l.b16 %v240
    %v319 = vunpack.c.h.b16 %v240
    %v320 = vunpack.c.l.b16 %v241
    %v321 = vunpack.c.h.b16 %v241
    %v322 = vunpack.c.l.b16 %v242
    %v323 = vunpack.c.h.b16 %v242
    %v324 = vunpack.c.l.b16 %v243
    %v325 = vunpack.c.h.b16 %v243
    %v326 = vunpack.c.l.b16 %v244
    %v327 = vunpack.c.h.b16 %v244
    %v328 = vunpack.c.l.b16 %v245
    %v329 = vunpack.c.h.b16 %v245
    %v330 = vunpack.c.l.b16 %v246
    %v331 = vunpack.c.h.b16 %v246
    %v332 = vunpack.c.l.b16 %v247
    %v333 = vunpack.c.h.b16 %v247
    %v334 = vunpack.c.l.b16 %v248
    %v335 = vunpack.c.h.b16 %v248
    %v336 = vunpack.c.l.b16 %v249
    %v337 = vunpack.c.h.b16 %v249
    %v338 = vunpack.c.l.b16 %v250
    %v339 = vunpack.c.h.b16 %v250
    %v340 = vunpack.c.l.b16 %v251
    %v341 = vunpack.c.h.b16 %v251
    %v342 = vunpack.c.l.b16 %v252
    %v343 = vunpack.c.h.b16 %v252
    %v344 = vunpack.c.l.b16 %v253
    %v345 = vunpack.c.h.b16 %v253
    %v346 = vunpack.c.l.b16 %v254
    %v347 = vunpack.c.h.b16 %v254
    %v348 = vunpack.c.l.b16 %v255
    %v349 = vunpack.c.h.b16 %v255
    %v350 = vunpack.c.l.b16 %v256
    %v351 = vunpack.c.h.b16 %v256
    %v352 = vunpack.c.l.b16 %v257
    %v353 = vunpack.c.h.b16 %v257
    %v354 = vpack.c.b16 %v292, %v290
    %v355 = vpack.c.b16 %v293, %v291
    %v356 = vpack.c.b16 %v296, %v294
    %v357 = vpack.c.b16 %v297, %v295
    %v358 = vpack.c.b16 %v300, %v298
    %v359 = vpack.c.b16 %v301, %v299
    %v360 = vpack.c.b16 %v304, %v302
    %v361 = vpack.c.b16 %v305, %v303
    %v362 = vpack.c.b16 %v308, %v306
    %v363 = vpack.c.b16 %v309, %v307
    %v364 = vpack.c.b16 %v312, %v310
    %v365 = vpack.c.b16 %v313, %v311
    %v366 = vpack.c.b16 %v316, %v314
    %v367 = vpack.c.b16 %v317, %v315
    %v368 = vpack.c.b16 %v320, %v318
    %v369 = vpack.c.b16 %v321, %v319
    %v370 = vpack.c.b16 %v324, %v322
    %v371 = vpack.c.b16 %v325, %v323
    %v372 = vpack.c.b16 %v328, %v326
    %v373 = vpack.c.b16 %v329, %v327
    %v374 = vpack.c.b16 %v332, %v330
    %v375 = vpack.c.b16 %v333, %v331
    %v376 = vpack.c.b16 %v336, %v334
    %v377 = vpack.c.b16 %v337, %v335
    %v378 = vpack.c.b16 %v340, %v338
    %v379 = vpack.c.b16 %v341, %v339
    %v380 = vpack.c.b16 %v344, %v342
    %v381 = vpack.c.b16 %v345, %v343
    %v382 = vpack.c.b16 %v348, %v346
    %v383 = vpack.c.b16 %v349, %v347
    %v384 = vpack.c.b16 %v352, %v350
    %v385 = vpack.c.b16 %v353, %v351
    %418 = vmatprep.subr.bf16.mxu0 %v355
    %419 = vmatpush1.bf16.msra.mxu0 %v354
    %420 = vmatprep.subr.bf16.mxu0 %v357
    %421 = vmatpush1.bf16.msra.mxu0 %v356
    %422 = vmatprep.subr.bf16.mxu0 %v359
    %423 = vmatpush1.bf16.msra.mxu0 %v358
    %424 = vmatprep.subr.bf16.mxu0 %v361
    %425 = vmatpush1.bf16.msra.mxu0 %v360
    %426 = vmatprep.subr.bf16.mxu0 %v363
    %427 = vmatpush1.bf16.msra.mxu0 %v362
    %428 = vmatprep.subr.bf16.mxu0 %v365
    %429 = vmatpush1.bf16.msra.mxu0 %v364
    %430 = vmatprep.subr.bf16.mxu0 %v367
    %431 = vmatpush1.bf16.msra.mxu0 %v366
    %432 = vmatprep.subr.bf16.mxu0 %v369
    %433 = vmatpush1.bf16.msra.mxu0 %v368
    %434 = vmatprep.subr.bf16.mxu0 %v371
    %435 = vmatpush1.bf16.msra.mxu0 %v370
    %436 = vmatprep.subr.bf16.mxu0 %v373
    %437 = vmatpush1.bf16.msra.mxu0 %v372
    %438 = vmatprep.subr.bf16.mxu0 %v375
    %439 = vmatpush1.bf16.msra.mxu0 %v374
    %440 = vmatprep.subr.bf16.mxu0 %v377
    %441 = vmatpush1.bf16.msra.mxu0 %v376
    %442 = vmatprep.subr.bf16.mxu0 %v379
    %443 = vmatpush1.bf16.msra.mxu0 %v378
    %444 = vmatprep.subr.bf16.mxu0 %v381
    %445 = vmatpush1.bf16.msra.mxu0 %v380
    %446 = vmatprep.subr.bf16.mxu0 %v383
    %447 = vmatpush1.bf16.msra.mxu0 %v382
    %448 = vmatprep.subr.bf16.mxu0 %v385
    %449 = vmatpush1.bf16.msra.mxu0 %v384
    %450 = vmatprep.mubr.bf16.mxu0 %v225
    %451 = vmatmul.mubr.bf16.gmra.mrb[0].mxu0 %v224
    %v452 = vpop.f32.mrb[0].mxu0
    %v453 = vadd.f32 0.0, %v452
    %v454 = vpop.f32.mrb[0].mxu0
    %v455 = vadd.f32 0.0, %v454
    %v456 = vpop.f32.mrb[0].mxu0
    %v457 = vadd.f32 0.0, %v456
    %v458 = vpop.f32.mrb[0].mxu0
    %v459 = vadd.f32 0.0, %v458
    %460 = vdwg.mxu0
    %v461 = vmul.f32 %v453, 0.088388346
    %v462 = vmul.f32 %v455, 0.088388346
    %v463 = vmul.f32 %v457, 0.088388346
    %v464 = vmul.f32 %v459, 0.088388346
    %v465 = vld [vmem:[#allocation10] sm:$0xff]
    %v466 = vld [vmem:[#allocation10 + $0x8] sm:$0xff]
    %v467 = vld [vmem:[#allocation10 + $0x10] sm:$0xff]
    %v468 = vld [vmem:[#allocation10 + $0x18] sm:$0xff]
    %v469 = vld [vmem:[#allocation10 + $0x20] sm:$0xff]
    %v470 = vld [vmem:[#allocation10 + $0x28] sm:$0xff]
    %v471 = vld [vmem:[#allocation10 + $0x30] sm:$0xff]
    %v472 = vld [vmem:[#allocation10 + $0x38] sm:$0xff]
    %v473 = vld [vmem:[#allocation10 + $0x40] sm:$0xff]
    %v474 = vld [vmem:[#allocation10 + $0x48] sm:$0xff]
    %v475 = vld [vmem:[#allocation10 + $0x50] sm:$0xff]
    %v476 = vld [vmem:[#allocation10 + $0x58] sm:$0xff]
    %v477 = vld [vmem:[#allocation10 + $0x60] sm:$0xff]
    %v478 = vld [vmem:[#allocation10 + $0x68] sm:$0xff]
    %v479 = vld [vmem:[#allocation10 + $0x70] sm:$0xff]
    %v480 = vld [vmem:[#allocation10 + $0x78] sm:$0xff]
    %v481 = vld [vmem:[#allocation10 + $0x80] sm:$0xff]
    %v482 = vld [vmem:[#allocation10 + $0x88] sm:$0xff]
    %v483 = vld [vmem:[#allocation10 + $0x90] sm:$0xff]
    %v484 = vld [vmem:[#allocation10 + $0x98] sm:$0xff]
    %v485 = vld [vmem:[#allocation10 + $0xa0] sm:$0xff]
    %v486 = vld [vmem:[#allocation10 + $0xa8] sm:$0xff]
    %v487 = vld [vmem:[#allocation10 + $0xb0] sm:$0xff]
    %v488 = vld [vmem:[#allocation10 + $0xb8] sm:$0xff]
    %v489 = vld [vmem:[#allocation10 + $0xc0] sm:$0xff]
    %v490 = vld [vmem:[#allocation10 + $0xc8] sm:$0xff]
    %v491 = vld [vmem:[#allocation10 + $0xd0] sm:$0xff]
    %v492 = vld [vmem:[#allocation10 + $0xd8] sm:$0xff]
    %v493 = vld [vmem:[#allocation10 + $0xe0] sm:$0xff]
    %v494 = vld [vmem:[#allocation10 + $0xe8] sm:$0xff]
    %v495 = vld [vmem:[#allocation10 + $0xf0] sm:$0xff]
    %v496 = vld [vmem:[#allocation10 + $0xf8] sm:$0xff]
    %v529 = vunpack.c.l.b16 %v465
    %v530 = vunpack.c.h.b16 %v465
    %v531 = vunpack.c.l.b16 %v466
    %v532 = vunpack.c.h.b16 %v466
    %v533 = vunpack.c.l.b16 %v467
    %v534 = vunpack.c.h.b16 %v467
    %v535 = vunpack.c.l.b16 %v468
    %v536 = vunpack.c.h.b16 %v468
    %v537 = vunpack.c.l.b16 %v469
    %v538 = vunpack.c.h.b16 %v469
    %v539 = vunpack.c.l.b16 %v470
    %v540 = vunpack.c.h.b16 %v470
    %v541 = vunpack.c.l.b16 %v471
    %v542 = vunpack.c.h.b16 %v471
    %v543 = vunpack.c.l.b16 %v472
    %v544 = vunpack.c.h.b16 %v472
    %v545 = vunpack.c.l.b16 %v473
    %v546 = vunpack.c.h.b16 %v473
    %v547 = vunpack.c.l.b16 %v474
    %v548 = vunpack.c.h.b16 %v474
    %v549 = vunpack.c.l.b16 %v475
    %v550 = vunpack.c.h.b16 %v475
    %v551 = vunpack.c.l.b16 %v476
    %v552 = vunpack.c.h.b16 %v476
    %v553 = vunpack.c.l.b16 %v477
    %v554 = vunpack.c.h.b16 %v477
    %v555 = vunpack.c.l.b16 %v478
    %v556 = vunpack.c.h.b16 %v478
    %v557 = vunpack.c.l.b16 %v479
    %v558 = vunpack.c.h.b16 %v479
    %v559 = vunpack.c.l.b16 %v480
    %v560 = vunpack.c.h.b16 %v480
    %v561 = vunpack.c.l.b16 %v481
    %v562 = vunpack.c.h.b16 %v481
    %v563 = vunpack.c.l.b16 %v482
    %v564 = vunpack.c.h.b16 %v482
    %v565 = vunpack.c.l.b16 %v483
    %v566 = vunpack.c.h.b16 %v483
    %v567 = vunpack.c.l.b16 %v484
    %v568 = vunpack.c.h.b16 %v484
    %v569 = vunpack.c.l.b16 %v485
    %v570 = vunpack.c.h.b16 %v485
    %v571 = vunpack.c.l.b16 %v486
    %v572 = vunpack.c.h.b16 %v486
    %v573 = vunpack.c.l.b16 %v487
    %v574 = vunpack.c.h.b16 %v487
    %v575 = vunpack.c.l.b16 %v488
    %v576 = vunpack.c.h.b16 %v488
    %v577 = vunpack.c.l.b16 %v489
    %v578 = vunpack.c.h.b16 %v489
    %v579 = vunpack.c.l.b16 %v490
    %v580 = vunpack.c.h.b16 %v490
    %v581 = vunpack.c.l.b16 %v491
    %v582 = vunpack.c.h.b16 %v491
    %v583 = vunpack.c.l.b16 %v492
    %v584 = vunpack.c.h.b16 %v492
    %v585 = vunpack.c.l.b16 %v493
    %v586 = vunpack.c.h.b16 %v493
    %v587 = vunpack.c.l.b16 %v494
    %v588 = vunpack.c.h.b16 %v494
    %v589 = vunpack.c.l.b16 %v495
    %v590 = vunpack.c.h.b16 %v495
    %v591 = vunpack.c.l.b16 %v496
    %v592 = vunpack.c.h.b16 %v496
    %v593 = vpack.c.b16 %v531, %v529
    %v594 = vpack.c.b16 %v532, %v530
    %v595 = vpack.c.b16 %v535, %v533
    %v596 = vpack.c.b16 %v536, %v534
    %v597 = vpack.c.b16 %v539, %v537
    %v598 = vpack.c.b16 %v540, %v538
    %v599 = vpack.c.b16 %v543, %v541
    %v600 = vpack.c.b16 %v544, %v542
    %v601 = vpack.c.b16 %v547, %v545
    %v602 = vpack.c.b16 %v548, %v546
    %v603 = vpack.c.b16 %v551, %v549
    %v604 = vpack.c.b16 %v552, %v550
    %v605 = vpack.c.b16 %v555, %v553
    %v606 = vpack.c.b16 %v556, %v554
    %v607 = vpack.c.b16 %v559, %v557
    %v608 = vpack.c.b16 %v560, %v558
    %v609 = vpack.c.b16 %v563, %v561
    %v610 = vpack.c.b16 %v564, %v562
    %v611 = vpack.c.b16 %v567, %v565
    %v612 = vpack.c.b16 %v568, %v566
    %v613 = vpack.c.b16 %v571, %v569
    %v614 = vpack.c.b16 %v572, %v570
    %v615 = vpack.c.b16 %v575, %v573
    %v616 = vpack.c.b16 %v576, %v574
    %v617 = vpack.c.b16 %v579, %v577
    %v618 = vpack.c.b16 %v580, %v578
    %v619 = vpack.c.b16 %v583, %v581
    %v620 = vpack.c.b16 %v584, %v582
    %v621 = vpack.c.b16 %v587, %v585
    %v622 = vpack.c.b16 %v588, %v586
    %v623 = vpack.c.b16 %v591, %v589
    %v624 = vpack.c.b16 %v592, %v590
    %657 = vmatprep.subr.bf16.mxu0 %v594
    %658 = vmatpush1.bf16.msra.mxu0 %v593
    %659 = vmatprep.subr.bf16.mxu0 %v596
    %660 = vmatpush1.bf16.msra.mxu0 %v595
    %661 = vmatprep.subr.bf16.mxu0 %v598
    %662 = vmatpush1.bf16.msra.mxu0 %v597
    %663 = vmatprep.subr.bf16.mxu0 %v600
    %664 = vmatpush1.bf16.msra.mxu0 %v599
    %665 = vmatprep.subr.bf16.mxu0 %v602
    %666 = vmatpush1.bf16.msra.mxu0 %v601
    %667 = vmatprep.subr.bf16.mxu0 %v604
    %668 = vmatpush1.bf16.msra.mxu0 %v603
    %669 = vmatprep.subr.bf16.mxu0 %v606
    %670 = vmatpush1.bf16.msra.mxu0 %v605
    %671 = vmatprep.subr.bf16.mxu0 %v608
    %672 = vmatpush1.bf16.msra.mxu0 %v607
    %673 = vmatprep.subr.bf16.mxu0 %v610
    %674 = vmatpush1.bf16.msra.mxu0 %v609
    %675 = vmatprep.subr.bf16.mxu0 %v612
    %676 = vmatpush1.bf16.msra.mxu0 %v611
    %677 = vmatprep.subr.bf16.mxu0 %v614
    %678 = vmatpush1.bf16.msra.mxu0 %v613
    %679 = vmatprep.subr.bf16.mxu0 %v616
    %680 = vmatpush1.bf16.msra.mxu0 %v615
    %681 = vmatprep.subr.bf16.mxu0 %v618
    %682 = vmatpush1.bf16.msra.mxu0 %v617
    %683 = vmatprep.subr.bf16.mxu0 %v620
    %684 = vmatpush1.bf16.msra.mxu0 %v619
    %685 = vmatprep.subr.bf16.mxu0 %v622
    %686 = vmatpush1.bf16.msra.mxu0 %v621
    %687 = vmatprep.subr.bf16.mxu0 %v624
    %688 = vmatpush1.bf16.msra.mxu0 %v623
    %689 = vmatprep.mubr.bf16.mxu0 %v225
    %690 = vmatmul.mubr.bf16.gmra.mrb[0].mxu0 %v224
    %v691 = vpop.f32.mrb[0].mxu0
    %v692 = vadd.f32 0.0, %v691
    %v693 = vpop.f32.mrb[0].mxu0
    %v694 = vadd.f32 0.0, %v693
    %v695 = vpop.f32.mrb[0].mxu0
    %v696 = vadd.f32 0.0, %v695
    %v697 = vpop.f32.mrb[0].mxu0
    %v698 = vadd.f32 0.0, %v697
    %699 = vdwg.mxu0
    %v700 = vld [vmem:[#allocation11] sm:$0xff]
    %v701 = vld [vmem:[#allocation11 + $0x8] sm:$0xff]
    %v702 = vld [vmem:[#allocation11 + $0x10] sm:$0xff]
    %v703 = vld [vmem:[#allocation11 + $0x18] sm:$0xff]
    %v704 = vld [vmem:[#allocation11 + $0x20] sm:$0xff]
    %v705 = vld [vmem:[#allocation11 + $0x28] sm:$0xff]
    %v706 = vld [vmem:[#allocation11 + $0x30] sm:$0xff]
    %v707 = vld [vmem:[#allocation11 + $0x38] sm:$0xff]
    %v708 = vld [vmem:[#allocation11 + $0x40] sm:$0xff]
    %v709 = vld [vmem:[#allocation11 + $0x48] sm:$0xff]
    %v710 = vld [vmem:[#allocation11 + $0x50] sm:$0xff]
    %v711 = vld [vmem:[#allocation11 + $0x58] sm:$0xff]
    %v712 = vld [vmem:[#allocation11 + $0x60] sm:$0xff]
    %v713 = vld [vmem:[#allocation11 + $0x68] sm:$0xff]
    %v714 = vld [vmem:[#allocation11 + $0x70] sm:$0xff]
    %v715 = vld [vmem:[#allocation11 + $0x78] sm:$0xff]
    %v716 = vld [vmem:[#allocation11 + $0x80] sm:$0xff]
    %v717 = vld [vmem:[#allocation11 + $0x88] sm:$0xff]
    %v718 = vld [vmem:[#allocation11 + $0x90] sm:$0xff]
    %v719 = vld [vmem:[#allocation11 + $0x98] sm:$0xff]
    %v720 = vld [vmem:[#allocation11 + $0xa0] sm:$0xff]
    %v721 = vld [vmem:[#allocation11 + $0xa8] sm:$0xff]
    %v722 = vld [vmem:[#allocation11 + $0xb0] sm:$0xff]
    %v723 = vld [vmem:[#allocation11 + $0xb8] sm:$0xff]
    %v724 = vld [vmem:[#allocation11 + $0xc0] sm:$0xff]
    %v725 = vld [vmem:[#allocation11 + $0xc8] sm:$0xff]
    %v726 = vld [vmem:[#allocation11 + $0xd0] sm:$0xff]
    %v727 = vld [vmem:[#allocation11 + $0xd8] sm:$0xff]
    %v728 = vld [vmem:[#allocation11 + $0xe0] sm:$0xff]
    %v729 = vld [vmem:[#allocation11 + $0xe8] sm:$0xff]
    %v730 = vld [vmem:[#allocation11 + $0xf0] sm:$0xff]
    %v731 = vld [vmem:[#allocation11 + $0xf8] sm:$0xff]
    %v764 = vunpack.c.l.b16 %v700
    %v765 = vunpack.c.h.b16 %v700
    %v766 = vunpack.c.l.b16 %v701
    %v767 = vunpack.c.h.b16 %v701
    %v768 = vunpack.c.l.b16 %v702
    %v769 = vunpack.c.h.b16 %v702
    %v770 = vunpack.c.l.b16 %v703
    %v771 = vunpack.c.h.b16 %v703
    %v772 = vunpack.c.l.b16 %v704
    %v773 = vunpack.c.h.b16 %v704
    %v774 = vunpack.c.l.b16 %v705
    %v775 = vunpack.c.h.b16 %v705
    %v776 = vunpack.c.l.b16 %v706
    %v777 = vunpack.c.h.b16 %v706
    %v778 = vunpack.c.l.b16 %v707
    %v779 = vunpack.c.h.b16 %v707
    %v780 = vunpack.c.l.b16 %v708
    %v781 = vunpack.c.h.b16 %v708
    %v782 = vunpack.c.l.b16 %v709
    %v783 = vunpack.c.h.b16 %v709
    %v784 = vunpack.c.l.b16 %v710
    %v785 = vunpack.c.h.b16 %v710
    %v786 = vunpack.c.l.b16 %v711
    %v787 = vunpack.c.h.b16 %v711
    %v788 = vunpack.c.l.b16 %v712
    %v789 = vunpack.c.h.b16 %v712
    %v790 = vunpack.c.l.b16 %v713
    %v791 = vunpack.c.h.b16 %v713
    %v792 = vunpack.c.l.b16 %v714
    %v793 = vunpack.c.h.b16 %v714
    %v794 = vunpack.c.l.b16 %v715
    %v795 = vunpack.c.h.b16 %v715
    %v796 = vunpack.c.l.b16 %v716
    %v797 = vunpack.c.h.b16 %v716
    %v798 = vunpack.c.l.b16 %v717
    %v799 = vunpack.c.h.b16 %v717
    %v800 = vunpack.c.l.b16 %v718
    %v801 = vunpack.c.h.b16 %v718
    %v802 = vunpack.c.l.b16 %v719
    %v803 = vunpack.c.h.b16 %v719
    %v804 = vunpack.c.l.b16 %v720
    %v805 = vunpack.c.h.b16 %v720
    %v806 = vunpack.c.l.b16 %v721
    %v807 = vunpack.c.h.b16 %v721
    %v808 = vunpack.c.l.b16 %v722
    %v809 = vunpack.c.h.b16 %v722
    %v810 = vunpack.c.l.b16 %v723
    %v811 = vunpack.c.h.b16 %v723
    %v812 = vunpack.c.l.b16 %v724
    %v813 = vunpack.c.h.b16 %v724
    %v814 = vunpack.c.l.b16 %v725
    %v815 = vunpack.c.h.b16 %v725
    %v816 = vunpack.c.l.b16 %v726
    %v817 = vunpack.c.h.b16 %v726
    %v818 = vunpack.c.l.b16 %v727
    %v819 = vunpack.c.h.b16 %v727
    %v820 = vunpack.c.l.b16 %v728
    %v821 = vunpack.c.h.b16 %v728
    %v822 = vunpack.c.l.b16 %v729
    %v823 = vunpack.c.h.b16 %v729
    %v824 = vunpack.c.l.b16 %v730
    %v825 = vunpack.c.h.b16 %v730
    %v826 = vunpack.c.l.b16 %v731
    %v827 = vunpack.c.h.b16 %v731
    %v828 = vpack.c.b16 %v766, %v764
    %v829 = vpack.c.b16 %v767, %v765
    %v830 = vpack.c.b16 %v770, %v768
    %v831 = vpack.c.b16 %v771, %v769
    %v832 = vpack.c.b16 %v774, %v772
    %v833 = vpack.c.b16 %v775, %v773
    %v834 = vpack.c.b16 %v778, %v776
    %v835 = vpack.c.b16 %v779, %v777
    %v836 = vpack.c.b16 %v782, %v780
    %v837 = vpack.c.b16 %v783, %v781
    %v838 = vpack.c.b16 %v786, %v784
    %v839 = vpack.c.b16 %v787, %v785
    %v840 = vpack.c.b16 %v790, %v788
    %v841 = vpack.c.b16 %v791, %v789
    %v842 = vpack.c.b16 %v794, %v792
    %v843 = vpack.c.b16 %v795, %v793
    %v844 = vpack.c.b16 %v798, %v796
    %v845 = vpack.c.b16 %v799, %v797
    %v846 = vpack.c.b16 %v802, %v800
    %v847 = vpack.c.b16 %v803, %v801
    %v848 = vpack.c.b16 %v806, %v804
    %v849 = vpack.c.b16 %v807, %v805
    %v850 = vpack.c.b16 %v810, %v808
    %v851 = vpack.c.b16 %v811, %v809
    %v852 = vpack.c.b16 %v814, %v812
    %v853 = vpack.c.b16 %v815, %v813
    %v854 = vpack.c.b16 %v818, %v816
    %v855 = vpack.c.b16 %v819, %v817
    %v856 = vpack.c.b16 %v822, %v820
    %v857 = vpack.c.b16 %v823, %v821
    %v858 = vpack.c.b16 %v826, %v824
    %v859 = vpack.c.b16 %v827, %v825
    %892 = vmatprep.subr.bf16.mxu0 %v829
    %893 = vmatpush1.bf16.msra.mxu0 %v828
    %894 = vmatprep.subr.bf16.mxu0 %v831
    %895 = vmatpush1.bf16.msra.mxu0 %v830
    %896 = vmatprep.subr.bf16.mxu0 %v833
    %897 = vmatpush1.bf16.msra.mxu0 %v832
    %898 = vmatprep.subr.bf16.mxu0 %v835
    %899 = vmatpush1.bf16.msra.mxu0 %v834
    %900 = vmatprep.subr.bf16.mxu0 %v837
    %901 = vmatpush1.bf16.msra.mxu0 %v836
    %902 = vmatprep.subr.bf16.mxu0 %v839
    %903 = vmatpush1.bf16.msra.mxu0 %v838
    %904 = vmatprep.subr.bf16.mxu0 %v841
    %905 = vmatpush1.bf16.msra.mxu0 %v840
    %906 = vmatprep.subr.bf16.mxu0 %v843
    %907 = vmatpush1.bf16.msra.mxu0 %v842
    %908 = vmatprep.subr.bf16.mxu0 %v845
    %909 = vmatpush1.bf16.msra.mxu0 %v844
    %910 = vmatprep.subr.bf16.mxu0 %v847
    %911 = vmatpush1.bf16.msra.mxu0 %v846
    %912 = vmatprep.subr.bf16.mxu0 %v849
    %913 = vmatpush1.bf16.msra.mxu0 %v848
    %914 = vmatprep.subr.bf16.mxu0 %v851
    %915 = vmatpush1.bf16.msra.mxu0 %v850
    %916 = vmatprep.subr.bf16.mxu0 %v853
    %917 = vmatpush1.bf16.msra.mxu0 %v852
    %918 = vmatprep.subr.bf16.mxu0 %v855
    %919 = vmatpush1.bf16.msra.mxu0 %v854
    %920 = vmatprep.subr.bf16.mxu0 %v857
    %921 = vmatpush1.bf16.msra.mxu0 %v856
    %922 = vmatprep.subr.bf16.mxu0 %v859
    %923 = vmatpush1.bf16.msra.mxu0 %v858
    %924 = vmatprep.mubr.bf16.mxu0 %v225
    %925 = vmatmul.mubr.bf16.gmra.mrb[0].mxu0 %v224
    %v926 = vpop.f32.mrb[0].mxu0
    %v927 = vadd.f32 0.0, %v926
    %v928 = vpop.f32.mrb[0].mxu0
    %v929 = vadd.f32 0.0, %v928
    %v930 = vpop.f32.mrb[0].mxu0
    %v931 = vadd.f32 0.0, %v930
    %v932 = vpop.f32.mrb[0].mxu0
    %v933 = vadd.f32 0.0, %v932
    %934 = vdwg.mxu0
    %v935 = vmul.f32 %v461, %v179
    %v936 = vmul.f32 %v463, %v179
    %v937 = vmul.f32 %v462, %v179
    %v938 = vmul.f32 %v464, %v179
    %939 = vrot.lane.b32.xlu0 %v461, 64
    %v940 = vpop.permute.xlu0 %939
    %941 = vrot.lane.b32.xlu0 %v463, 64
    %v942 = vpop.permute.xlu0 %941
    %943 = vrot.lane.b32.xlu0 %v462, 64
    %v944 = vpop.permute.xlu0 %943
    %945 = vrot.lane.b32.xlu0 %v464, 64
    %v946 = vpop.permute.xlu0 %945
    %v947 = vmul.f32 %v940, %v180
    %v948 = vmul.f32 %v942, %v180
    %v949 = vmul.f32 %v944, %v180
    %v950 = vmul.f32 %v946, %v180
    %v951 = vadd.f32 %v935, %v947
    %v952 = vadd.f32 %v936, %v948
    %v953 = vadd.f32 %v937, %v949
    %v954 = vadd.f32 %v938, %v950
    %v955 = vpack.c.bf16 %v951, %v951
    %v956 = vpack.c.bf16 %v952, %v952
    %v957 = vpack.c.bf16 %v953, %v953
    %v958 = vpack.c.bf16 %v954, %v954
    %v959 = vmul.f32 %v692, %v179
    %v960 = vmul.f32 %v696, %v179
    %v961 = vmul.f32 %v694, %v179
    %v962 = vmul.f32 %v698, %v179
    %963 = vrot.lane.b32.xlu0 %v692, 64
    %v964 = vpop.permute.xlu0 %963
    %965 = vrot.lane.b32.xlu0 %v696, 64
    %v966 = vpop.permute.xlu0 %965
    %967 = vrot.lane.b32.xlu0 %v694, 64
    %v968 = vpop.permute.xlu0 %967
    %969 = vrot.lane.b32.xlu0 %v698, 64
    %v970 = vpop.permute.xlu0 %969
    %v971 = vmul.f32 %v964, %v180
    %v972 = vmul.f32 %v966, %v180
    %v973 = vmul.f32 %v968, %v180
    %v974 = vmul.f32 %v970, %v180
    %v975 = vadd.f32 %v959, %v971
    %v976 = vadd.f32 %v960, %v972
    %v977 = vadd.f32 %v961, %v973
    %v978 = vadd.f32 %v962, %v974
    %v979 = vpack.c.bf16 %v975, %v975
    %v980 = vpack.c.bf16 %v976, %v976
    %v981 = vpack.c.bf16 %v977, %v977
    %v982 = vpack.c.bf16 %v978, %v978
    %v983 = vpack.c.bf16 %v927, %v927
    %v984 = vpack.c.bf16 %v931, %v931
    %v985 = vpack.c.bf16 %v929, %v929
    %v986 = vpack.c.bf16 %v933, %v933
    %987 = vmatprep.subr.bf16.mxu0 0
    %988 = vmatpush1.bf16.xpose.msra.mxu0 %v979
    %989 = vmatprep.subr.bf16.mxu0 0
    %990 = vmatpush1.bf16.xpose.msra.mxu0 0
    %991 = vmatprep.subr.bf16.mxu0 0
    %992 = vmatpush1.bf16.xpose.msra.mxu0 0
    %993 = vmatprep.subr.bf16.mxu0 0
    %994 = vmatpush1.bf16.xpose.msra.mxu0 0
    %995 = vmatprep.subr.bf16.mxu0 0
    %996 = vmatpush1.bf16.xpose.msra.mxu0 0
    %997 = vmatprep.subr.bf16.mxu0 0
    %998 = vmatpush1.bf16.xpose.msra.mxu0 0
    %999 = vmatprep.subr.bf16.mxu0 0
    %1000 = vmatpush1.bf16.xpose.msra.mxu0 0
    %1001 = vmatprep.subr.bf16.mxu0 0
    %1002 = vmatpush1.bf16.xpose.msra.mxu0 0
    %1003 = vmatprep.subr.bf16.mxu0 0
    %1004 = vmatpush1.bf16.xpose.msra.mxu0 0
    %1005 = vmatprep.subr.bf16.mxu0 0
    %1006 = vmatpush1.bf16.xpose.msra.mxu0 0
    %1007 = vmatprep.subr.bf16.mxu0 0
    %1008 = vmatpush1.bf16.xpose.msra.mxu0 0
    %1009 = vmatprep.subr.bf16.mxu0 0
    %1010 = vmatpush1.bf16.xpose.msra.mxu0 0
    %1011 = vmatprep.subr.bf16.mxu0 0
    %1012 = vmatpush1.bf16.xpose.msra.mxu0 0
    %1013 = vmatprep.subr.bf16.mxu0 0
    %1014 = vmatpush1.bf16.xpose.msra.mxu0 0
    %1015 = vmatprep.subr.bf16.mxu0 0
    %1016 = vmatpush1.bf16.xpose.msra.mxu0 0
    %1017 = vmatprep.subr.bf16.mxu0 0
    %1018 = vmatpush1.bf16.xpose.msra.mxu0 0
    %1019 = vmatprep.mubr.bf16.mxu0 0
    %1020 = vmatmul.mubr.bf16.gmra.mrb[0].mxu0 %v955
    %v1021 = vpop.f32.mrb[0].mxu0
    %v1022 = vadd.f32 %v186, %v1021
    %v1023 = vpop.f32.mrb[0].mxu0
    %v1024 = vpop.f32.mrb[0].mxu0
    %v1025 = vpop.f32.mrb[0].mxu0
    %1026 = vdwg.mxu0
    %1027 = vmatprep.subr.bf16.mxu0 0
    %1028 = vmatpush1.bf16.xpose.msra.mxu0 %v980
    %1029 = vmatprep.subr.bf16.mxu0 0
    %1030 = vmatpush1.bf16.xpose.msra.mxu0 0
    %1031 = vmatprep.subr.bf16.mxu0 0
    %1032 = vmatpush1.bf16.xpose.msra.mxu0 0
    %1033 = vmatprep.subr.bf16.mxu0 0
    %1034 = vmatpush1.bf16.xpose.msra.mxu0 0
    %1035 = vmatprep.subr.bf16.mxu0 0
    %1036 = vmatpush1.bf16.xpose.msra.mxu0 0
    %1037 = vmatprep.subr.bf16.mxu0 0
    %1038 = vmatpush1.bf16.xpose.msra.mxu0 0
    %1039 = vmatprep.subr.bf16.mxu0 0
    %1040 = vmatpush1.bf16.xpose.msra.mxu0 0
    %1041 = vmatprep.subr.bf16.mxu0 0
    %1042 = vmatpush1.bf16.xpose.msra.mxu0 0
    %1043 = vmatprep.subr.bf16.mxu0 0
    %1044 = vmatpush1.bf16.xpose.msra.mxu0 0
    %1045 = vmatprep.subr.bf16.mxu0 0
    %1046 = vmatpush1.bf16.xpose.msra.mxu0 0
    %1047 = vmatprep.subr.bf16.mxu0 0
    %1048 = vmatpush1.bf16.xpose.msra.mxu0 0
    %1049 = vmatprep.subr.bf16.mxu0 0
    %1050 = vmatpush1.bf16.xpose.msra.mxu0 0
    %1051 = vmatprep.subr.bf16.mxu0 0
    %1052 = vmatpush1.bf16.xpose.msra.mxu0 0
    %1053 = vmatprep.subr.bf16.mxu0 0
    %1054 = vmatpush1.bf16.xpose.msra.mxu0 0
    %1055 = vmatprep.subr.bf16.mxu0 0
    %1056 = vmatpush1.bf16.xpose.msra.mxu0 0
    %1057 = vmatprep.subr.bf16.mxu0 0
    %1058 = vmatpush1.bf16.xpose.msra.mxu0 0
    %1059 = vmatprep.mubr.bf16.mxu0 0
    %1060 = vmatmul.mubr.bf16.gmra.mrb[0].mxu0 %v956
    %v1061 = vpop.f32.mrb[0].mxu0
    %v1062 = vadd.f32 %v186, %v1061
    %v1063 = vpop.f32.mrb[0].mxu0
    %v1064 = vpop.f32.mrb[0].mxu0
    %v1065 = vpop.f32.mrb[0].mxu0
    %1066 = vdwg.mxu0
    %1067 = vmatprep.subr.bf16.mxu0 0
    %1068 = vmatpush1.bf16.xpose.msra.mxu0 %v981
    %1069 = vmatprep.subr.bf16.mxu0 0
    %1070 = vmatpush1.bf16.xpose.msra.mxu0 0
    %1071 = vmatprep.subr.bf16.mxu0 0
    %1072 = vmatpush1.bf16.xpose.msra.mxu0 0
    %1073 = vmatprep.subr.bf16.mxu0 0
    %1074 = vmatpush1.bf16.xpose.msra.mxu0 0
    %1075 = vmatprep.subr.bf16.mxu0 0
    %1076 = vmatpush1.bf16.xpose.msra.mxu0 0
    %1077 = vmatprep.subr.bf16.mxu0 0
    %1078 = vmatpush1.bf16.xpose.msra.mxu0 0
    %1079 = vmatprep.subr.bf16.mxu0 0
    %1080 = vmatpush1.bf16.xpose.msra.mxu0 0
    %1081 = vmatprep.subr.bf16.mxu0 0
    %1082 = vmatpush1.bf16.xpose.msra.mxu0 0
    %1083 = vmatprep.subr.bf16.mxu0 0
    %1084 = vmatpush1.bf16.xpose.msra.mxu0 0
    %1085 = vmatprep.subr.bf16.mxu0 0
    %1086 = vmatpush1.bf16.xpose.msra.mxu0 0
    %1087 = vmatprep.subr.bf16.mxu0 0
    %1088 = vmatpush1.bf16.xpose.msra.mxu0 0
    %1089 = vmatprep.subr.bf16.mxu0 0
    %1090 = vmatpush1.bf16.xpose.msra.mxu0 0
    %1091 = vmatprep.subr.bf16.mxu0 0
    %1092 = vmatpush1.bf16.xpose.msra.mxu0 0
    %1093 = vmatprep.subr.bf16.mxu0 0
    %1094 = vmatpush1.bf16.xpose.msra.mxu0 0
    %1095 = vmatprep.subr.bf16.mxu0 0
    %1096 = vmatpush1.bf16.xpose.msra.mxu0 0
    %1097 = vmatprep.subr.bf16.mxu0 0
    %1098 = vmatpush1.bf16.xpose.msra.mxu0 0
    %1099 = vmatprep.mubr.bf16.mxu0 0
    %1100 = vmatmul.mubr.bf16.gmra.mrb[0].mxu0 %v957
    %v1101 = vpop.f32.mrb[0].mxu0
    %v1102 = vadd.f32 %v186, %v1101
    %v1103 = vpop.f32.mrb[0].mxu0
    %v1104 = vpop.f32.mrb[0].mxu0
    %v1105 = vpop.f32.mrb[0].mxu0
    %1106 = vdwg.mxu0
    %1107 = vmatprep.subr.bf16.mxu0 0
    %1108 = vmatpush1.bf16.xpose.msra.mxu0 %v982
    %1109 = vmatprep.subr.bf16.mxu0 0
    %1110 = vmatpush1.bf16.xpose.msra.mxu0 0
    %1111 = vmatprep.subr.bf16.mxu0 0
    %1112 = vmatpush1.bf16.xpose.msra.mxu0 0
    %1113 = vmatprep.subr.bf16.mxu0 0
    %1114 = vmatpush1.bf16.xpose.msra.mxu0 0
    %1115 = vmatprep.subr.bf16.mxu0 0
    %1116 = vmatpush1.bf16.xpose.msra.mxu0 0
    %1117 = vmatprep.subr.bf16.mxu0 0
    %1118 = vmatpush1.bf16.xpose.msra.mxu0 0
    %1119 = vmatprep.subr.bf16.mxu0 0
    %1120 = vmatpush1.bf16.xpose.msra.mxu0 0
    %1121 = vmatprep.subr.bf16.mxu0 0
    %1122 = vmatpush1.bf16.xpose.msra.mxu0 0
    %1123 = vmatprep.subr.bf16.mxu0 0
    %1124 = vmatpush1.bf16.xpose.msra.mxu0 0
    %1125 = vmatprep.subr.bf16.mxu0 0
    %1126 = vmatpush1.bf16.xpose.msra.mxu0 0
    %1127 = vmatprep.subr.bf16.mxu0 0
    %1128 = vmatpush1.bf16.xpose.msra.mxu0 0
    %1129 = vmatprep.subr.bf16.mxu0 0
    %1130 = vmatpush1.bf16.xpose.msra.mxu0 0
    %1131 = vmatprep.subr.bf16.mxu0 0
    %1132 = vmatpush1.bf16.xpose.msra.mxu0 0
    %1133 = vmatprep.subr.bf16.mxu0 0
    %1134 = vmatpush1.bf16.xpose.msra.mxu0 0
    %1135 = vmatprep.subr.bf16.mxu0 0
    %1136 = vmatpush1.bf16.xpose.msra.mxu0 0
    %1137 = vmatprep.subr.bf16.mxu0 0
    %1138 = vmatpush1.bf16.xpose.msra.mxu0 0
    %1139 = vmatprep.mubr.bf16.mxu0 0
    %1140 = vmatmul.mubr.bf16.gmra.mrb[0].mxu0 %v958
    %v1141 = vpop.f32.mrb[0].mxu0
    %v1142 = vadd.f32 %v186, %v1141
    %v1143 = vpop.f32.mrb[0].mxu0
    %v1144 = vpop.f32.mrb[0].mxu0
    %v1145 = vpop.f32.mrb[0].mxu0
    %1146 = vdwg.mxu0
    %vm1147 = vcmask 64512
    %v1148 = vsel %vm1147, %v1022, -inf
    %1149 = vmax.xlane.f32.xlu0 %v1148
    %v1150 = vpop.xlane.xlu0 %1149
    %v1151 = vsel %vm1147, %v1062, -inf
    %1152 = vmax.xlane.f32.xlu0 %v1151
    %v1153 = vpop.xlane.xlu0 %1152
    %v1154 = vsel %vm1147, %v1102, -inf
    %1155 = vmax.xlane.f32.xlu0 %v1154
    %v1156 = vpop.xlane.xlu0 %1155
    %v1157 = vsel %vm1147, %v1142, -inf
    %1158 = vmax.xlane.f32.xlu0 %v1157
    %v1159 = vpop.xlane.xlu0 %1158
    %v1160 = vsub.f32 %v1022, %v1150
    %v1161 = vsub.f32 %v1062, %v1153
    %v1162 = vsub.f32 %v1102, %v1156
    %v1163 = vsub.f32 %v1142, %v1159
    %v1164 = vmul.f32 %v1160, 1.442695
    %v1165 = vpow.pop %v1164
    %v1166 = vmul.f32 %v1161, 1.442695
    %v1167 = vpow.pop %v1166
    %v1168 = vmul.f32 %v1162, 1.442695
    %v1169 = vpow.pop %v1168
    %v1170 = vmul.f32 %v1163, 1.442695
    %v1171 = vpow.pop %v1170
    %v1172 = vsel %vm1147, %v1165, 0.0
    %1173 = vadd.xlane.f32.xlu0 %v1172
    %v1174 = vpop.xlane.xlu0 %1173
    %v1175 = vsel %vm1147, %v1167, 0.0
    %1176 = vadd.xlane.f32.xlu0 %v1175
    %v1177 = vpop.xlane.xlu0 %1176
    %v1178 = vsel %vm1147, %v1169, 0.0
    %1179 = vadd.xlane.f32.xlu0 %v1178
    %v1180 = vpop.xlane.xlu0 %1179
    %v1181 = vsel %vm1147, %v1171, 0.0
    %1182 = vadd.xlane.f32.xlu0 %v1181
    %v1183 = vpop.xlane.xlu0 %1182
    %v1184 = vrcp.pop %v1174
    %v1185 = vrcp.pop %v1177
    %v1186 = vrcp.pop %v1180
    %v1187 = vrcp.pop %v1183
    %v1188 = vmul.f32 %v1165, %v1184
    %v1189 = vmul.f32 %v1167, %v1185
    %v1190 = vmul.f32 %v1169, %v1186
    %v1191 = vmul.f32 %v1171, %v1187
    %v1192 = vpack.c.bf16 %v1188, %v1188
    %v1193 = vpack.c.bf16 %v1189, %v1189
    %v1194 = vpack.c.bf16 %v1190, %v1190
    %v1195 = vpack.c.bf16 %v1191, %v1191
    %v1197 = vsel %vm1147, %v1192, 0
    %vm1199 = vcmask 1043456
    %v1201 = vsel %vm1199, %v983, 0
    %1203 = vmatprep.subr.bf16.mxu0 0
    %1204 = vmatpush1.bf16.msra.mxu0 %v1201
    %1205 = vmatprep.subr.bf16.mxu0 0
    %1206 = vmatpush1.bf16.msra.mxu0 0
    %1207 = vmatprep.subr.bf16.mxu0 0
    %1208 = vmatpush1.bf16.msra.mxu0 0
    %1209 = vmatprep.subr.bf16.mxu0 0
    %1210 = vmatpush1.bf16.msra.mxu0 0
    %1211 = vmatprep.subr.bf16.mxu0 0
    %1212 = vmatpush1.bf16.msra.mxu0 0
    %1213 = vmatprep.subr.bf16.mxu0 0
    %1214 = vmatpush1.bf16.msra.mxu0 0
    %1215 = vmatprep.subr.bf16.mxu0 0
    %1216 = vmatpush1.bf16.msra.mxu0 0
    %1217 = vmatprep.subr.bf16.mxu0 0
    %1218 = vmatpush1.bf16.msra.mxu0 0
    %1219 = vmatprep.subr.bf16.mxu0 0
    %1220 = vmatpush1.bf16.msra.mxu0 0
    %1221 = vmatprep.subr.bf16.mxu0 0
    %1222 = vmatpush1.bf16.msra.mxu0 0
    %1223 = vmatprep.subr.bf16.mxu0 0
    %1224 = vmatpush1.bf16.msra.mxu0 0
    %1225 = vmatprep.subr.bf16.mxu0 0
    %1226 = vmatpush1.bf16.msra.mxu0 0
    %1227 = vmatprep.subr.bf16.mxu0 0
    %1228 = vmatpush1.bf16.msra.mxu0 0
    %1229 = vmatprep.subr.bf16.mxu0 0
    %1230 = vmatpush1.bf16.msra.mxu0 0
    %1231 = vmatprep.subr.bf16.mxu0 0
    %1232 = vmatpush1.bf16.msra.mxu0 0
    %1233 = vmatprep.subr.bf16.mxu0 0
    %1234 = vmatpush1.bf16.msra.mxu0 0
    %1235 = vmatprep.mubr.bf16.mxu0 0
    %1236 = vmatmul.mubr.bf16.gmra.mrb[0].mxu0 %v1197
    %v1237 = vpop.f32.mrb[0].mxu0
    %v1238 = vadd.f32 0.0, %v1237
    %v1239 = vpop.f32.mrb[0].mxu0
    %v1240 = vpop.f32.mrb[0].mxu0
    %v1241 = vpop.f32.mrb[0].mxu0
    %1242 = vdwg.mxu0
    %v1244 = vsel %vm1147, %v1193, 0
    %v1247 = vsel %vm1199, %v984, 0
    %1249 = vmatprep.subr.bf16.mxu0 0
    %1250 = vmatpush1.bf16.msra.mxu0 %v1247
    %1251 = vmatprep.subr.bf16.mxu0 0
    %1252 = vmatpush1.bf16.msra.mxu0 0
    %1253 = vmatprep.subr.bf16.mxu0 0
    %1254 = vmatpush1.bf16.msra.mxu0 0
    %1255 = vmatprep.subr.bf16.mxu0 0
    %1256 = vmatpush1.bf16.msra.mxu0 0
    %1257 = vmatprep.subr.bf16.mxu0 0
    %1258 = vmatpush1.bf16.msra.mxu0 0
    %1259 = vmatprep.subr.bf16.mxu0 0
    %1260 = vmatpush1.bf16.msra.mxu0 0
    %1261 = vmatprep.subr.bf16.mxu0 0
    %1262 = vmatpush1.bf16.msra.mxu0 0
    %1263 = vmatprep.subr.bf16.mxu0 0
    %1264 = vmatpush1.bf16.msra.mxu0 0
    %1265 = vmatprep.subr.bf16.mxu0 0
    %1266 = vmatpush1.bf16.msra.mxu0 0
    %1267 = vmatprep.subr.bf16.mxu0 0
    %1268 = vmatpush1.bf16.msra.mxu0 0
    %1269 = vmatprep.subr.bf16.mxu0 0
    %1270 = vmatpush1.bf16.msra.mxu0 0
    %1271 = vmatprep.subr.bf16.mxu0 0
    %1272 = vmatpush1.bf16.msra.mxu0 0
    %1273 = vmatprep.subr.bf16.mxu0 0
    %1274 = vmatpush1.bf16.msra.mxu0 0
    %1275 = vmatprep.subr.bf16.mxu0 0
    %1276 = vmatpush1.bf16.msra.mxu0 0
    %1277 = vmatprep.subr.bf16.mxu0 0
    %1278 = vmatpush1.bf16.msra.mxu0 0
    %1279 = vmatprep.subr.bf16.mxu0 0
    %1280 = vmatpush1.bf16.msra.mxu0 0
    %1281 = vmatprep.mubr.bf16.mxu0 0
    %1282 = vmatmul.mubr.bf16.gmra.mrb[0].mxu0 %v1244
    %v1283 = vpop.f32.mrb[0].mxu0
    %v1284 = vadd.f32 0.0, %v1283
    %v1285 = vpop.f32.mrb[0].mxu0
    %v1286 = vpop.f32.mrb[0].mxu0
    %v1287 = vpop.f32.mrb[0].mxu0
    %1288 = vdwg.mxu0
    %v1290 = vsel %vm1147, %v1194, 0
    %v1293 = vsel %vm1199, %v985, 0
    %1295 = vmatprep.subr.bf16.mxu0 0
    %1296 = vmatpush1.bf16.msra.mxu0 %v1293
    %1297 = vmatprep.subr.bf16.mxu0 0
    %1298 = vmatpush1.bf16.msra.mxu0 0
    %1299 = vmatprep.subr.bf16.mxu0 0
    %1300 = vmatpush1.bf16.msra.mxu0 0
    %1301 = vmatprep.subr.bf16.mxu0 0
    %1302 = vmatpush1.bf16.msra.mxu0 0
    %1303 = vmatprep.subr.bf16.mxu0 0
    %1304 = vmatpush1.bf16.msra.mxu0 0
    %1305 = vmatprep.subr.bf16.mxu0 0
    %1306 = vmatpush1.bf16.msra.mxu0 0
    %1307 = vmatprep.subr.bf16.mxu0 0
    %1308 = vmatpush1.bf16.msra.mxu0 0
    %1309 = vmatprep.subr.bf16.mxu0 0
    %1310 = vmatpush1.bf16.msra.mxu0 0
    %1311 = vmatprep.subr.bf16.mxu0 0
    %1312 = vmatpush1.bf16.msra.mxu0 0
    %1313 = vmatprep.subr.bf16.mxu0 0
    %1314 = vmatpush1.bf16.msra.mxu0 0
    %1315 = vmatprep.subr.bf16.mxu0 0
    %1316 = vmatpush1.bf16.msra.mxu0 0
    %1317 = vmatprep.subr.bf16.mxu0 0
    %1318 = vmatpush1.bf16.msra.mxu0 0
    %1319 = vmatprep.subr.bf16.mxu0 0
    %1320 = vmatpush1.bf16.msra.mxu0 0
    %1321 = vmatprep.subr.bf16.mxu0 0
    %1322 = vmatpush1.bf16.msra.mxu0 0
    %1323 = vmatprep.subr.bf16.mxu0 0
    %1324 = vmatpush1.bf16.msra.mxu0 0
    %1325 = vmatprep.subr.bf16.mxu0 0
    %1326 = vmatpush1.bf16.msra.mxu0 0
    %1327 = vmatprep.mubr.bf16.mxu0 0
    %1328 = vmatmul.mubr.bf16.gmra.mrb[0].mxu0 %v1290
    %v1329 = vpop.f32.mrb[0].mxu0
    %v1330 = vadd.f32 0.0, %v1329
    %v1331 = vpop.f32.mrb[0].mxu0
    %v1332 = vpop.f32.mrb[0].mxu0
    %v1333 = vpop.f32.mrb[0].mxu0
    %1334 = vdwg.mxu0
    %v1336 = vsel %vm1147, %v1195, 0
    %v1339 = vsel %vm1199, %v986, 0
    %1341 = vmatprep.subr.bf16.mxu0 0
    %1342 = vmatpush1.bf16.msra.mxu0 %v1339
    %1343 = vmatprep.subr.bf16.mxu0 0
    %1344 = vmatpush1.bf16.msra.mxu0 0
    %1345 = vmatprep.subr.bf16.mxu0 0
    %1346 = vmatpush1.bf16.msra.mxu0 0
    %1347 = vmatprep.subr.bf16.mxu0 0
    %1348 = vmatpush1.bf16.msra.mxu0 0
    %1349 = vmatprep.subr.bf16.mxu0 0
    %1350 = vmatpush1.bf16.msra.mxu0 0
    %1351 = vmatprep.subr.bf16.mxu0 0
    %1352 = vmatpush1.bf16.msra.mxu0 0
    %1353 = vmatprep.subr.bf16.mxu0 0
    %1354 = vmatpush1.bf16.msra.mxu0 0
    %1355 = vmatprep.subr.bf16.mxu0 0
    %1356 = vmatpush1.bf16.msra.mxu0 0
    %1357 = vmatprep.subr.bf16.mxu0 0
    %1358 = vmatpush1.bf16.msra.mxu0 0
    %1359 = vmatprep.subr.bf16.mxu0 0
    %1360 = vmatpush1.bf16.msra.mxu0 0
    %1361 = vmatprep.subr.bf16.mxu0 0
    %1362 = vmatpush1.bf16.msra.mxu0 0
    %1363 = vmatprep.subr.bf16.mxu0 0
    %1364 = vmatpush1.bf16.msra.mxu0 0
    %1365 = vmatprep.subr.bf16.mxu0 0
    %1366 = vmatpush1.bf16.msra.mxu0 0
    %1367 = vmatprep.subr.bf16.mxu0 0
    %1368 = vmatpush1.bf16.msra.mxu0 0
    %1369 = vmatprep.subr.bf16.mxu0 0
    %1370 = vmatpush1.bf16.msra.mxu0 0
    %1371 = vmatprep.subr.bf16.mxu0 0
    %1372 = vmatpush1.bf16.msra.mxu0 0
    %1373 = vmatprep.mubr.bf16.mxu0 0
    %1374 = vmatmul.mubr.bf16.gmra.mrb[0].mxu0 %v1336
    %v1375 = vpop.f32.mrb[0].mxu0
    %v1376 = vadd.f32 0.0, %v1375
    %v1377 = vpop.f32.mrb[0].mxu0
    %v1378 = vpop.f32.mrb[0].mxu0
    %v1379 = vpop.f32.mrb[0].mxu0
    %1380 = vdwg.mxu0
    %v1381 = vpack.c.bf16 %v1284, %v1238
    %v1382 = vpack.c.bf16 %v1376, %v1330
    %v1383 = vld [vmem:[#allocation13] sm:$0xff]
    %v1384 = vld [vmem:[#allocation13 + $0x8] sm:$0xff]
    %v1385 = vld [vmem:[#allocation13 + $0x10] sm:$0xff]
    %v1386 = vld [vmem:[#allocation13 + $0x18] sm:$0xff]
    %v1387 = vld [vmem:[#allocation13 + $0x20] sm:$0xff]
    %v1388 = vld [vmem:[#allocation13 + $0x28] sm:$0xff]
    %v1389 = vld [vmem:[#allocation13 + $0x30] sm:$0xff]
    %v1390 = vld [vmem:[#allocation13 + $0x38] sm:$0xff]
    %v1391 = vld [vmem:[#allocation13 + $0x40] sm:$0xff]
    %v1392 = vld [vmem:[#allocation13 + $0x48] sm:$0xff]
    %v1393 = vld [vmem:[#allocation13 + $0x50] sm:$0xff]
    %v1394 = vld [vmem:[#allocation13 + $0x58] sm:$0xff]
    %v1395 = vld [vmem:[#allocation13 + $0x60] sm:$0xff]
    %v1396 = vld [vmem:[#allocation13 + $0x68] sm:$0xff]
    %v1397 = vld [vmem:[#allocation13 + $0x70] sm:$0xff]
    %v1398 = vld [vmem:[#allocation13 + $0x78] sm:$0xff]
    %v1399 = vld [vmem:[#allocation13 + $0x80] sm:$0xff]
    %v1400 = vld [vmem:[#allocation13 + $0x88] sm:$0xff]
    %v1401 = vld [vmem:[#allocation13 + $0x90] sm:$0xff]
    %v1402 = vld [vmem:[#allocation13 + $0x98] sm:$0xff]
    %v1403 = vld [vmem:[#allocation13 + $0xa0] sm:$0xff]
    %v1404 = vld [vmem:[#allocation13 + $0xa8] sm:$0xff]
    %v1405 = vld [vmem:[#allocation13 + $0xb0] sm:$0xff]
    %v1406 = vld [vmem:[#allocation13 + $0xb8] sm:$0xff]
    %v1407 = vld [vmem:[#allocation13 + $0xc0] sm:$0xff]
    %v1408 = vld [vmem:[#allocation13 + $0xc8] sm:$0xff]
    %v1409 = vld [vmem:[#allocation13 + $0xd0] sm:$0xff]
    %v1410 = vld [vmem:[#allocation13 + $0xd8] sm:$0xff]
    %v1411 = vld [vmem:[#allocation13 + $0xe0] sm:$0xff]
    %v1412 = vld [vmem:[#allocation13 + $0xe8] sm:$0xff]
    %v1413 = vld [vmem:[#allocation13 + $0xf0] sm:$0xff]
    %v1414 = vld [vmem:[#allocation13 + $0xf8] sm:$0xff]
    %v1431 = vunpack.c.l.b16 %v1383
    %v1432 = vunpack.c.h.b16 %v1383
    %v1433 = vunpack.c.l.b16 %v1384
    %v1434 = vunpack.c.h.b16 %v1384
    %v1435 = vunpack.c.l.b16 %v1385
    %v1436 = vunpack.c.h.b16 %v1385
    %v1437 = vunpack.c.l.b16 %v1386
    %v1438 = vunpack.c.h.b16 %v1386
    %v1439 = vunpack.c.l.b16 %v1387
    %v1440 = vunpack.c.h.b16 %v1387
    %v1441 = vunpack.c.l.b16 %v1388
    %v1442 = vunpack.c.h.b16 %v1388
    %v1443 = vunpack.c.l.b16 %v1389
    %v1444 = vunpack.c.h.b16 %v1389
    %v1445 = vunpack.c.l.b16 %v1390
    %v1446 = vunpack.c.h.b16 %v1390
    %v1447 = vunpack.c.l.b16 %v1391
    %v1448 = vunpack.c.h.b16 %v1391
    %v1449 = vunpack.c.l.b16 %v1392
    %v1450 = vunpack.c.h.b16 %v1392
    %v1451 = vunpack.c.l.b16 %v1393
    %v1452 = vunpack.c.h.b16 %v1393
    %v1453 = vunpack.c.l.b16 %v1394
    %v1454 = vunpack.c.h.b16 %v1394
    %v1455 = vunpack.c.l.b16 %v1395
    %v1456 = vunpack.c.h.b16 %v1395
    %v1457 = vunpack.c.l.b16 %v1396
    %v1458 = vunpack.c.h.b16 %v1396
    %v1459 = vunpack.c.l.b16 %v1397
    %v1460 = vunpack.c.h.b16 %v1397
    %v1461 = vunpack.c.l.b16 %v1398
    %v1462 = vunpack.c.h.b16 %v1398
    %v1463 = vpack.c.b16 %v1433, %v1431
    %v1464 = vpack.c.b16 %v1434, %v1432
    %v1465 = vpack.c.b16 %v1437, %v1435
    %v1466 = vpack.c.b16 %v1438, %v1436
    %v1467 = vpack.c.b16 %v1441, %v1439
    %v1468 = vpack.c.b16 %v1442, %v1440
    %v1469 = vpack.c.b16 %v1445, %v1443
    %v1470 = vpack.c.b16 %v1446, %v1444
    %v1471 = vpack.c.b16 %v1449, %v1447
    %v1472 = vpack.c.b16 %v1450, %v1448
    %v1473 = vpack.c.b16 %v1453, %v1451
    %v1474 = vpack.c.b16 %v1454, %v1452
    %v1475 = vpack.c.b16 %v1457, %v1455
    %v1476 = vpack.c.b16 %v1458, %v1456
    %v1477 = vpack.c.b16 %v1461, %v1459
    %v1478 = vpack.c.b16 %v1462, %v1460
    %1495 = vmatprep.subr.bf16.mxu0 %v1464
    %1496 = vmatpush1.bf16.msra.mxu0 %v1463
    %1497 = vmatprep.subr.bf16.mxu0 %v1466
    %1498 = vmatpush1.bf16.msra.mxu0 %v1465
    %1499 = vmatprep.subr.bf16.mxu0 %v1468
    %1500 = vmatpush1.bf16.msra.mxu0 %v1467
    %1501 = vmatprep.subr.bf16.mxu0 %v1470
    %1502 = vmatpush1.bf16.msra.mxu0 %v1469
    %1503 = vmatprep.subr.bf16.mxu0 %v1472
    %1504 = vmatpush1.bf16.msra.mxu0 %v1471
    %1505 = vmatprep.subr.bf16.mxu0 %v1474
    %1506 = vmatpush1.bf16.msra.mxu0 %v1473
    %1507 = vmatprep.subr.bf16.mxu0 %v1476
    %1508 = vmatpush1.bf16.msra.mxu0 %v1475
    %1509 = vmatprep.subr.bf16.mxu0 %v1478
    %1510 = vmatpush1.bf16.msra.mxu0 %v1477
    %1511 = vmatprep.subr.bf16.mxu0 0
    %1512 = vmatpush1.bf16.msra.mxu0 0
    %1513 = vmatprep.subr.bf16.mxu0 0
    %1514 = vmatpush1.bf16.msra.mxu0 0
    %1515 = vmatprep.subr.bf16.mxu0 0
    %1516 = vmatpush1.bf16.msra.mxu0 0
    %1517 = vmatprep.subr.bf16.mxu0 0
    %1518 = vmatpush1.bf16.msra.mxu0 0
    %1519 = vmatprep.subr.bf16.mxu0 0
    %1520 = vmatpush1.bf16.msra.mxu0 0
    %1521 = vmatprep.subr.bf16.mxu0 0
    %1522 = vmatpush1.bf16.msra.mxu0 0
    %1523 = vmatprep.subr.bf16.mxu0 0
    %1524 = vmatpush1.bf16.msra.mxu0 0
    %1525 = vmatprep.subr.bf16.mxu0 0
    %1526 = vmatpush1.bf16.msra.mxu0 0
    %1527 = vmatprep.mubr.bf16.mxu0 0
    %1528 = vmatmul.mubr.bf16.gmra.mrb[0].mxu0 %v1381
    %v1529 = vpop.f32.mrb[0].mxu0
    %v1530 = vadd.f32 0.0, %v1529
    %v1531 = vpop.f32.mrb[0].mxu0
    %v1532 = vadd.f32 0.0, %v1531
    %v1533 = vpop.f32.mrb[0].mxu0
    %v1534 = vadd.f32 0.0, %v1533
    %v1535 = vpop.f32.mrb[0].mxu0
    %v1536 = vadd.f32 0.0, %v1535
    %1537 = vdwg.mxu0
    %v1554 = vunpack.c.l.b16 %v1399
    %v1555 = vunpack.c.h.b16 %v1399
    %v1556 = vunpack.c.l.b16 %v1400
    %v1557 = vunpack.c.h.b16 %v1400
    %v1558 = vunpack.c.l.b16 %v1401
    %v1559 = vunpack.c.h.b16 %v1401
    %v1560 = vunpack.c.l.b16 %v1402
    %v1561 = vunpack.c.h.b16 %v1402
    %v1562 = vunpack.c.l.b16 %v1403
    %v1563 = vunpack.c.h.b16 %v1403
    %v1564 = vunpack.c.l.b16 %v1404
    %v1565 = vunpack.c.h.b16 %v1404
    %v1566 = vunpack.c.l.b16 %v1405
    %v1567 = vunpack.c.h.b16 %v1405
    %v1568 = vunpack.c.l.b16 %v1406
    %v1569 = vunpack.c.h.b16 %v1406
    %v1570 = vunpack.c.l.b16 %v1407
    %v1571 = vunpack.c.h.b16 %v1407
    %v1572 = vunpack.c.l.b16 %v1408
    %v1573 = vunpack.c.h.b16 %v1408
    %v1574 = vunpack.c.l.b16 %v1409
    %v1575 = vunpack.c.h.b16 %v1409
    %v1576 = vunpack.c.l.b16 %v1410
    %v1577 = vunpack.c.h.b16 %v1410
    %v1578 = vunpack.c.l.b16 %v1411
    %v1579 = vunpack.c.h.b16 %v1411
    %v1580 = vunpack.c.l.b16 %v1412
    %v1581 = vunpack.c.h.b16 %v1412
    %v1582 = vunpack.c.l.b16 %v1413
    %v1583 = vunpack.c.h.b16 %v1413
    %v1584 = vunpack.c.l.b16 %v1414
    %v1585 = vunpack.c.h.b16 %v1414
    %v1586 = vpack.c.b16 %v1556, %v1554
    %v1587 = vpack.c.b16 %v1557, %v1555
    %v1588 = vpack.c.b16 %v1560, %v1558
    %v1589 = vpack.c.b16 %v1561, %v1559
    %v1590 = vpack.c.b16 %v1564, %v1562
    %v1591 = vpack.c.b16 %v1565, %v1563
    %v1592 = vpack.c.b16 %v1568, %v1566
    %v1593 = vpack.c.b16 %v1569, %v1567
    %v1594 = vpack.c.b16 %v1572, %v1570
    %v1595 = vpack.c.b16 %v1573, %v1571
    %v1596 = vpack.c.b16 %v1576, %v1574
    %v1597 = vpack.c.b16 %v1577, %v1575
    %v1598 = vpack.c.b16 %v1580, %v1578
    %v1599 = vpack.c.b16 %v1581, %v1579
    %v1600 = vpack.c.b16 %v1584, %v1582
    %v1601 = vpack.c.b16 %v1585, %v1583
    %1618 = vmatprep.subr.bf16.mxu0 %v1587
    %1619 = vmatpush1.bf16.msra.mxu0 %v1586
    %1620 = vmatprep.subr.bf16.mxu0 %v1589
    %1621 = vmatpush1.bf16.msra.mxu0 %v1588
    %1622 = vmatprep.subr.bf16.mxu0 %v1591
    %1623 = vmatpush1.bf16.msra.mxu0 %v1590
    %1624 = vmatprep.subr.bf16.mxu0 %v1593
    %1625 = vmatpush1.bf16.msra.mxu0 %v1592
    %1626 = vmatprep.subr.bf16.mxu0 %v1595
    %1627 = vmatpush1.bf16.msra.mxu0 %v1594
    %1628 = vmatprep.subr.bf16.mxu0 %v1597
    %1629 = vmatpush1.bf16.msra.mxu0 %v1596
    %1630 = vmatprep.subr.bf16.mxu0 %v1599
    %1631 = vmatpush1.bf16.msra.mxu0 %v1598
    %1632 = vmatprep.subr.bf16.mxu0 %v1601
    %1633 = vmatpush1.bf16.msra.mxu0 %v1600
    %1634 = vmatprep.subr.bf16.mxu0 0
    %1635 = vmatpush1.bf16.msra.mxu0 0
    %1636 = vmatprep.subr.bf16.mxu0 0
    %1637 = vmatpush1.bf16.msra.mxu0 0
    %1638 = vmatprep.subr.bf16.mxu0 0
    %1639 = vmatpush1.bf16.msra.mxu0 0
    %1640 = vmatprep.subr.bf16.mxu0 0
    %1641 = vmatpush1.bf16.msra.mxu0 0
    %1642 = vmatprep.subr.bf16.mxu0 0
    %1643 = vmatpush1.bf16.msra.mxu0 0
    %1644 = vmatprep.subr.bf16.mxu0 0
    %1645 = vmatpush1.bf16.msra.mxu0 0
    %1646 = vmatprep.subr.bf16.mxu0 0
    %1647 = vmatpush1.bf16.msra.mxu0 0
    %1648 = vmatprep.subr.bf16.mxu0 0
    %1649 = vmatpush1.bf16.msra.mxu0 0
    %1650 = vmatprep.mubr.bf16.mxu0 0
    %1651 = vmatmul.mubr.bf16.gmra.mrb[0].mxu0 %v1382
    %v1652 = vpop.f32.mrb[0].mxu0
    %v1653 = vadd.f32 0.0, %v1652
    %v1654 = vpop.f32.mrb[0].mxu0
    %v1655 = vadd.f32 0.0, %v1654
    %v1656 = vpop.f32.mrb[0].mxu0
    %v1657 = vadd.f32 0.0, %v1656
    %v1658 = vpop.f32.mrb[0].mxu0
    %v1659 = vadd.f32 0.0, %v1658
    %1660 = vdwg.mxu0
    %v1661 = vadd.f32 %v1530, %v1653
    %v1662 = vadd.f32 %v1532, %v1655
    %v1663 = vadd.f32 %v1534, %v1657
    %v1664 = vadd.f32 %v1536, %v1659
    %v1665 = vadd.f32 %v175, %v1661
    %v1666 = vadd.f32 %v176, %v1662
    %v1667 = vadd.f32 %v177, %v1663
    %v1668 = vadd.f32 %v178, %v1664
    %v1669 = vld [vmem:[%s11] sm:$0x3]
    %v1670 = vmul.f32 %v1665, %v1665
    %v1671 = vmul.f32 %v1666, %v1666
    %v1672 = vmul.f32 %v1667, %v1667
    %v1673 = vmul.f32 %v1668, %v1668
    %v1674 = vadd.f32 %v1670, %v1671
    %1675 = vadd.xlane.f32.xlu0 %v1674
    %v1676 = vpop.xlane.xlu0 %1675
    %v1677 = vadd.f32 %v1672, %v1673
    %1678 = vadd.xlane.f32.xlu0 %v1677
    %v1679 = vpop.xlane.xlu0 %1678
    %v1680 = vmul.f32 %v1676, %v198
    %v1681 = vmul.f32 %v1679, %v198
    %v1682 = vadd.f32 %v1680, 1e-05
    %v1683 = vadd.f32 %v1681, 1e-05
    %v1684 = vrsqrt.pop %v1682
    %v1685 = vrsqrt.pop %v1683
    %v1686 = vmul.f32 %v1665, %v1684
    %v1687 = vmul.f32 %v1666, %v1684
    %v1688 = vmul.f32 %v1667, %v1685
    %v1689 = vmul.f32 %v1668, %v1685
    %v1691 = vlaneseq
    %v1692 = vshrl.u32 %v1691, 7
    %v1693 = vsub.s32 0, %v1692
    %v1694 = vrot.slane %v1669, %v1693
    %v1695 = vlaneseq
    %v1696 = vshrl.u32 %v1695, 7
    %v1697 = vsub.s32 1, %v1696
    %v1698 = vrot.slane %v1669, %v1697
    %v1701 = vmul.f32 %v1686, %v1694
    %v1702 = vmul.f32 %v1687, %v1698
    %v1703 = vmul.f32 %v1688, %v1694
    %v1704 = vmul.f32 %v1689, %v1698
    %v1705 = vpack.c.bf16 %v1703, %v1701
    %v1706 = vpack.c.bf16 %v1704, %v1702
    %v1707 = vld [vmem:[#allocation14] sm:$0xff]
    %v1708 = vld [vmem:[#allocation14 + $0x8] sm:$0xff]
    %v1709 = vld [vmem:[#allocation14 + $0x10] sm:$0xff]
    %v1710 = vld [vmem:[#allocation14 + $0x18] sm:$0xff]
    %v1711 = vld [vmem:[#allocation14 + $0x20] sm:$0xff]
    %v1712 = vld [vmem:[#allocation14 + $0x28] sm:$0xff]
    %v1713 = vld [vmem:[#allocation14 + $0x30] sm:$0xff]
    %v1714 = vld [vmem:[#allocation14 + $0x38] sm:$0xff]
    %v1715 = vld [vmem:[#allocation14 + $0x40] sm:$0xff]
    %v1716 = vld [vmem:[#allocation14 + $0x48] sm:$0xff]
    %v1717 = vld [vmem:[#allocation14 + $0x50] sm:$0xff]
    %v1718 = vld [vmem:[#allocation14 + $0x58] sm:$0xff]
    %v1719 = vld [vmem:[#allocation14 + $0x60] sm:$0xff]
    %v1720 = vld [vmem:[#allocation14 + $0x68] sm:$0xff]
    %v1721 = vld [vmem:[#allocation14 + $0x70] sm:$0xff]
    %v1722 = vld [vmem:[#allocation14 + $0x78] sm:$0xff]
    %v1723 = vld [vmem:[#allocation14 + $0x80] sm:$0xff]
    %v1724 = vld [vmem:[#allocation14 + $0x88] sm:$0xff]
    %v1725 = vld [vmem:[#allocation14 + $0x90] sm:$0xff]
    %v1726 = vld [vmem:[#allocation14 + $0x98] sm:$0xff]
    %v1727 = vld [vmem:[#allocation14 + $0xa0] sm:$0xff]
    %v1728 = vld [vmem:[#allocation14 + $0xa8] sm:$0xff]
    %v1729 = vld [vmem:[#allocation14 + $0xb0] sm:$0xff]
    %v1730 = vld [vmem:[#allocation14 + $0xb8] sm:$0xff]
    %v1731 = vld [vmem:[#allocation14 + $0xc0] sm:$0xff]
    %v1732 = vld [vmem:[#allocation14 + $0xc8] sm:$0xff]
    %v1733 = vld [vmem:[#allocation14 + $0xd0] sm:$0xff]
    %v1734 = vld [vmem:[#allocation14 + $0xd8] sm:$0xff]
    %v1735 = vld [vmem:[#allocation14 + $0xe0] sm:$0xff]
    %v1736 = vld [vmem:[#allocation14 + $0xe8] sm:$0xff]
    %v1737 = vld [vmem:[#allocation14 + $0xf0] sm:$0xff]
    %v1738 = vld [vmem:[#allocation14 + $0xf8] sm:$0xff]
    %v1739 = vld [vmem:[#allocation14 + $0x100] sm:$0xff]
    %v1740 = vld [vmem:[#allocation14 + $0x108] sm:$0xff]
    %v1741 = vld [vmem:[#allocation14 + $0x110] sm:$0xff]
    %v1742 = vld [vmem:[#allocation14 + $0x118] sm:$0xff]
    %v1743 = vld [vmem:[#allocation14 + $0x120] sm:$0xff]
    %v1744 = vld [vmem:[#allocation14 + $0x128] sm:$0xff]
    %v1745 = vld [vmem:[#allocation14 + $0x130] sm:$0xff]
    %v1746 = vld [vmem:[#allocation14 + $0x138] sm:$0xff]
    %v1747 = vld [vmem:[#allocation14 + $0x140] sm:$0xff]
    %v1748 = vld [vmem:[#allocation14 + $0x148] sm:$0xff]
    %v1749 = vld [vmem:[#allocation14 + $0x150] sm:$0xff]
    %v1750 = vld [vmem:[#allocation14 + $0x158] sm:$0xff]
    %v1751 = vld [vmem:[#allocation14 + $0x160] sm:$0xff]
    %v1752 = vld [vmem:[#allocation14 + $0x168] sm:$0xff]
    %v1753 = vld [vmem:[#allocation14 + $0x170] sm:$0xff]
    %v1754 = vld [vmem:[#allocation14 + $0x178] sm:$0xff]
    %v1755 = vld [vmem:[#allocation14 + $0x180] sm:$0xff]
    %v1756 = vld [vmem:[#allocation14 + $0x188] sm:$0xff]
    %v1757 = vld [vmem:[#allocation14 + $0x190] sm:$0xff]
    %v1758 = vld [vmem:[#allocation14 + $0x198] sm:$0xff]
    %v1759 = vld [vmem:[#allocation14 + $0x1a0] sm:$0xff]
    %v1760 = vld [vmem:[#allocation14 + $0x1a8] sm:$0xff]
    %v1761 = vld [vmem:[#allocation14 + $0x1b0] sm:$0xff]
    %v1762 = vld [vmem:[#allocation14 + $0x1b8] sm:$0xff]
    %v1763 = vld [vmem:[#allocation14 + $0x1c0] sm:$0xff]
    %v1764 = vld [vmem:[#allocation14 + $0x1c8] sm:$0xff]
    %v1765 = vld [vmem:[#allocation14 + $0x1d0] sm:$0xff]
    %v1766 = vld [vmem:[#allocation14 + $0x1d8] sm:$0xff]
    %v1767 = vld [vmem:[#allocation14 + $0x1e0] sm:$0xff]
    %v1768 = vld [vmem:[#allocation14 + $0x1e8] sm:$0xff]
    %v1769 = vld [vmem:[#allocation14 + $0x1f0] sm:$0xff]
    %v1770 = vld [vmem:[#allocation14 + $0x1f8] sm:$0xff]
    %v1771 = vld [vmem:[#allocation14 + $0x200] sm:$0xff]
    %v1772 = vld [vmem:[#allocation14 + $0x208] sm:$0xff]
    %v1773 = vld [vmem:[#allocation14 + $0x210] sm:$0xff]
    %v1774 = vld [vmem:[#allocation14 + $0x218] sm:$0xff]
    %v1775 = vld [vmem:[#allocation14 + $0x220] sm:$0xff]
    %v1776 = vld [vmem:[#allocation14 + $0x228] sm:$0xff]
    %v1777 = vld [vmem:[#allocation14 + $0x230] sm:$0xff]
    %v1778 = vld [vmem:[#allocation14 + $0x238] sm:$0xff]
    %v1779 = vld [vmem:[#allocation14 + $0x240] sm:$0xff]
    %v1780 = vld [vmem:[#allocation14 + $0x248] sm:$0xff]
    %v1781 = vld [vmem:[#allocation14 + $0x250] sm:$0xff]
    %v1782 = vld [vmem:[#allocation14 + $0x258] sm:$0xff]
    %v1783 = vld [vmem:[#allocation14 + $0x260] sm:$0xff]
    %v1784 = vld [vmem:[#allocation14 + $0x268] sm:$0xff]
    %v1785 = vld [vmem:[#allocation14 + $0x270] sm:$0xff]
    %v1786 = vld [vmem:[#allocation14 + $0x278] sm:$0xff]
    %v1787 = vld [vmem:[#allocation14 + $0x280] sm:$0xff]
    %v1788 = vld [vmem:[#allocation14 + $0x288] sm:$0xff]
    %v1789 = vld [vmem:[#allocation14 + $0x290] sm:$0xff]
    %v1790 = vld [vmem:[#allocation14 + $0x298] sm:$0xff]
    %v1791 = vld [vmem:[#allocation14 + $0x2a0] sm:$0xff]
    %v1792 = vld [vmem:[#allocation14 + $0x2a8] sm:$0xff]
    %v1793 = vld [vmem:[#allocation14 + $0x2b0] sm:$0xff]
    %v1794 = vld [vmem:[#allocation14 + $0x2b8] sm:$0xff]
    %v1795 = vld [vmem:[#allocation14 + $0x2c0] sm:$0xff]
    %v1796 = vld [vmem:[#allocation14 + $0x2c8] sm:$0xff]
    %v1797 = vld [vmem:[#allocation14 + $0x2d0] sm:$0xff]
    %v1798 = vld [vmem:[#allocation14 + $0x2d8] sm:$0xff]
    %v1799 = vld [vmem:[#allocation14 + $0x2e0] sm:$0xff]
    %v1800 = vld [vmem:[#allocation14 + $0x2e8] sm:$0xff]
    %v1801 = vld [vmem:[#allocation14 + $0x2f0] sm:$0xff]
    %v1802 = vld [vmem:[#allocation14 + $0x2f8] sm:$0xff]
    %v1899 = vunpack.c.l.b16 %v1707
    %v1900 = vunpack.c.h.b16 %v1707
    %v1901 = vunpack.c.l.b16 %v1708
    %v1902 = vunpack.c.h.b16 %v1708
    %v1903 = vunpack.c.l.b16 %v1709
    %v1904 = vunpack.c.h.b16 %v1709
    %v1905 = vunpack.c.l.b16 %v1710
    %v1906 = vunpack.c.h.b16 %v1710
    %v1907 = vunpack.c.l.b16 %v1711
    %v1908 = vunpack.c.h.b16 %v1711
    %v1909 = vunpack.c.l.b16 %v1712
    %v1910 = vunpack.c.h.b16 %v1712
    %v1911 = vunpack.c.l.b16 %v1713
    %v1912 = vunpack.c.h.b16 %v1713
    %v1913 = vunpack.c.l.b16 %v1714
    %v1914 = vunpack.c.h.b16 %v1714
    %v1915 = vunpack.c.l.b16 %v1715
    %v1916 = vunpack.c.h.b16 %v1715
    %v1917 = vunpack.c.l.b16 %v1716
    %v1918 = vunpack.c.h.b16 %v1716
    %v1919 = vunpack.c.l.b16 %v1717
    %v1920 = vunpack.c.h.b16 %v1717
    %v1921 = vunpack.c.l.b16 %v1718
    %v1922 = vunpack.c.h.b16 %v1718
    %v1923 = vunpack.c.l.b16 %v1719
    %v1924 = vunpack.c.h.b16 %v1719
    %v1925 = vunpack.c.l.b16 %v1720
    %v1926 = vunpack.c.h.b16 %v1720
    %v1927 = vunpack.c.l.b16 %v1721
    %v1928 = vunpack.c.h.b16 %v1721
    %v1929 = vunpack.c.l.b16 %v1722
    %v1930 = vunpack.c.h.b16 %v1722
    %v1931 = vunpack.c.l.b16 %v1723
    %v1932 = vunpack.c.h.b16 %v1723
    %v1933 = vunpack.c.l.b16 %v1724
    %v1934 = vunpack.c.h.b16 %v1724
    %v1935 = vunpack.c.l.b16 %v1725
    %v1936 = vunpack.c.h.b16 %v1725
    %v1937 = vunpack.c.l.b16 %v1726
    %v1938 = vunpack.c.h.b16 %v1726
    %v1939 = vunpack.c.l.b16 %v1727
    %v1940 = vunpack.c.h.b16 %v1727
    %v1941 = vunpack.c.l.b16 %v1728
    %v1942 = vunpack.c.h.b16 %v1728
    %v1943 = vunpack.c.l.b16 %v1729
    %v1944 = vunpack.c.h.b16 %v1729
    %v1945 = vunpack.c.l.b16 %v1730
    %v1946 = vunpack.c.h.b16 %v1730
    %v1947 = vunpack.c.l.b16 %v1731
    %v1948 = vunpack.c.h.b16 %v1731
    %v1949 = vunpack.c.l.b16 %v1732
    %v1950 = vunpack.c.h.b16 %v1732
    %v1951 = vunpack.c.l.b16 %v1733
    %v1952 = vunpack.c.h.b16 %v1733
    %v1953 = vunpack.c.l.b16 %v1734
    %v1954 = vunpack.c.h.b16 %v1734
    %v1955 = vunpack.c.l.b16 %v1735
    %v1956 = vunpack.c.h.b16 %v1735
    %v1957 = vunpack.c.l.b16 %v1736
    %v1958 = vunpack.c.h.b16 %v1736
    %v1959 = vunpack.c.l.b16 %v1737
    %v1960 = vunpack.c.h.b16 %v1737
    %v1961 = vunpack.c.l.b16 %v1738
    %v1962 = vunpack.c.h.b16 %v1738
    %v1963 = vunpack.c.l.b16 %v1739
    %v1964 = vunpack.c.h.b16 %v1739
    %v1965 = vunpack.c.l.b16 %v1740
    %v1966 = vunpack.c.h.b16 %v1740
    %v1967 = vunpack.c.l.b16 %v1741
    %v1968 = vunpack.c.h.b16 %v1741
    %v1969 = vunpack.c.l.b16 %v1742
    %v1970 = vunpack.c.h.b16 %v1742
    %v1971 = vunpack.c.l.b16 %v1743
    %v1972 = vunpack.c.h.b16 %v1743
    %v1973 = vunpack.c.l.b16 %v1744
    %v1974 = vunpack.c.h.b16 %v1744
    %v1975 = vunpack.c.l.b16 %v1745
    %v1976 = vunpack.c.h.b16 %v1745
    %v1977 = vunpack.c.l.b16 %v1746
    %v1978 = vunpack.c.h.b16 %v1746
    %v1979 = vunpack.c.l.b16 %v1747
    %v1980 = vunpack.c.h.b16 %v1747
    %v1981 = vunpack.c.l.b16 %v1748
    %v1982 = vunpack.c.h.b16 %v1748
    %v1983 = vunpack.c.l.b16 %v1749
    %v1984 = vunpack.c.h.b16 %v1749
    %v1985 = vunpack.c.l.b16 %v1750
    %v1986 = vunpack.c.h.b16 %v1750
    %v1987 = vunpack.c.l.b16 %v1751
    %v1988 = vunpack.c.h.b16 %v1751
    %v1989 = vunpack.c.l.b16 %v1752
    %v1990 = vunpack.c.h.b16 %v1752
    %v1991 = vunpack.c.l.b16 %v1753
    %v1992 = vunpack.c.h.b16 %v1753
    %v1993 = vunpack.c.l.b16 %v1754
    %v1994 = vunpack.c.h.b16 %v1754
    %v1995 = vunpack.c.l.b16 %v1755
    %v1996 = vunpack.c.h.b16 %v1755
    %v1997 = vunpack.c.l.b16 %v1756
    %v1998 = vunpack.c.h.b16 %v1756
    %v1999 = vunpack.c.l.b16 %v1757
    %v2000 = vunpack.c.h.b16 %v1757
    %v2001 = vunpack.c.l.b16 %v1758
    %v2002 = vunpack.c.h.b16 %v1758
    %v2003 = vunpack.c.l.b16 %v1759
    %v2004 = vunpack.c.h.b16 %v1759
    %v2005 = vunpack.c.l.b16 %v1760
    %v2006 = vunpack.c.h.b16 %v1760
    %v2007 = vunpack.c.l.b16 %v1761
    %v2008 = vunpack.c.h.b16 %v1761
    %v2009 = vunpack.c.l.b16 %v1762
    %v2010 = vunpack.c.h.b16 %v1762
    %v2011 = vunpack.c.l.b16 %v1763
    %v2012 = vunpack.c.h.b16 %v1763
    %v2013 = vunpack.c.l.b16 %v1764
    %v2014 = vunpack.c.h.b16 %v1764
    %v2015 = vunpack.c.l.b16 %v1765
    %v2016 = vunpack.c.h.b16 %v1765
    %v2017 = vunpack.c.l.b16 %v1766
    %v2018 = vunpack.c.h.b16 %v1766
    %v2019 = vunpack.c.l.b16 %v1767
    %v2020 = vunpack.c.h.b16 %v1767
    %v2021 = vunpack.c.l.b16 %v1768
    %v2022 = vunpack.c.h.b16 %v1768
    %v2023 = vunpack.c.l.b16 %v1769
    %v2024 = vunpack.c.h.b16 %v1769
    %v2025 = vunpack.c.l.b16 %v1770
    %v2026 = vunpack.c.h.b16 %v1770
    %v2027 = vunpack.c.l.b16 %v1771
    %v2028 = vunpack.c.h.b16 %v1771
    %v2029 = vunpack.c.l.b16 %v1772
    %v2030 = vunpack.c.h.b16 %v1772
    %v2031 = vunpack.c.l.b16 %v1773
    %v2032 = vunpack.c.h.b16 %v1773
    %v2033 = vunpack.c.l.b16 %v1774
    %v2034 = vunpack.c.h.b16 %v1774
    %v2035 = vunpack.c.l.b16 %v1775
    %v2036 = vunpack.c.h.b16 %v1775
    %v2037 = vunpack.c.l.b16 %v1776
    %v2038 = vunpack.c.h.b16 %v1776
    %v2039 = vunpack.c.l.b16 %v1777
    %v2040 = vunpack.c.h.b16 %v1777
    %v2041 = vunpack.c.l.b16 %v1778
    %v2042 = vunpack.c.h.b16 %v1778
    %v2043 = vunpack.c.l.b16 %v1779
    %v2044 = vunpack.c.h.b16 %v1779
    %v2045 = vunpack.c.l.b16 %v1780
    %v2046 = vunpack.c.h.b16 %v1780
    %v2047 = vunpack.c.l.b16 %v1781
    %v2048 = vunpack.c.h.b16 %v1781
    %v2049 = vunpack.c.l.b16 %v1782
    %v2050 = vunpack.c.h.b16 %v1782
    %v2051 = vunpack.c.l.b16 %v1783
    %v2052 = vunpack.c.h.b16 %v1783
    %v2053 = vunpack.c.l.b16 %v1784
    %v2054 = vunpack.c.h.b16 %v1784
    %v2055 = vunpack.c.l.b16 %v1785
    %v2056 = vunpack.c.h.b16 %v1785
    %v2057 = vunpack.c.l.b16 %v1786
    %v2058 = vunpack.c.h.b16 %v1786
    %v2059 = vunpack.c.l.b16 %v1787
    %v2060 = vunpack.c.h.b16 %v1787
    %v2061 = vunpack.c.l.b16 %v1788
    %v2062 = vunpack.c.h.b16 %v1788
    %v2063 = vunpack.c.l.b16 %v1789
    %v2064 = vunpack.c.h.b16 %v1789
    %v2065 = vunpack.c.l.b16 %v1790
    %v2066 = vunpack.c.h.b16 %v1790
    %v2067 = vunpack.c.l.b16 %v1791
    %v2068 = vunpack.c.h.b16 %v1791
    %v2069 = vunpack.c.l.b16 %v1792
    %v2070 = vunpack.c.h.b16 %v1792
    %v2071 = vunpack.c.l.b16 %v1793
    %v2072 = vunpack.c.h.b16 %v1793
    %v2073 = vunpack.c.l.b16 %v1794
    %v2074 = vunpack.c.h.b16 %v1794
    %v2075 = vunpack.c.l.b16 %v1795
    %v2076 = vunpack.c.h.b16 %v1795
    %v2077 = vunpack.c.l.b16 %v1796
    %v2078 = vunpack.c.h.b16 %v1796
    %v2079 = vunpack.c.l.b16 %v1797
    %v2080 = vunpack.c.h.b16 %v1797
    %v2081 = vunpack.c.l.b16 %v1798
    %v2082 = vunpack.c.h.b16 %v1798
    %v2083 = vunpack.c.l.b16 %v1799
    %v2084 = vunpack.c.h.b16 %v1799
    %v2085 = vunpack.c.l.b16 %v1800
    %v2086 = vunpack.c.h.b16 %v1800
    %v2087 = vunpack.c.l.b16 %v1801
    %v2088 = vunpack.c.h.b16 %v1801
    %v2089 = vunpack.c.l.b16 %v1802
    %v2090 = vunpack.c.h.b16 %v1802
    %v2091 = vpack.c.b16 %v1905, %v1899
    %v2092 = vpack.c.b16 %v1906, %v1900
    %v2093 = vpack.c.b16 %v1907, %v1901
    %v2094 = vpack.c.b16 %v1908, %v1902
    %v2095 = vpack.c.b16 %v1909, %v1903
    %v2096 = vpack.c.b16 %v1910, %v1904
    %v2097 = vpack.c.b16 %v1917, %v1911
    %v2098 = vpack.c.b16 %v1918, %v1912
    %v2099 = vpack.c.b16 %v1919, %v1913
    %v2100 = vpack.c.b16 %v1920, %v1914
    %v2101 = vpack.c.b16 %v1921, %v1915
    %v2102 = vpack.c.b16 %v1922, %v1916
    %v2103 = vpack.c.b16 %v1929, %v1923
    %v2104 = vpack.c.b16 %v1930, %v1924
    %v2105 = vpack.c.b16 %v1931, %v1925
    %v2106 = vpack.c.b16 %v1932, %v1926
    %v2107 = vpack.c.b16 %v1933, %v1927
    %v2108 = vpack.c.b16 %v1934, %v1928
    %v2109 = vpack.c.b16 %v1941, %v1935
    %v2110 = vpack.c.b16 %v1942, %v1936
    %v2111 = vpack.c.b16 %v1943, %v1937
    %v2112 = vpack.c.b16 %v1944, %v1938
    %v2113 = vpack.c.b16 %v1945, %v1939
    %v2114 = vpack.c.b16 %v1946, %v1940
    %v2115 = vpack.c.b16 %v1953, %v1947
    %v2116 = vpack.c.b16 %v1954, %v1948
    %v2117 = vpack.c.b16 %v1955, %v1949
    %v2118 = vpack.c.b16 %v1956, %v1950
    %v2119 = vpack.c.b16 %v1957, %v1951
    %v2120 = vpack.c.b16 %v1958, %v1952
    %v2121 = vpack.c.b16 %v1965, %v1959
    %v2122 = vpack.c.b16 %v1966, %v1960
    %v2123 = vpack.c.b16 %v1967, %v1961
    %v2124 = vpack.c.b16 %v1968, %v1962
    %v2125 = vpack.c.b16 %v1969, %v1963
    %v2126 = vpack.c.b16 %v1970, %v1964
    %v2127 = vpack.c.b16 %v1977, %v1971
    %v2128 = vpack.c.b16 %v1978, %v1972
    %v2129 = vpack.c.b16 %v1979, %v1973
    %v2130 = vpack.c.b16 %v1980, %v1974
    %v2131 = vpack.c.b16 %v1981, %v1975
    %v2132 = vpack.c.b16 %v1982, %v1976
    %v2133 = vpack.c.b16 %v1989, %v1983
    %v2134 = vpack.c.b16 %v1990, %v1984
    %v2135 = vpack.c.b16 %v1991, %v1985
    %v2136 = vpack.c.b16 %v1992, %v1986
    %v2137 = vpack.c.b16 %v1993, %v1987
    %v2138 = vpack.c.b16 %v1994, %v1988
    %v2139 = vpack.c.b16 %v2001, %v1995
    %v2140 = vpack.c.b16 %v2002, %v1996
    %v2141 = vpack.c.b16 %v2003, %v1997
    %v2142 = vpack.c.b16 %v2004, %v1998
    %v2143 = vpack.c.b16 %v2005, %v1999
    %v2144 = vpack.c.b16 %v2006, %v2000
    %v2145 = vpack.c.b16 %v2013, %v2007
    %v2146 = vpack.c.b16 %v2014, %v2008
    %v2147 = vpack.c.b16 %v2015, %v2009
    %v2148 = vpack.c.b16 %v2016, %v2010
    %v2149 = vpack.c.b16 %v2017, %v2011
    %v2150 = vpack.c.b16 %v2018, %v2012
    %v2151 = vpack.c.b16 %v2025, %v2019
    %v2152 = vpack.c.b16 %v2026, %v2020
    %v2153 = vpack.c.b16 %v2027, %v2021
    %v2154 = vpack.c.b16 %v2028, %v2022
    %v2155 = vpack.c.b16 %v2029, %v2023
    %v2156 = vpack.c.b16 %v2030, %v2024
    %v2157 = vpack.c.b16 %v2037, %v2031
    %v2158 = vpack.c.b16 %v2038, %v2032
    %v2159 = vpack.c.b16 %v2039, %v2033
    %v2160 = vpack.c.b16 %v2040, %v2034
    %v2161 = vpack.c.b16 %v2041, %v2035
    %v2162 = vpack.c.b16 %v2042, %v2036
    %v2163 = vpack.c.b16 %v2049, %v2043
    %v2164 = vpack.c.b16 %v2050, %v2044
    %v2165 = vpack.c.b16 %v2051, %v2045
    %v2166 = vpack.c.b16 %v2052, %v2046
    %v2167 = vpack.c.b16 %v2053, %v2047
    %v2168 = vpack.c.b16 %v2054, %v2048
    %v2169 = vpack.c.b16 %v2061, %v2055
    %v2170 = vpack.c.b16 %v2062, %v2056
    %v2171 = vpack.c.b16 %v2063, %v2057
    %v2172 = vpack.c.b16 %v2064, %v2058
    %v2173 = vpack.c.b16 %v2065, %v2059
    %v2174 = vpack.c.b16 %v2066, %v2060
    %v2175 = vpack.c.b16 %v2073, %v2067
    %v2176 = vpack.c.b16 %v2074, %v2068
    %v2177 = vpack.c.b16 %v2075, %v2069
    %v2178 = vpack.c.b16 %v2076, %v2070
    %v2179 = vpack.c.b16 %v2077, %v2071
    %v2180 = vpack.c.b16 %v2078, %v2072
    %v2181 = vpack.c.b16 %v2085, %v2079
    %v2182 = vpack.c.b16 %v2086, %v2080
    %v2183 = vpack.c.b16 %v2087, %v2081
    %v2184 = vpack.c.b16 %v2088, %v2082
    %v2185 = vpack.c.b16 %v2089, %v2083
    %v2186 = vpack.c.b16 %v2090, %v2084
    %2283 = vmatprep.subr.bf16.mxu0 %v2092
    %2284 = vmatpush1.bf16.msra.mxu0 %v2091
    %2285 = vmatprep.subr.bf16.mxu0 %v2098
    %2286 = vmatpush1.bf16.msra.mxu0 %v2097
    %2287 = vmatprep.subr.bf16.mxu0 %v2104
    %2288 = vmatpush1.bf16.msra.mxu0 %v2103
    %2289 = vmatprep.subr.bf16.mxu0 %v2110
    %2290 = vmatpush1.bf16.msra.mxu0 %v2109
    %2291 = vmatprep.subr.bf16.mxu0 %v2116
    %2292 = vmatpush1.bf16.msra.mxu0 %v2115
    %2293 = vmatprep.subr.bf16.mxu0 %v2122
    %2294 = vmatpush1.bf16.msra.mxu0 %v2121
    %2295 = vmatprep.subr.bf16.mxu0 %v2128
    %2296 = vmatpush1.bf16.msra.mxu0 %v2127
    %2297 = vmatprep.subr.bf16.mxu0 %v2134
    %2298 = vmatpush1.bf16.msra.mxu0 %v2133
    %2299 = vmatprep.subr.bf16.mxu0 %v2140
    %2300 = vmatpush1.bf16.msra.mxu0 %v2139
    %2301 = vmatprep.subr.bf16.mxu0 %v2146
    %2302 = vmatpush1.bf16.msra.mxu0 %v2145
    %2303 = vmatprep.subr.bf16.mxu0 %v2152
    %2304 = vmatpush1.bf16.msra.mxu0 %v2151
    %2305 = vmatprep.subr.bf16.mxu0 %v2158
    %2306 = vmatpush1.bf16.msra.mxu0 %v2157
    %2307 = vmatprep.subr.bf16.mxu0 %v2164
    %2308 = vmatpush1.bf16.msra.mxu0 %v2163
    %2309 = vmatprep.subr.bf16.mxu0 %v2170
    %2310 = vmatpush1.bf16.msra.mxu0 %v2169
    %2311 = vmatprep.subr.bf16.mxu0 %v2176
    %2312 = vmatpush1.bf16.msra.mxu0 %v2175
    %2313 = vmatprep.subr.bf16.mxu0 %v2182
    %2314 = vmatpush1.bf16.msra.mxu0 %v2181
    %2315 = vmatprep.mubr.bf16.mxu0 %v1706
    %2316 = vmatmul.mubr.bf16.gmra.mrb[0].mxu0 %v1705
    %v2317 = vpop.f32.mrb[0].mxu0
    %v2318 = vadd.f32 0.0, %v2317
    %v2319 = vpop.f32.mrb[0].mxu0
    %v2320 = vadd.f32 0.0, %v2319
    %v2321 = vpop.f32.mrb[0].mxu0
    %v2322 = vadd.f32 0.0, %v2321
    %v2323 = vpop.f32.mrb[0].mxu0
    %v2324 = vadd.f32 0.0, %v2323
    %2325 = vdwg.mxu0
    %2326 = vmatprep.subr.bf16.mxu0 %v2094
    %2327 = vmatpush1.bf16.msra.mxu0 %v2093
    %2328 = vmatprep.subr.bf16.mxu0 %v2100
    %2329 = vmatpush1.bf16.msra.mxu0 %v2099
    %2330 = vmatprep.subr.bf16.mxu0 %v2106
    %2331 = vmatpush1.bf16.msra.mxu0 %v2105
    %2332 = vmatprep.subr.bf16.mxu0 %v2112
    %2333 = vmatpush1.bf16.msra.mxu0 %v2111
    %2334 = vmatprep.subr.bf16.mxu0 %v2118
    %2335 = vmatpush1.bf16.msra.mxu0 %v2117
    %2336 = vmatprep.subr.bf16.mxu0 %v2124
    %2337 = vmatpush1.bf16.msra.mxu0 %v2123
    %2338 = vmatprep.subr.bf16.mxu0 %v2130
    %2339 = vmatpush1.bf16.msra.mxu0 %v2129
    %2340 = vmatprep.subr.bf16.mxu0 %v2136
    %2341 = vmatpush1.bf16.msra.mxu0 %v2135
    %2342 = vmatprep.subr.bf16.mxu0 %v2142
    %2343 = vmatpush1.bf16.msra.mxu0 %v2141
    %2344 = vmatprep.subr.bf16.mxu0 %v2148
    %2345 = vmatpush1.bf16.msra.mxu0 %v2147
    %2346 = vmatprep.subr.bf16.mxu0 %v2154
    %2347 = vmatpush1.bf16.msra.mxu0 %v2153
    %2348 = vmatprep.subr.bf16.mxu0 %v2160
    %2349 = vmatpush1.bf16.msra.mxu0 %v2159
    %2350 = vmatprep.subr.bf16.mxu0 %v2166
    %2351 = vmatpush1.bf16.msra.mxu0 %v2165
    %2352 = vmatprep.subr.bf16.mxu0 %v2172
    %2353 = vmatpush1.bf16.msra.mxu0 %v2171
    %2354 = vmatprep.subr.bf16.mxu0 %v2178
    %2355 = vmatpush1.bf16.msra.mxu0 %v2177
    %2356 = vmatprep.subr.bf16.mxu0 %v2184
    %2357 = vmatpush1.bf16.msra.mxu0 %v2183
    %2358 = vmatprep.mubr.bf16.mxu0 %v1706
    %2359 = vmatmul.mubr.bf16.gmra.mrb[0].mxu0 %v1705
    %v2360 = vpop.f32.mrb[0].mxu0
    %v2361 = vadd.f32 0.0, %v2360
    %v2362 = vpop.f32.mrb[0].mxu0
    %v2363 = vadd.f32 0.0, %v2362
    %v2364 = vpop.f32.mrb[0].mxu0
    %v2365 = vadd.f32 0.0, %v2364
    %v2366 = vpop.f32.mrb[0].mxu0
    %v2367 = vadd.f32 0.0, %v2366
    %2368 = vdwg.mxu0
    %2369 = vmatprep.subr.bf16.mxu0 %v2096
    %2370 = vmatpush1.bf16.msra.mxu0 %v2095
    %2371 = vmatprep.subr.bf16.mxu0 %v2102
    %2372 = vmatpush1.bf16.msra.mxu0 %v2101
    %2373 = vmatprep.subr.bf16.mxu0 %v2108
    %2374 = vmatpush1.bf16.msra.mxu0 %v2107
    %2375 = vmatprep.subr.bf16.mxu0 %v2114
    %2376 = vmatpush1.bf16.msra.mxu0 %v2113
    %2377 = vmatprep.subr.bf16.mxu0 %v2120
    %2378 = vmatpush1.bf16.msra.mxu0 %v2119
    %2379 = vmatprep.subr.bf16.mxu0 %v2126
    %2380 = vmatpush1.bf16.msra.mxu0 %v2125
    %2381 = vmatprep.subr.bf16.mxu0 %v2132
    %2382 = vmatpush1.bf16.msra.mxu0 %v2131
    %2383 = vmatprep.subr.bf16.mxu0 %v2138
    %2384 = vmatpush1.bf16.msra.mxu0 %v2137
    %2385 = vmatprep.subr.bf16.mxu0 %v2144
    %2386 = vmatpush1.bf16.msra.mxu0 %v2143
    %2387 = vmatprep.subr.bf16.mxu0 %v2150
    %2388 = vmatpush1.bf16.msra.mxu0 %v2149
    %2389 = vmatprep.subr.bf16.mxu0 %v2156
    %2390 = vmatpush1.bf16.msra.mxu0 %v2155
    %2391 = vmatprep.subr.bf16.mxu0 %v2162
    %2392 = vmatpush1.bf16.msra.mxu0 %v2161
    %2393 = vmatprep.subr.bf16.mxu0 %v2168
    %2394 = vmatpush1.bf16.msra.mxu0 %v2167
    %2395 = vmatprep.subr.bf16.mxu0 %v2174
    %2396 = vmatpush1.bf16.msra.mxu0 %v2173
    %2397 = vmatprep.subr.bf16.mxu0 %v2180
    %2398 = vmatpush1.bf16.msra.mxu0 %v2179
    %2399 = vmatprep.subr.bf16.mxu0 %v2186
    %2400 = vmatpush1.bf16.msra.mxu0 %v2185
    %2401 = vmatprep.mubr.bf16.mxu0 %v1706
    %2402 = vmatmul.mubr.bf16.gmra.mrb[0].mxu0 %v1705
    %v2403 = vpop.f32.mrb[0].mxu0
    %v2404 = vadd.f32 0.0, %v2403
    %v2405 = vpop.f32.mrb[0].mxu0
    %v2406 = vadd.f32 0.0, %v2405
    %v2407 = vpop.f32.mrb[0].mxu0
    %v2408 = vadd.f32 0.0, %v2407
    %v2409 = vpop.f32.mrb[0].mxu0
    %v2410 = vadd.f32 0.0, %v2409
    %2411 = vdwg.mxu0
    %v2412 = vld [vmem:[#allocation17] sm:$0xff]
    %v2413 = vld [vmem:[#allocation17 + $0x8] sm:$0xff]
    %v2414 = vld [vmem:[#allocation17 + $0x10] sm:$0xff]
    %v2415 = vld [vmem:[#allocation17 + $0x18] sm:$0xff]
    %v2416 = vld [vmem:[#allocation17 + $0x20] sm:$0xff]
    %v2417 = vld [vmem:[#allocation17 + $0x28] sm:$0xff]
    %v2418 = vld [vmem:[#allocation17 + $0x30] sm:$0xff]
    %v2419 = vld [vmem:[#allocation17 + $0x38] sm:$0xff]
    %v2420 = vld [vmem:[#allocation17 + $0x40] sm:$0xff]
    %v2421 = vld [vmem:[#allocation17 + $0x48] sm:$0xff]
    %v2422 = vld [vmem:[#allocation17 + $0x50] sm:$0xff]
    %v2423 = vld [vmem:[#allocation17 + $0x58] sm:$0xff]
    %v2424 = vld [vmem:[#allocation17 + $0x60] sm:$0xff]
    %v2425 = vld [vmem:[#allocation17 + $0x68] sm:$0xff]
    %v2426 = vld [vmem:[#allocation17 + $0x70] sm:$0xff]
    %v2427 = vld [vmem:[#allocation17 + $0x78] sm:$0xff]
    %v2428 = vld [vmem:[#allocation17 + $0x80] sm:$0xff]
    %v2429 = vld [vmem:[#allocation17 + $0x88] sm:$0xff]
    %v2430 = vld [vmem:[#allocation17 + $0x90] sm:$0xff]
    %v2431 = vld [vmem:[#allocation17 + $0x98] sm:$0xff]
    %v2432 = vld [vmem:[#allocation17 + $0xa0] sm:$0xff]
    %v2433 = vld [vmem:[#allocation17 + $0xa8] sm:$0xff]
    %v2434 = vld [vmem:[#allocation17 + $0xb0] sm:$0xff]
    %v2435 = vld [vmem:[#allocation17 + $0xb8] sm:$0xff]
    %v2436 = vld [vmem:[#allocation17 + $0xc0] sm:$0xff]
    %v2437 = vld [vmem:[#allocation17 + $0xc8] sm:$0xff]
    %v2438 = vld [vmem:[#allocation17 + $0xd0] sm:$0xff]
    %v2439 = vld [vmem:[#allocation17 + $0xd8] sm:$0xff]
    %v2440 = vld [vmem:[#allocation17 + $0xe0] sm:$0xff]
    %v2441 = vld [vmem:[#allocation17 + $0xe8] sm:$0xff]
    %v2442 = vld [vmem:[#allocation17 + $0xf0] sm:$0xff]
    %v2443 = vld [vmem:[#allocation17 + $0xf8] sm:$0xff]
    %v2444 = vld [vmem:[#allocation17 + $0x100] sm:$0xff]
    %v2445 = vld [vmem:[#allocation17 + $0x108] sm:$0xff]
    %v2446 = vld [vmem:[#allocation17 + $0x110] sm:$0xff]
    %v2447 = vld [vmem:[#allocation17 + $0x118] sm:$0xff]
    %v2448 = vld [vmem:[#allocation17 + $0x120] sm:$0xff]
    %v2449 = vld [vmem:[#allocation17 + $0x128] sm:$0xff]
    %v2450 = vld [vmem:[#allocation17 + $0x130] sm:$0xff]
    %v2451 = vld [vmem:[#allocation17 + $0x138] sm:$0xff]
    %v2452 = vld [vmem:[#allocation17 + $0x140] sm:$0xff]
    %v2453 = vld [vmem:[#allocation17 + $0x148] sm:$0xff]
    %v2454 = vld [vmem:[#allocation17 + $0x150] sm:$0xff]
    %v2455 = vld [vmem:[#allocation17 + $0x158] sm:$0xff]
    %v2456 = vld [vmem:[#allocation17 + $0x160] sm:$0xff]
    %v2457 = vld [vmem:[#allocation17 + $0x168] sm:$0xff]
    %v2458 = vld [vmem:[#allocation17 + $0x170] sm:$0xff]
    %v2459 = vld [vmem:[#allocation17 + $0x178] sm:$0xff]
    %v2460 = vld [vmem:[#allocation17 + $0x180] sm:$0xff]
    %v2461 = vld [vmem:[#allocation17 + $0x188] sm:$0xff]
    %v2462 = vld [vmem:[#allocation17 + $0x190] sm:$0xff]
    %v2463 = vld [vmem:[#allocation17 + $0x198] sm:$0xff]
    %v2464 = vld [vmem:[#allocation17 + $0x1a0] sm:$0xff]
    %v2465 = vld [vmem:[#allocation17 + $0x1a8] sm:$0xff]
    %v2466 = vld [vmem:[#allocation17 + $0x1b0] sm:$0xff]
    %v2467 = vld [vmem:[#allocation17 + $0x1b8] sm:$0xff]
    %v2468 = vld [vmem:[#allocation17 + $0x1c0] sm:$0xff]
    %v2469 = vld [vmem:[#allocation17 + $0x1c8] sm:$0xff]
    %v2470 = vld [vmem:[#allocation17 + $0x1d0] sm:$0xff]
    %v2471 = vld [vmem:[#allocation17 + $0x1d8] sm:$0xff]
    %v2472 = vld [vmem:[#allocation17 + $0x1e0] sm:$0xff]
    %v2473 = vld [vmem:[#allocation17 + $0x1e8] sm:$0xff]
    %v2474 = vld [vmem:[#allocation17 + $0x1f0] sm:$0xff]
    %v2475 = vld [vmem:[#allocation17 + $0x1f8] sm:$0xff]
    %v2476 = vld [vmem:[#allocation17 + $0x200] sm:$0xff]
    %v2477 = vld [vmem:[#allocation17 + $0x208] sm:$0xff]
    %v2478 = vld [vmem:[#allocation17 + $0x210] sm:$0xff]
    %v2479 = vld [vmem:[#allocation17 + $0x218] sm:$0xff]
    %v2480 = vld [vmem:[#allocation17 + $0x220] sm:$0xff]
    %v2481 = vld [vmem:[#allocation17 + $0x228] sm:$0xff]
    %v2482 = vld [vmem:[#allocation17 + $0x230] sm:$0xff]
    %v2483 = vld [vmem:[#allocation17 + $0x238] sm:$0xff]
    %v2484 = vld [vmem:[#allocation17 + $0x240] sm:$0xff]
    %v2485 = vld [vmem:[#allocation17 + $0x248] sm:$0xff]
    %v2486 = vld [vmem:[#allocation17 + $0x250] sm:$0xff]
    %v2487 = vld [vmem:[#allocation17 + $0x258] sm:$0xff]
    %v2488 = vld [vmem:[#allocation17 + $0x260] sm:$0xff]
    %v2489 = vld [vmem:[#allocation17 + $0x268] sm:$0xff]
    %v2490 = vld [vmem:[#allocation17 + $0x270] sm:$0xff]
    %v2491 = vld [vmem:[#allocation17 + $0x278] sm:$0xff]
    %v2492 = vld [vmem:[#allocation17 + $0x280] sm:$0xff]
    %v2493 = vld [vmem:[#allocation17 + $0x288] sm:$0xff]
    %v2494 = vld [vmem:[#allocation17 + $0x290] sm:$0xff]
    %v2495 = vld [vmem:[#allocation17 + $0x298] sm:$0xff]
    %v2496 = vld [vmem:[#allocation17 + $0x2a0] sm:$0xff]
    %v2497 = vld [vmem:[#allocation17 + $0x2a8] sm:$0xff]
    %v2498 = vld [vmem:[#allocation17 + $0x2b0] sm:$0xff]
    %v2499 = vld [vmem:[#allocation17 + $0x2b8] sm:$0xff]
    %v2500 = vld [vmem:[#allocation17 + $0x2c0] sm:$0xff]
    %v2501 = vld [vmem:[#allocation17 + $0x2c8] sm:$0xff]
    %v2502 = vld [vmem:[#allocation17 + $0x2d0] sm:$0xff]
    %v2503 = vld [vmem:[#allocation17 + $0x2d8] sm:$0xff]
    %v2504 = vld [vmem:[#allocation17 + $0x2e0] sm:$0xff]
    %v2505 = vld [vmem:[#allocation17 + $0x2e8] sm:$0xff]
    %v2506 = vld [vmem:[#allocation17 + $0x2f0] sm:$0xff]
    %v2507 = vld [vmem:[#allocation17 + $0x2f8] sm:$0xff]
    %v2604 = vunpack.c.l.b16 %v2412
    %v2605 = vunpack.c.h.b16 %v2412
    %v2606 = vunpack.c.l.b16 %v2413
    %v2607 = vunpack.c.h.b16 %v2413
    %v2608 = vunpack.c.l.b16 %v2414
    %v2609 = vunpack.c.h.b16 %v2414
    %v2610 = vunpack.c.l.b16 %v2415
    %v2611 = vunpack.c.h.b16 %v2415
    %v2612 = vunpack.c.l.b16 %v2416
    %v2613 = vunpack.c.h.b16 %v2416
    %v2614 = vunpack.c.l.b16 %v2417
    %v2615 = vunpack.c.h.b16 %v2417
    %v2616 = vunpack.c.l.b16 %v2418
    %v2617 = vunpack.c.h.b16 %v2418
    %v2618 = vunpack.c.l.b16 %v2419
    %v2619 = vunpack.c.h.b16 %v2419
    %v2620 = vunpack.c.l.b16 %v2420
    %v2621 = vunpack.c.h.b16 %v2420
    %v2622 = vunpack.c.l.b16 %v2421
    %v2623 = vunpack.c.h.b16 %v2421
    %v2624 = vunpack.c.l.b16 %v2422
    %v2625 = vunpack.c.h.b16 %v2422
    %v2626 = vunpack.c.l.b16 %v2423
    %v2627 = vunpack.c.h.b16 %v2423
    %v2628 = vunpack.c.l.b16 %v2424
    %v2629 = vunpack.c.h.b16 %v2424
    %v2630 = vunpack.c.l.b16 %v2425
    %v2631 = vunpack.c.h.b16 %v2425
    %v2632 = vunpack.c.l.b16 %v2426
    %v2633 = vunpack.c.h.b16 %v2426
    %v2634 = vunpack.c.l.b16 %v2427
    %v2635 = vunpack.c.h.b16 %v2427
    %v2636 = vunpack.c.l.b16 %v2428
    %v2637 = vunpack.c.h.b16 %v2428
    %v2638 = vunpack.c.l.b16 %v2429
    %v2639 = vunpack.c.h.b16 %v2429
    %v2640 = vunpack.c.l.b16 %v2430
    %v2641 = vunpack.c.h.b16 %v2430
    %v2642 = vunpack.c.l.b16 %v2431
    %v2643 = vunpack.c.h.b16 %v2431
    %v2644 = vunpack.c.l.b16 %v2432
    %v2645 = vunpack.c.h.b16 %v2432
    %v2646 = vunpack.c.l.b16 %v2433
    %v2647 = vunpack.c.h.b16 %v2433
    %v2648 = vunpack.c.l.b16 %v2434
    %v2649 = vunpack.c.h.b16 %v2434
    %v2650 = vunpack.c.l.b16 %v2435
    %v2651 = vunpack.c.h.b16 %v2435
    %v2652 = vunpack.c.l.b16 %v2436
    %v2653 = vunpack.c.h.b16 %v2436
    %v2654 = vunpack.c.l.b16 %v2437
    %v2655 = vunpack.c.h.b16 %v2437
    %v2656 = vunpack.c.l.b16 %v2438
    %v2657 = vunpack.c.h.b16 %v2438
    %v2658 = vunpack.c.l.b16 %v2439
    %v2659 = vunpack.c.h.b16 %v2439
    %v2660 = vunpack.c.l.b16 %v2440
    %v2661 = vunpack.c.h.b16 %v2440
    %v2662 = vunpack.c.l.b16 %v2441
    %v2663 = vunpack.c.h.b16 %v2441
    %v2664 = vunpack.c.l.b16 %v2442
    %v2665 = vunpack.c.h.b16 %v2442
    %v2666 = vunpack.c.l.b16 %v2443
    %v2667 = vunpack.c.h.b16 %v2443
    %v2668 = vunpack.c.l.b16 %v2444
    %v2669 = vunpack.c.h.b16 %v2444
    %v2670 = vunpack.c.l.b16 %v2445
    %v2671 = vunpack.c.h.b16 %v2445
    %v2672 = vunpack.c.l.b16 %v2446
    %v2673 = vunpack.c.h.b16 %v2446
    %v2674 = vunpack.c.l.b16 %v2447
    %v2675 = vunpack.c.h.b16 %v2447
    %v2676 = vunpack.c.l.b16 %v2448
    %v2677 = vunpack.c.h.b16 %v2448
    %v2678 = vunpack.c.l.b16 %v2449
    %v2679 = vunpack.c.h.b16 %v2449
    %v2680 = vunpack.c.l.b16 %v2450
    %v2681 = vunpack.c.h.b16 %v2450
    %v2682 = vunpack.c.l.b16 %v2451
    %v2683 = vunpack.c.h.b16 %v2451
    %v2684 = vunpack.c.l.b16 %v2452
    %v2685 = vunpack.c.h.b16 %v2452
    %v2686 = vunpack.c.l.b16 %v2453
    %v2687 = vunpack.c.h.b16 %v2453
    %v2688 = vunpack.c.l.b16 %v2454
    %v2689 = vunpack.c.h.b16 %v2454
    %v2690 = vunpack.c.l.b16 %v2455
    %v2691 = vunpack.c.h.b16 %v2455
    %v2692 = vunpack.c.l.b16 %v2456
    %v2693 = vunpack.c.h.b16 %v2456
    %v2694 = vunpack.c.l.b16 %v2457
    %v2695 = vunpack.c.h.b16 %v2457
    %v2696 = vunpack.c.l.b16 %v2458
    %v2697 = vunpack.c.h.b16 %v2458
    %v2698 = vunpack.c.l.b16 %v2459
    %v2699 = vunpack.c.h.b16 %v2459
    %v2700 = vunpack.c.l.b16 %v2460
    %v2701 = vunpack.c.h.b16 %v2460
    %v2702 = vunpack.c.l.b16 %v2461
    %v2703 = vunpack.c.h.b16 %v2461
    %v2704 = vunpack.c.l.b16 %v2462
    %v2705 = vunpack.c.h.b16 %v2462
    %v2706 = vunpack.c.l.b16 %v2463
    %v2707 = vunpack.c.h.b16 %v2463
    %v2708 = vunpack.c.l.b16 %v2464
    %v2709 = vunpack.c.h.b16 %v2464
    %v2710 = vunpack.c.l.b16 %v2465
    %v2711 = vunpack.c.h.b16 %v2465
    %v2712 = vunpack.c.l.b16 %v2466
    %v2713 = vunpack.c.h.b16 %v2466
    %v2714 = vunpack.c.l.b16 %v2467
    %v2715 = vunpack.c.h.b16 %v2467
    %v2716 = vunpack.c.l.b16 %v2468
    %v2717 = vunpack.c.h.b16 %v2468
    %v2718 = vunpack.c.l.b16 %v2469
    %v2719 = vunpack.c.h.b16 %v2469
    %v2720 = vunpack.c.l.b16 %v2470
    %v2721 = vunpack.c.h.b16 %v2470
    %v2722 = vunpack.c.l.b16 %v2471
    %v2723 = vunpack.c.h.b16 %v2471
    %v2724 = vunpack.c.l.b16 %v2472
    %v2725 = vunpack.c.h.b16 %v2472
    %v2726 = vunpack.c.l.b16 %v2473
    %v2727 = vunpack.c.h.b16 %v2473
    %v2728 = vunpack.c.l.b16 %v2474
    %v2729 = vunpack.c.h.b16 %v2474
    %v2730 = vunpack.c.l.b16 %v2475
    %v2731 = vunpack.c.h.b16 %v2475
    %v2732 = vunpack.c.l.b16 %v2476
    %v2733 = vunpack.c.h.b16 %v2476
    %v2734 = vunpack.c.l.b16 %v2477
    %v2735 = vunpack.c.h.b16 %v2477
    %v2736 = vunpack.c.l.b16 %v2478
    %v2737 = vunpack.c.h.b16 %v2478
    %v2738 = vunpack.c.l.b16 %v2479
    %v2739 = vunpack.c.h.b16 %v2479
    %v2740 = vunpack.c.l.b16 %v2480
    %v2741 = vunpack.c.h.b16 %v2480
    %v2742 = vunpack.c.l.b16 %v2481
    %v2743 = vunpack.c.h.b16 %v2481
    %v2744 = vunpack.c.l.b16 %v2482
    %v2745 = vunpack.c.h.b16 %v2482
    %v2746 = vunpack.c.l.b16 %v2483
    %v2747 = vunpack.c.h.b16 %v2483
    %v2748 = vunpack.c.l.b16 %v2484
    %v2749 = vunpack.c.h.b16 %v2484
    %v2750 = vunpack.c.l.b16 %v2485
    %v2751 = vunpack.c.h.b16 %v2485
    %v2752 = vunpack.c.l.b16 %v2486
    %v2753 = vunpack.c.h.b16 %v2486
    %v2754 = vunpack.c.l.b16 %v2487
    %v2755 = vunpack.c.h.b16 %v2487
    %v2756 = vunpack.c.l.b16 %v2488
    %v2757 = vunpack.c.h.b16 %v2488
    %v2758 = vunpack.c.l.b16 %v2489
    %v2759 = vunpack.c.h.b16 %v2489
    %v2760 = vunpack.c.l.b16 %v2490
    %v2761 = vunpack.c.h.b16 %v2490
    %v2762 = vunpack.c.l.b16 %v2491
    %v2763 = vunpack.c.h.b16 %v2491
    %v2764 = vunpack.c.l.b16 %v2492
    %v2765 = vunpack.c.h.b16 %v2492
    %v2766 = vunpack.c.l.b16 %v2493
    %v2767 = vunpack.c.h.b16 %v2493
    %v2768 = vunpack.c.l.b16 %v2494
    %v2769 = vunpack.c.h.b16 %v2494
    %v2770 = vunpack.c.l.b16 %v2495
    %v2771 = vunpack.c.h.b16 %v2495
    %v2772 = vunpack.c.l.b16 %v2496
    %v2773 = vunpack.c.h.b16 %v2496
    %v2774 = vunpack.c.l.b16 %v2497
    %v2775 = vunpack.c.h.b16 %v2497
    %v2776 = vunpack.c.l.b16 %v2498
    %v2777 = vunpack.c.h.b16 %v2498
    %v2778 = vunpack.c.l.b16 %v2499
    %v2779 = vunpack.c.h.b16 %v2499
    %v2780 = vunpack.c.l.b16 %v2500
    %v2781 = vunpack.c.h.b16 %v2500
    %v2782 = vunpack.c.l.b16 %v2501
    %v2783 = vunpack.c.h.b16 %v2501
    %v2784 = vunpack.c.l.b16 %v2502
    %v2785 = vunpack.c.h.b16 %v2502
    %v2786 = vunpack.c.l.b16 %v2503
    %v2787 = vunpack.c.h.b16 %v2503
    %v2788 = vunpack.c.l.b16 %v2504
    %v2789 = vunpack.c.h.b16 %v2504
    %v2790 = vunpack.c.l.b16 %v2505
    %v2791 = vunpack.c.h.b16 %v2505
    %v2792 = vunpack.c.l.b16 %v2506
    %v2793 = vunpack.c.h.b16 %v2506
    %v2794 = vunpack.c.l.b16 %v2507
    %v2795 = vunpack.c.h.b16 %v2507
    %v2796 = vpack.c.b16 %v2610, %v2604
    %v2797 = vpack.c.b16 %v2611, %v2605
    %v2798 = vpack.c.b16 %v2612, %v2606
    %v2799 = vpack.c.b16 %v2613, %v2607
    %v2800 = vpack.c.b16 %v2614, %v2608
    %v2801 = vpack.c.b16 %v2615, %v2609
    %v2802 = vpack.c.b16 %v2622, %v2616
    %v2803 = vpack.c.b16 %v2623, %v2617
    %v2804 = vpack.c.b16 %v2624, %v2618
    %v2805 = vpack.c.b16 %v2625, %v2619
    %v2806 = vpack.c.b16 %v2626, %v2620
    %v2807 = vpack.c.b16 %v2627, %v2621
    %v2808 = vpack.c.b16 %v2634, %v2628
    %v2809 = vpack.c.b16 %v2635, %v2629
    %v2810 = vpack.c.b16 %v2636, %v2630
    %v2811 = vpack.c.b16 %v2637, %v2631
    %v2812 = vpack.c.b16 %v2638, %v2632
    %v2813 = vpack.c.b16 %v2639, %v2633
    %v2814 = vpack.c.b16 %v2646, %v2640
    %v2815 = vpack.c.b16 %v2647, %v2641
    %v2816 = vpack.c.b16 %v2648, %v2642
    %v2817 = vpack.c.b16 %v2649, %v2643
    %v2818 = vpack.c.b16 %v2650, %v2644
    %v2819 = vpack.c.b16 %v2651, %v2645
    %v2820 = vpack.c.b16 %v2658, %v2652
    %v2821 = vpack.c.b16 %v2659, %v2653
    %v2822 = vpack.c.b16 %v2660, %v2654
    %v2823 = vpack.c.b16 %v2661, %v2655
    %v2824 = vpack.c.b16 %v2662, %v2656
    %v2825 = vpack.c.b16 %v2663, %v2657
    %v2826 = vpack.c.b16 %v2670, %v2664
    %v2827 = vpack.c.b16 %v2671, %v2665
    %v2828 = vpack.c.b16 %v2672, %v2666
    %v2829 = vpack.c.b16 %v2673, %v2667
    %v2830 = vpack.c.b16 %v2674, %v2668
    %v2831 = vpack.c.b16 %v2675, %v2669
    %v2832 = vpack.c.b16 %v2682, %v2676
    %v2833 = vpack.c.b16 %v2683, %v2677
    %v2834 = vpack.c.b16 %v2684, %v2678
    %v2835 = vpack.c.b16 %v2685, %v2679
    %v2836 = vpack.c.b16 %v2686, %v2680
    %v2837 = vpack.c.b16 %v2687, %v2681
    %v2838 = vpack.c.b16 %v2694, %v2688
    %v2839 = vpack.c.b16 %v2695, %v2689
    %v2840 = vpack.c.b16 %v2696, %v2690
    %v2841 = vpack.c.b16 %v2697, %v2691
    %v2842 = vpack.c.b16 %v2698, %v2692
    %v2843 = vpack.c.b16 %v2699, %v2693
    %v2844 = vpack.c.b16 %v2706, %v2700
    %v2845 = vpack.c.b16 %v2707, %v2701
    %v2846 = vpack.c.b16 %v2708, %v2702
    %v2847 = vpack.c.b16 %v2709, %v2703
    %v2848 = vpack.c.b16 %v2710, %v2704
    %v2849 = vpack.c.b16 %v2711, %v2705
    %v2850 = vpack.c.b16 %v2718, %v2712
    %v2851 = vpack.c.b16 %v2719, %v2713
    %v2852 = vpack.c.b16 %v2720, %v2714
    %v2853 = vpack.c.b16 %v2721, %v2715
    %v2854 = vpack.c.b16 %v2722, %v2716
    %v2855 = vpack.c.b16 %v2723, %v2717
    %v2856 = vpack.c.b16 %v2730, %v2724
    %v2857 = vpack.c.b16 %v2731, %v2725
    %v2858 = vpack.c.b16 %v2732, %v2726
    %v2859 = vpack.c.b16 %v2733, %v2727
    %v2860 = vpack.c.b16 %v2734, %v2728
    %v2861 = vpack.c.b16 %v2735, %v2729
    %v2862 = vpack.c.b16 %v2742, %v2736
    %v2863 = vpack.c.b16 %v2743, %v2737
    %v2864 = vpack.c.b16 %v2744, %v2738
    %v2865 = vpack.c.b16 %v2745, %v2739
    %v2866 = vpack.c.b16 %v2746, %v2740
    %v2867 = vpack.c.b16 %v2747, %v2741
    %v2868 = vpack.c.b16 %v2754, %v2748
    %v2869 = vpack.c.b16 %v2755, %v2749
    %v2870 = vpack.c.b16 %v2756, %v2750
    %v2871 = vpack.c.b16 %v2757, %v2751
    %v2872 = vpack.c.b16 %v2758, %v2752
    %v2873 = vpack.c.b16 %v2759, %v2753
    %v2874 = vpack.c.b16 %v2766, %v2760
    %v2875 = vpack.c.b16 %v2767, %v2761
    %v2876 = vpack.c.b16 %v2768, %v2762
    %v2877 = vpack.c.b16 %v2769, %v2763
    %v2878 = vpack.c.b16 %v2770, %v2764
    %v2879 = vpack.c.b16 %v2771, %v2765
    %v2880 = vpack.c.b16 %v2778, %v2772
    %v2881 = vpack.c.b16 %v2779, %v2773
    %v2882 = vpack.c.b16 %v2780, %v2774
    %v2883 = vpack.c.b16 %v2781, %v2775
    %v2884 = vpack.c.b16 %v2782, %v2776
    %v2885 = vpack.c.b16 %v2783, %v2777
    %v2886 = vpack.c.b16 %v2790, %v2784
    %v2887 = vpack.c.b16 %v2791, %v2785
    %v2888 = vpack.c.b16 %v2792, %v2786
    %v2889 = vpack.c.b16 %v2793, %v2787
    %v2890 = vpack.c.b16 %v2794, %v2788
    %v2891 = vpack.c.b16 %v2795, %v2789
    %2988 = vmatprep.subr.bf16.mxu0 %v2797
    %2989 = vmatpush1.bf16.msra.mxu0 %v2796
    %2990 = vmatprep.subr.bf16.mxu0 %v2803
    %2991 = vmatpush1.bf16.msra.mxu0 %v2802
    %2992 = vmatprep.subr.bf16.mxu0 %v2809
    %2993 = vmatpush1.bf16.msra.mxu0 %v2808
    %2994 = vmatprep.subr.bf16.mxu0 %v2815
    %2995 = vmatpush1.bf16.msra.mxu0 %v2814
    %2996 = vmatprep.subr.bf16.mxu0 %v2821
    %2997 = vmatpush1.bf16.msra.mxu0 %v2820
    %2998 = vmatprep.subr.bf16.mxu0 %v2827
    %2999 = vmatpush1.bf16.msra.mxu0 %v2826
    %3000 = vmatprep.subr.bf16.mxu0 %v2833
    %3001 = vmatpush1.bf16.msra.mxu0 %v2832
    %3002 = vmatprep.subr.bf16.mxu0 %v2839
    %3003 = vmatpush1.bf16.msra.mxu0 %v2838
    %3004 = vmatprep.subr.bf16.mxu0 %v2845
    %3005 = vmatpush1.bf16.msra.mxu0 %v2844
    %3006 = vmatprep.subr.bf16.mxu0 %v2851
    %3007 = vmatpush1.bf16.msra.mxu0 %v2850
    %3008 = vmatprep.subr.bf16.mxu0 %v2857
    %3009 = vmatpush1.bf16.msra.mxu0 %v2856
    %3010 = vmatprep.subr.bf16.mxu0 %v2863
    %3011 = vmatpush1.bf16.msra.mxu0 %v2862
    %3012 = vmatprep.subr.bf16.mxu0 %v2869
    %3013 = vmatpush1.bf16.msra.mxu0 %v2868
    %3014 = vmatprep.subr.bf16.mxu0 %v2875
    %3015 = vmatpush1.bf16.msra.mxu0 %v2874
    %3016 = vmatprep.subr.bf16.mxu0 %v2881
    %3017 = vmatpush1.bf16.msra.mxu0 %v2880
    %3018 = vmatprep.subr.bf16.mxu0 %v2887
    %3019 = vmatpush1.bf16.msra.mxu0 %v2886
    %3020 = vmatprep.mubr.bf16.mxu0 %v1706
    %3021 = vmatmul.mubr.bf16.gmra.mrb[0].mxu0 %v1705
    %v3022 = vpop.f32.mrb[0].mxu0
    %v3023 = vadd.f32 0.0, %v3022
    %v3024 = vpop.f32.mrb[0].mxu0
    %v3025 = vadd.f32 0.0, %v3024
    %v3026 = vpop.f32.mrb[0].mxu0
    %v3027 = vadd.f32 0.0, %v3026
    %v3028 = vpop.f32.mrb[0].mxu0
    %v3029 = vadd.f32 0.0, %v3028
    %3030 = vdwg.mxu0
    %3031 = vmatprep.subr.bf16.mxu0 %v2799
    %3032 = vmatpush1.bf16.msra.mxu0 %v2798
    %3033 = vmatprep.subr.bf16.mxu0 %v2805
    %3034 = vmatpush1.bf16.msra.mxu0 %v2804
    %3035 = vmatprep.subr.bf16.mxu0 %v2811
    %3036 = vmatpush1.bf16.msra.mxu0 %v2810
    %3037 = vmatprep.subr.bf16.mxu0 %v2817
    %3038 = vmatpush1.bf16.msra.mxu0 %v2816
    %3039 = vmatprep.subr.bf16.mxu0 %v2823
    %3040 = vmatpush1.bf16.msra.mxu0 %v2822
    %3041 = vmatprep.subr.bf16.mxu0 %v2829
    %3042 = vmatpush1.bf16.msra.mxu0 %v2828
    %3043 = vmatprep.subr.bf16.mxu0 %v2835
    %3044 = vmatpush1.bf16.msra.mxu0 %v2834
    %3045 = vmatprep.subr.bf16.mxu0 %v2841
    %3046 = vmatpush1.bf16.msra.mxu0 %v2840
    %3047 = vmatprep.subr.bf16.mxu0 %v2847
    %3048 = vmatpush1.bf16.msra.mxu0 %v2846
    %3049 = vmatprep.subr.bf16.mxu0 %v2853
    %3050 = vmatpush1.bf16.msra.mxu0 %v2852
    %3051 = vmatprep.subr.bf16.mxu0 %v2859
    %3052 = vmatpush1.bf16.msra.mxu0 %v2858
    %3053 = vmatprep.subr.bf16.mxu0 %v2865
    %3054 = vmatpush1.bf16.msra.mxu0 %v2864
    %3055 = vmatprep.subr.bf16.mxu0 %v2871
    %3056 = vmatpush1.bf16.msra.mxu0 %v2870
    %3057 = vmatprep.subr.bf16.mxu0 %v2877
    %3058 = vmatpush1.bf16.msra.mxu0 %v2876
    %3059 = vmatprep.subr.bf16.mxu0 %v2883
    %3060 = vmatpush1.bf16.msra.mxu0 %v2882
    %3061 = vmatprep.subr.bf16.mxu0 %v2889
    %3062 = vmatpush1.bf16.msra.mxu0 %v2888
    %3063 = vmatprep.mubr.bf16.mxu0 %v1706
    %3064 = vmatmul.mubr.bf16.gmra.mrb[0].mxu0 %v1705
    %v3065 = vpop.f32.mrb[0].mxu0
    %v3066 = vadd.f32 0.0, %v3065
    %v3067 = vpop.f32.mrb[0].mxu0
    %v3068 = vadd.f32 0.0, %v3067
    %v3069 = vpop.f32.mrb[0].mxu0
    %v3070 = vadd.f32 0.0, %v3069
    %v3071 = vpop.f32.mrb[0].mxu0
    %v3072 = vadd.f32 0.0, %v3071
    %3073 = vdwg.mxu0
    %3074 = vmatprep.subr.bf16.mxu0 %v2801
    %3075 = vmatpush1.bf16.msra.mxu0 %v2800
    %3076 = vmatprep.subr.bf16.mxu0 %v2807
    %3077 = vmatpush1.bf16.msra.mxu0 %v2806
    %3078 = vmatprep.subr.bf16.mxu0 %v2813
    %3079 = vmatpush1.bf16.msra.mxu0 %v2812
    %3080 = vmatprep.subr.bf16.mxu0 %v2819
    %3081 = vmatpush1.bf16.msra.mxu0 %v2818
    %3082 = vmatprep.subr.bf16.mxu0 %v2825
    %3083 = vmatpush1.bf16.msra.mxu0 %v2824
    %3084 = vmatprep.subr.bf16.mxu0 %v2831
    %3085 = vmatpush1.bf16.msra.mxu0 %v2830
    %3086 = vmatprep.subr.bf16.mxu0 %v2837
    %3087 = vmatpush1.bf16.msra.mxu0 %v2836
    %3088 = vmatprep.subr.bf16.mxu0 %v2843
    %3089 = vmatpush1.bf16.msra.mxu0 %v2842
    %3090 = vmatprep.subr.bf16.mxu0 %v2849
    %3091 = vmatpush1.bf16.msra.mxu0 %v2848
    %3092 = vmatprep.subr.bf16.mxu0 %v2855
    %3093 = vmatpush1.bf16.msra.mxu0 %v2854
    %3094 = vmatprep.subr.bf16.mxu0 %v2861
    %3095 = vmatpush1.bf16.msra.mxu0 %v2860
    %3096 = vmatprep.subr.bf16.mxu0 %v2867
    %3097 = vmatpush1.bf16.msra.mxu0 %v2866
    %3098 = vmatprep.subr.bf16.mxu0 %v2873
    %3099 = vmatpush1.bf16.msra.mxu0 %v2872
    %3100 = vmatprep.subr.bf16.mxu0 %v2879
    %3101 = vmatpush1.bf16.msra.mxu0 %v2878
    %3102 = vmatprep.subr.bf16.mxu0 %v2885
    %3103 = vmatpush1.bf16.msra.mxu0 %v2884
    %3104 = vmatprep.subr.bf16.mxu0 %v2891
    %3105 = vmatpush1.bf16.msra.mxu0 %v2890
    %3106 = vmatprep.mubr.bf16.mxu0 %v1706
    %3107 = vmatmul.mubr.bf16.gmra.mrb[0].mxu0 %v1705
    %v3108 = vpop.f32.mrb[0].mxu0
    %v3109 = vadd.f32 0.0, %v3108
    %v3110 = vpop.f32.mrb[0].mxu0
    %v3111 = vadd.f32 0.0, %v3110
    %v3112 = vpop.f32.mrb[0].mxu0
    %v3113 = vadd.f32 0.0, %v3112
    %v3114 = vpop.f32.mrb[0].mxu0
    %v3115 = vadd.f32 0.0, %v3114
    %3116 = vdwg.mxu0
    %v3117 = vsub.f32 0.0, %v2318
    %v3118 = vsub.f32 0.0, %v2320
    %v3119 = vsub.f32 0.0, %v2361
    %v3120 = vsub.f32 0.0, %v2363
    %v3121 = vsub.f32 0.0, %v2404
    %v3122 = vsub.f32 0.0, %v2406
    %v3123 = vsub.f32 0.0, %v2322
    %v3124 = vsub.f32 0.0, %v2324
    %v3125 = vsub.f32 0.0, %v2365
    %v3126 = vsub.f32 0.0, %v2367
    %v3127 = vsub.f32 0.0, %v2408
    %v3128 = vsub.f32 0.0, %v2410
    %v3129 = vmul.f32 %v3117, 1.442695
    %v3130 = vpow.pop %v3129
    %v3131 = vmul.f32 %v3118, 1.442695
    %v3132 = vpow.pop %v3131
    %v3133 = vmul.f32 %v3119, 1.442695
    %v3134 = vpow.pop %v3133
    %v3135 = vmul.f32 %v3120, 1.442695
    %v3136 = vpow.pop %v3135
    %v3137 = vmul.f32 %v3121, 1.442695
    %v3138 = vpow.pop %v3137
    %v3139 = vmul.f32 %v3122, 1.442695
    %v3140 = vpow.pop %v3139
    %v3141 = vmul.f32 %v3123, 1.442695
    %v3142 = vpow.pop %v3141
    %v3143 = vmul.f32 %v3124, 1.442695
    %v3144 = vpow.pop %v3143
    %v3145 = vmul.f32 %v3125, 1.442695
    %v3146 = vpow.pop %v3145
    %v3147 = vmul.f32 %v3126, 1.442695
    %v3148 = vpow.pop %v3147
    %v3149 = vmul.f32 %v3127, 1.442695
    %v3150 = vpow.pop %v3149
    %v3151 = vmul.f32 %v3128, 1.442695
    %v3152 = vpow.pop %v3151
    %v3153 = vadd.f32 %v3130, 1.0
    %v3154 = vadd.f32 %v3132, 1.0
    %v3155 = vadd.f32 %v3134, 1.0
    %v3156 = vadd.f32 %v3136, 1.0
    %v3157 = vadd.f32 %v3138, 1.0
    %v3158 = vadd.f32 %v3140, 1.0
    %v3159 = vadd.f32 %v3142, 1.0
    %v3160 = vadd.f32 %v3144, 1.0
    %v3161 = vadd.f32 %v3146, 1.0
    %v3162 = vadd.f32 %v3148, 1.0
    %v3163 = vadd.f32 %v3150, 1.0
    %v3164 = vadd.f32 %v3152, 1.0
    %v3165 = vrcp.pop %v3153
    %v3166 = vmul.f32 1.0, %v3165
    %v3167 = vrcp.pop %v3154
    %v3168 = vmul.f32 1.0, %v3167
    %v3169 = vrcp.pop %v3155
    %v3170 = vmul.f32 1.0, %v3169
    %v3171 = vrcp.pop %v3156
    %v3172 = vmul.f32 1.0, %v3171
    %v3173 = vrcp.pop %v3157
    %v3174 = vmul.f32 1.0, %v3173
    %v3175 = vrcp.pop %v3158
    %v3176 = vmul.f32 1.0, %v3175
    %v3177 = vrcp.pop %v3159
    %v3178 = vmul.f32 1.0, %v3177
    %v3179 = vrcp.pop %v3160
    %v3180 = vmul.f32 1.0, %v3179
    %v3181 = vrcp.pop %v3161
    %v3182 = vmul.f32 1.0, %v3181
    %v3183 = vrcp.pop %v3162
    %v3184 = vmul.f32 1.0, %v3183
    %v3185 = vrcp.pop %v3163
    %v3186 = vmul.f32 1.0, %v3185
    %v3187 = vrcp.pop %v3164
    %v3188 = vmul.f32 1.0, %v3187
    %v3189 = vmul.f32 %v2318, %v3166
    %v3190 = vmul.f32 %v2320, %v3168
    %v3191 = vmul.f32 %v2361, %v3170
    %v3192 = vmul.f32 %v2363, %v3172
    %v3193 = vmul.f32 %v2404, %v3174
    %v3194 = vmul.f32 %v2406, %v3176
    %v3195 = vmul.f32 %v2322, %v3178
    %v3196 = vmul.f32 %v2324, %v3180
    %v3197 = vmul.f32 %v2365, %v3182
    %v3198 = vmul.f32 %v2367, %v3184
    %v3199 = vmul.f32 %v2408, %v3186
    %v3200 = vmul.f32 %v2410, %v3188
    %v3201 = vmul.f32 %v3189, %v3023
    %v3202 = vmul.f32 %v3190, %v3025
    %v3203 = vmul.f32 %v3191, %v3066
    %v3204 = vmul.f32 %v3192, %v3068
    %v3205 = vmul.f32 %v3193, %v3109
    %v3206 = vmul.f32 %v3194, %v3111
    %v3207 = vmul.f32 %v3195, %v3027
    %v3208 = vmul.f32 %v3196, %v3029
    %v3209 = vmul.f32 %v3197, %v3070
    %v3210 = vmul.f32 %v3198, %v3072
    %v3211 = vmul.f32 %v3199, %v3113
    %v3212 = vmul.f32 %v3200, %v3115
    %v3213 = vpack.c.bf16 %v3207, %v3201
    %v3214 = vpack.c.bf16 %v3208, %v3202
    %v3215 = vpack.c.bf16 %v3209, %v3203
    %v3216 = vpack.c.bf16 %v3210, %v3204
    %v3217 = vpack.c.bf16 %v3211, %v3205
    %v3218 = vpack.c.bf16 %v3212, %v3206
    %v3219 = vld [vmem:[#allocation16] sm:$0xff]
    %v3220 = vld [vmem:[#allocation16 + $0x8] sm:$0xff]
    %v3221 = vld [vmem:[#allocation16 + $0x10] sm:$0xff]
    %v3222 = vld [vmem:[#allocation16 + $0x18] sm:$0xff]
    %v3223 = vld [vmem:[#allocation16 + $0x20] sm:$0xff]
    %v3224 = vld [vmem:[#allocation16 + $0x28] sm:$0xff]
    %v3225 = vld [vmem:[#allocation16 + $0x30] sm:$0xff]
    %v3226 = vld [vmem:[#allocation16 + $0x38] sm:$0xff]
    %v3227 = vld [vmem:[#allocation16 + $0x40] sm:$0xff]
    %v3228 = vld [vmem:[#allocation16 + $0x48] sm:$0xff]
    %v3229 = vld [vmem:[#allocation16 + $0x50] sm:$0xff]
    %v3230 = vld [vmem:[#allocation16 + $0x58] sm:$0xff]
    %v3231 = vld [vmem:[#allocation16 + $0x60] sm:$0xff]
    %v3232 = vld [vmem:[#allocation16 + $0x68] sm:$0xff]
    %v3233 = vld [vmem:[#allocation16 + $0x70] sm:$0xff]
    %v3234 = vld [vmem:[#allocation16 + $0x78] sm:$0xff]
    %v3235 = vld [vmem:[#allocation16 + $0x80] sm:$0xff]
    %v3236 = vld [vmem:[#allocation16 + $0x88] sm:$0xff]
    %v3237 = vld [vmem:[#allocation16 + $0x90] sm:$0xff]
    %v3238 = vld [vmem:[#allocation16 + $0x98] sm:$0xff]
    %v3239 = vld [vmem:[#allocation16 + $0xa0] sm:$0xff]
    %v3240 = vld [vmem:[#allocation16 + $0xa8] sm:$0xff]
    %v3241 = vld [vmem:[#allocation16 + $0xb0] sm:$0xff]
    %v3242 = vld [vmem:[#allocation16 + $0xb8] sm:$0xff]
    %v3243 = vld [vmem:[#allocation16 + $0xc0] sm:$0xff]
    %v3244 = vld [vmem:[#allocation16 + $0xc8] sm:$0xff]
    %v3245 = vld [vmem:[#allocation16 + $0xd0] sm:$0xff]
    %v3246 = vld [vmem:[#allocation16 + $0xd8] sm:$0xff]
    %v3247 = vld [vmem:[#allocation16 + $0xe0] sm:$0xff]
    %v3248 = vld [vmem:[#allocation16 + $0xe8] sm:$0xff]
    %v3249 = vld [vmem:[#allocation16 + $0xf0] sm:$0xff]
    %v3250 = vld [vmem:[#allocation16 + $0xf8] sm:$0xff]
    %v3251 = vld [vmem:[#allocation16 + $0x100] sm:$0xff]
    %v3252 = vld [vmem:[#allocation16 + $0x108] sm:$0xff]
    %v3253 = vld [vmem:[#allocation16 + $0x110] sm:$0xff]
    %v3254 = vld [vmem:[#allocation16 + $0x118] sm:$0xff]
    %v3255 = vld [vmem:[#allocation16 + $0x120] sm:$0xff]
    %v3256 = vld [vmem:[#allocation16 + $0x128] sm:$0xff]
    %v3257 = vld [vmem:[#allocation16 + $0x130] sm:$0xff]
    %v3258 = vld [vmem:[#allocation16 + $0x138] sm:$0xff]
    %v3259 = vld [vmem:[#allocation16 + $0x140] sm:$0xff]
    %v3260 = vld [vmem:[#allocation16 + $0x148] sm:$0xff]
    %v3261 = vld [vmem:[#allocation16 + $0x150] sm:$0xff]
    %v3262 = vld [vmem:[#allocation16 + $0x158] sm:$0xff]
    %v3263 = vld [vmem:[#allocation16 + $0x160] sm:$0xff]
    %v3264 = vld [vmem:[#allocation16 + $0x168] sm:$0xff]
    %v3265 = vld [vmem:[#allocation16 + $0x170] sm:$0xff]
    %v3266 = vld [vmem:[#allocation16 + $0x178] sm:$0xff]
    %v3267 = vld [vmem:[#allocation16 + $0x180] sm:$0xff]
    %v3268 = vld [vmem:[#allocation16 + $0x188] sm:$0xff]
    %v3269 = vld [vmem:[#allocation16 + $0x190] sm:$0xff]
    %v3270 = vld [vmem:[#allocation16 + $0x198] sm:$0xff]
    %v3271 = vld [vmem:[#allocation16 + $0x1a0] sm:$0xff]
    %v3272 = vld [vmem:[#allocation16 + $0x1a8] sm:$0xff]
    %v3273 = vld [vmem:[#allocation16 + $0x1b0] sm:$0xff]
    %v3274 = vld [vmem:[#allocation16 + $0x1b8] sm:$0xff]
    %v3275 = vld [vmem:[#allocation16 + $0x1c0] sm:$0xff]
    %v3276 = vld [vmem:[#allocation16 + $0x1c8] sm:$0xff]
    %v3277 = vld [vmem:[#allocation16 + $0x1d0] sm:$0xff]
    %v3278 = vld [vmem:[#allocation16 + $0x1d8] sm:$0xff]
    %v3279 = vld [vmem:[#allocation16 + $0x1e0] sm:$0xff]
    %v3280 = vld [vmem:[#allocation16 + $0x1e8] sm:$0xff]
    %v3281 = vld [vmem:[#allocation16 + $0x1f0] sm:$0xff]
    %v3282 = vld [vmem:[#allocation16 + $0x1f8] sm:$0xff]
    %v3283 = vld [vmem:[#allocation16 + $0x200] sm:$0xff]
    %v3284 = vld [vmem:[#allocation16 + $0x208] sm:$0xff]
    %v3285 = vld [vmem:[#allocation16 + $0x210] sm:$0xff]
    %v3286 = vld [vmem:[#allocation16 + $0x218] sm:$0xff]
    %v3287 = vld [vmem:[#allocation16 + $0x220] sm:$0xff]
    %v3288 = vld [vmem:[#allocation16 + $0x228] sm:$0xff]
    %v3289 = vld [vmem:[#allocation16 + $0x230] sm:$0xff]
    %v3290 = vld [vmem:[#allocation16 + $0x238] sm:$0xff]
    %v3291 = vld [vmem:[#allocation16 + $0x240] sm:$0xff]
    %v3292 = vld [vmem:[#allocation16 + $0x248] sm:$0xff]
    %v3293 = vld [vmem:[#allocation16 + $0x250] sm:$0xff]
    %v3294 = vld [vmem:[#allocation16 + $0x258] sm:$0xff]
    %v3295 = vld [vmem:[#allocation16 + $0x260] sm:$0xff]
    %v3296 = vld [vmem:[#allocation16 + $0x268] sm:$0xff]
    %v3297 = vld [vmem:[#allocation16 + $0x270] sm:$0xff]
    %v3298 = vld [vmem:[#allocation16 + $0x278] sm:$0xff]
    %v3299 = vld [vmem:[#allocation16 + $0x280] sm:$0xff]
    %v3300 = vld [vmem:[#allocation16 + $0x288] sm:$0xff]
    %v3301 = vld [vmem:[#allocation16 + $0x290] sm:$0xff]
    %v3302 = vld [vmem:[#allocation16 + $0x298] sm:$0xff]
    %v3303 = vld [vmem:[#allocation16 + $0x2a0] sm:$0xff]
    %v3304 = vld [vmem:[#allocation16 + $0x2a8] sm:$0xff]
    %v3305 = vld [vmem:[#allocation16 + $0x2b0] sm:$0xff]
    %v3306 = vld [vmem:[#allocation16 + $0x2b8] sm:$0xff]
    %v3307 = vld [vmem:[#allocation16 + $0x2c0] sm:$0xff]
    %v3308 = vld [vmem:[#allocation16 + $0x2c8] sm:$0xff]
    %v3309 = vld [vmem:[#allocation16 + $0x2d0] sm:$0xff]
    %v3310 = vld [vmem:[#allocation16 + $0x2d8] sm:$0xff]
    %v3311 = vld [vmem:[#allocation16 + $0x2e0] sm:$0xff]
    %v3312 = vld [vmem:[#allocation16 + $0x2e8] sm:$0xff]
    %v3313 = vld [vmem:[#allocation16 + $0x2f0] sm:$0xff]
    %v3314 = vld [vmem:[#allocation16 + $0x2f8] sm:$0xff]
    %v3411 = vunpack.c.l.b16 %v3219
    %v3412 = vunpack.c.h.b16 %v3219
    %v3413 = vunpack.c.l.b16 %v3220
    %v3414 = vunpack.c.h.b16 %v3220
    %v3415 = vunpack.c.l.b16 %v3221
    %v3416 = vunpack.c.h.b16 %v3221
    %v3417 = vunpack.c.l.b16 %v3222
    %v3418 = vunpack.c.h.b16 %v3222
    %v3419 = vunpack.c.l.b16 %v3223
    %v3420 = vunpack.c.h.b16 %v3223
    %v3421 = vunpack.c.l.b16 %v3224
    %v3422 = vunpack.c.h.b16 %v3224
    %v3423 = vunpack.c.l.b16 %v3225
    %v3424 = vunpack.c.h.b16 %v3225
    %v3425 = vunpack.c.l.b16 %v3226
    %v3426 = vunpack.c.h.b16 %v3226
    %v3427 = vunpack.c.l.b16 %v3227
    %v3428 = vunpack.c.h.b16 %v3227
    %v3429 = vunpack.c.l.b16 %v3228
    %v3430 = vunpack.c.h.b16 %v3228
    %v3431 = vunpack.c.l.b16 %v3229
    %v3432 = vunpack.c.h.b16 %v3229
    %v3433 = vunpack.c.l.b16 %v3230
    %v3434 = vunpack.c.h.b16 %v3230
    %v3435 = vunpack.c.l.b16 %v3231
    %v3436 = vunpack.c.h.b16 %v3231
    %v3437 = vunpack.c.l.b16 %v3232
    %v3438 = vunpack.c.h.b16 %v3232
    %v3439 = vunpack.c.l.b16 %v3233
    %v3440 = vunpack.c.h.b16 %v3233
    %v3441 = vunpack.c.l.b16 %v3234
    %v3442 = vunpack.c.h.b16 %v3234
    %v3443 = vunpack.c.l.b16 %v3235
    %v3444 = vunpack.c.h.b16 %v3235
    %v3445 = vunpack.c.l.b16 %v3236
    %v3446 = vunpack.c.h.b16 %v3236
    %v3447 = vunpack.c.l.b16 %v3237
    %v3448 = vunpack.c.h.b16 %v3237
    %v3449 = vunpack.c.l.b16 %v3238
    %v3450 = vunpack.c.h.b16 %v3238
    %v3451 = vunpack.c.l.b16 %v3239
    %v3452 = vunpack.c.h.b16 %v3239
    %v3453 = vunpack.c.l.b16 %v3240
    %v3454 = vunpack.c.h.b16 %v3240
    %v3455 = vunpack.c.l.b16 %v3241
    %v3456 = vunpack.c.h.b16 %v3241
    %v3457 = vunpack.c.l.b16 %v3242
    %v3458 = vunpack.c.h.b16 %v3242
    %v3459 = vunpack.c.l.b16 %v3243
    %v3460 = vunpack.c.h.b16 %v3243
    %v3461 = vunpack.c.l.b16 %v3244
    %v3462 = vunpack.c.h.b16 %v3244
    %v3463 = vunpack.c.l.b16 %v3245
    %v3464 = vunpack.c.h.b16 %v3245
    %v3465 = vunpack.c.l.b16 %v3246
    %v3466 = vunpack.c.h.b16 %v3246
    %v3467 = vunpack.c.l.b16 %v3247
    %v3468 = vunpack.c.h.b16 %v3247
    %v3469 = vunpack.c.l.b16 %v3248
    %v3470 = vunpack.c.h.b16 %v3248
    %v3471 = vunpack.c.l.b16 %v3249
    %v3472 = vunpack.c.h.b16 %v3249
    %v3473 = vunpack.c.l.b16 %v3250
    %v3474 = vunpack.c.h.b16 %v3250
    %v3475 = vunpack.c.l.b16 %v3251
    %v3476 = vunpack.c.h.b16 %v3251
    %v3477 = vunpack.c.l.b16 %v3252
    %v3478 = vunpack.c.h.b16 %v3252
    %v3479 = vunpack.c.l.b16 %v3253
    %v3480 = vunpack.c.h.b16 %v3253
    %v3481 = vunpack.c.l.b16 %v3254
    %v3482 = vunpack.c.h.b16 %v3254
    %v3483 = vunpack.c.l.b16 %v3255
    %v3484 = vunpack.c.h.b16 %v3255
    %v3485 = vunpack.c.l.b16 %v3256
    %v3486 = vunpack.c.h.b16 %v3256
    %v3487 = vunpack.c.l.b16 %v3257
    %v3488 = vunpack.c.h.b16 %v3257
    %v3489 = vunpack.c.l.b16 %v3258
    %v3490 = vunpack.c.h.b16 %v3258
    %v3491 = vunpack.c.l.b16 %v3259
    %v3492 = vunpack.c.h.b16 %v3259
    %v3493 = vunpack.c.l.b16 %v3260
    %v3494 = vunpack.c.h.b16 %v3260
    %v3495 = vunpack.c.l.b16 %v3261
    %v3496 = vunpack.c.h.b16 %v3261
    %v3497 = vunpack.c.l.b16 %v3262
    %v3498 = vunpack.c.h.b16 %v3262
    %v3499 = vunpack.c.l.b16 %v3263
    %v3500 = vunpack.c.h.b16 %v3263
    %v3501 = vunpack.c.l.b16 %v3264
    %v3502 = vunpack.c.h.b16 %v3264
    %v3503 = vunpack.c.l.b16 %v3265
    %v3504 = vunpack.c.h.b16 %v3265
    %v3505 = vunpack.c.l.b16 %v3266
    %v3506 = vunpack.c.h.b16 %v3266
    %v3507 = vunpack.c.l.b16 %v3267
    %v3508 = vunpack.c.h.b16 %v3267
    %v3509 = vunpack.c.l.b16 %v3268
    %v3510 = vunpack.c.h.b16 %v3268
    %v3511 = vunpack.c.l.b16 %v3269
    %v3512 = vunpack.c.h.b16 %v3269
    %v3513 = vunpack.c.l.b16 %v3270
    %v3514 = vunpack.c.h.b16 %v3270
    %v3515 = vunpack.c.l.b16 %v3271
    %v3516 = vunpack.c.h.b16 %v3271
    %v3517 = vunpack.c.l.b16 %v3272
    %v3518 = vunpack.c.h.b16 %v3272
    %v3519 = vunpack.c.l.b16 %v3273
    %v3520 = vunpack.c.h.b16 %v3273
    %v3521 = vunpack.c.l.b16 %v3274
    %v3522 = vunpack.c.h.b16 %v3274
    %v3523 = vunpack.c.l.b16 %v3275
    %v3524 = vunpack.c.h.b16 %v3275
    %v3525 = vunpack.c.l.b16 %v3276
    %v3526 = vunpack.c.h.b16 %v3276
    %v3527 = vunpack.c.l.b16 %v3277
    %v3528 = vunpack.c.h.b16 %v3277
    %v3529 = vunpack.c.l.b16 %v3278
    %v3530 = vunpack.c.h.b16 %v3278
    %v3531 = vunpack.c.l.b16 %v3279
    %v3532 = vunpack.c.h.b16 %v3279
    %v3533 = vunpack.c.l.b16 %v3280
    %v3534 = vunpack.c.h.b16 %v3280
    %v3535 = vunpack.c.l.b16 %v3281
    %v3536 = vunpack.c.h.b16 %v3281
    %v3537 = vunpack.c.l.b16 %v3282
    %v3538 = vunpack.c.h.b16 %v3282
    %v3539 = vunpack.c.l.b16 %v3283
    %v3540 = vunpack.c.h.b16 %v3283
    %v3541 = vunpack.c.l.b16 %v3284
    %v3542 = vunpack.c.h.b16 %v3284
    %v3543 = vunpack.c.l.b16 %v3285
    %v3544 = vunpack.c.h.b16 %v3285
    %v3545 = vunpack.c.l.b16 %v3286
    %v3546 = vunpack.c.h.b16 %v3286
    %v3547 = vunpack.c.l.b16 %v3287
    %v3548 = vunpack.c.h.b16 %v3287
    %v3549 = vunpack.c.l.b16 %v3288
    %v3550 = vunpack.c.h.b16 %v3288
    %v3551 = vunpack.c.l.b16 %v3289
    %v3552 = vunpack.c.h.b16 %v3289
    %v3553 = vunpack.c.l.b16 %v3290
    %v3554 = vunpack.c.h.b16 %v3290
    %v3555 = vunpack.c.l.b16 %v3291
    %v3556 = vunpack.c.h.b16 %v3291
    %v3557 = vunpack.c.l.b16 %v3292
    %v3558 = vunpack.c.h.b16 %v3292
    %v3559 = vunpack.c.l.b16 %v3293
    %v3560 = vunpack.c.h.b16 %v3293
    %v3561 = vunpack.c.l.b16 %v3294
    %v3562 = vunpack.c.h.b16 %v3294
    %v3563 = vunpack.c.l.b16 %v3295
    %v3564 = vunpack.c.h.b16 %v3295
    %v3565 = vunpack.c.l.b16 %v3296
    %v3566 = vunpack.c.h.b16 %v3296
    %v3567 = vunpack.c.l.b16 %v3297
    %v3568 = vunpack.c.h.b16 %v3297
    %v3569 = vunpack.c.l.b16 %v3298
    %v3570 = vunpack.c.h.b16 %v3298
    %v3571 = vunpack.c.l.b16 %v3299
    %v3572 = vunpack.c.h.b16 %v3299
    %v3573 = vunpack.c.l.b16 %v3300
    %v3574 = vunpack.c.h.b16 %v3300
    %v3575 = vunpack.c.l.b16 %v3301
    %v3576 = vunpack.c.h.b16 %v3301
    %v3577 = vunpack.c.l.b16 %v3302
    %v3578 = vunpack.c.h.b16 %v3302
    %v3579 = vunpack.c.l.b16 %v3303
    %v3580 = vunpack.c.h.b16 %v3303
    %v3581 = vunpack.c.l.b16 %v3304
    %v3582 = vunpack.c.h.b16 %v3304
    %v3583 = vunpack.c.l.b16 %v3305
    %v3584 = vunpack.c.h.b16 %v3305
    %v3585 = vunpack.c.l.b16 %v3306
    %v3586 = vunpack.c.h.b16 %v3306
    %v3587 = vunpack.c.l.b16 %v3307
    %v3588 = vunpack.c.h.b16 %v3307
    %v3589 = vunpack.c.l.b16 %v3308
    %v3590 = vunpack.c.h.b16 %v3308
    %v3591 = vunpack.c.l.b16 %v3309
    %v3592 = vunpack.c.h.b16 %v3309
    %v3593 = vunpack.c.l.b16 %v3310
    %v3594 = vunpack.c.h.b16 %v3310
    %v3595 = vunpack.c.l.b16 %v3311
    %v3596 = vunpack.c.h.b16 %v3311
    %v3597 = vunpack.c.l.b16 %v3312
    %v3598 = vunpack.c.h.b16 %v3312
    %v3599 = vunpack.c.l.b16 %v3313
    %v3600 = vunpack.c.h.b16 %v3313
    %v3601 = vunpack.c.l.b16 %v3314
    %v3602 = vunpack.c.h.b16 %v3314
    %v3603 = vpack.c.b16 %v3413, %v3411
    %v3604 = vpack.c.b16 %v3414, %v3412
    %v3605 = vpack.c.b16 %v3417, %v3415
    %v3606 = vpack.c.b16 %v3418, %v3416
    %v3607 = vpack.c.b16 %v3421, %v3419
    %v3608 = vpack.c.b16 %v3422, %v3420
    %v3609 = vpack.c.b16 %v3425, %v3423
    %v3610 = vpack.c.b16 %v3426, %v3424
    %v3611 = vpack.c.b16 %v3429, %v3427
    %v3612 = vpack.c.b16 %v3430, %v3428
    %v3613 = vpack.c.b16 %v3433, %v3431
    %v3614 = vpack.c.b16 %v3434, %v3432
    %v3615 = vpack.c.b16 %v3437, %v3435
    %v3616 = vpack.c.b16 %v3438, %v3436
    %v3617 = vpack.c.b16 %v3441, %v3439
    %v3618 = vpack.c.b16 %v3442, %v3440
    %v3619 = vpack.c.b16 %v3445, %v3443
    %v3620 = vpack.c.b16 %v3446, %v3444
    %v3621 = vpack.c.b16 %v3449, %v3447
    %v3622 = vpack.c.b16 %v3450, %v3448
    %v3623 = vpack.c.b16 %v3453, %v3451
    %v3624 = vpack.c.b16 %v3454, %v3452
    %v3625 = vpack.c.b16 %v3457, %v3455
    %v3626 = vpack.c.b16 %v3458, %v3456
    %v3627 = vpack.c.b16 %v3461, %v3459
    %v3628 = vpack.c.b16 %v3462, %v3460
    %v3629 = vpack.c.b16 %v3465, %v3463
    %v3630 = vpack.c.b16 %v3466, %v3464
    %v3631 = vpack.c.b16 %v3469, %v3467
    %v3632 = vpack.c.b16 %v3470, %v3468
    %v3633 = vpack.c.b16 %v3473, %v3471
    %v3634 = vpack.c.b16 %v3474, %v3472
    %v3635 = vpack.c.b16 %v3477, %v3475
    %v3636 = vpack.c.b16 %v3478, %v3476
    %v3637 = vpack.c.b16 %v3481, %v3479
    %v3638 = vpack.c.b16 %v3482, %v3480
    %v3639 = vpack.c.b16 %v3485, %v3483
    %v3640 = vpack.c.b16 %v3486, %v3484
    %v3641 = vpack.c.b16 %v3489, %v3487
    %v3642 = vpack.c.b16 %v3490, %v3488
    %v3643 = vpack.c.b16 %v3493, %v3491
    %v3644 = vpack.c.b16 %v3494, %v3492
    %v3645 = vpack.c.b16 %v3497, %v3495
    %v3646 = vpack.c.b16 %v3498, %v3496
    %v3647 = vpack.c.b16 %v3501, %v3499
    %v3648 = vpack.c.b16 %v3502, %v3500
    %v3649 = vpack.c.b16 %v3505, %v3503
    %v3650 = vpack.c.b16 %v3506, %v3504
    %v3651 = vpack.c.b16 %v3509, %v3507
    %v3652 = vpack.c.b16 %v3510, %v3508
    %v3653 = vpack.c.b16 %v3513, %v3511
    %v3654 = vpack.c.b16 %v3514, %v3512
    %v3655 = vpack.c.b16 %v3517, %v3515
    %v3656 = vpack.c.b16 %v3518, %v3516
    %v3657 = vpack.c.b16 %v3521, %v3519
    %v3658 = vpack.c.b16 %v3522, %v3520
    %v3659 = vpack.c.b16 %v3525, %v3523
    %v3660 = vpack.c.b16 %v3526, %v3524
    %v3661 = vpack.c.b16 %v3529, %v3527
    %v3662 = vpack.c.b16 %v3530, %v3528
    %v3663 = vpack.c.b16 %v3533, %v3531
    %v3664 = vpack.c.b16 %v3534, %v3532
    %v3665 = vpack.c.b16 %v3537, %v3535
    %v3666 = vpack.c.b16 %v3538, %v3536
    %v3667 = vpack.c.b16 %v3541, %v3539
    %v3668 = vpack.c.b16 %v3542, %v3540
    %v3669 = vpack.c.b16 %v3545, %v3543
    %v3670 = vpack.c.b16 %v3546, %v3544
    %v3671 = vpack.c.b16 %v3549, %v3547
    %v3672 = vpack.c.b16 %v3550, %v3548
    %v3673 = vpack.c.b16 %v3553, %v3551
    %v3674 = vpack.c.b16 %v3554, %v3552
    %v3675 = vpack.c.b16 %v3557, %v3555
    %v3676 = vpack.c.b16 %v3558, %v3556
    %v3677 = vpack.c.b16 %v3561, %v3559
    %v3678 = vpack.c.b16 %v3562, %v3560
    %v3679 = vpack.c.b16 %v3565, %v3563
    %v3680 = vpack.c.b16 %v3566, %v3564
    %v3681 = vpack.c.b16 %v3569, %v3567
    %v3682 = vpack.c.b16 %v3570, %v3568
    %v3683 = vpack.c.b16 %v3573, %v3571
    %v3684 = vpack.c.b16 %v3574, %v3572
    %v3685 = vpack.c.b16 %v3577, %v3575
    %v3686 = vpack.c.b16 %v3578, %v3576
    %v3687 = vpack.c.b16 %v3581, %v3579
    %v3688 = vpack.c.b16 %v3582, %v3580
    %v3689 = vpack.c.b16 %v3585, %v3583
    %v3690 = vpack.c.b16 %v3586, %v3584
    %v3691 = vpack.c.b16 %v3589, %v3587
    %v3692 = vpack.c.b16 %v3590, %v3588
    %v3693 = vpack.c.b16 %v3593, %v3591
    %v3694 = vpack.c.b16 %v3594, %v3592
    %v3695 = vpack.c.b16 %v3597, %v3595
    %v3696 = vpack.c.b16 %v3598, %v3596
    %v3697 = vpack.c.b16 %v3601, %v3599
    %v3698 = vpack.c.b16 %v3602, %v3600
    %3795 = vmatprep.subr.bf16.mxu0 %v3604
    %3796 = vmatpush1.bf16.msra.mxu0 %v3603
    %3797 = vmatprep.subr.bf16.mxu0 %v3606
    %3798 = vmatpush1.bf16.msra.mxu0 %v3605
    %3799 = vmatprep.subr.bf16.mxu0 %v3608
    %3800 = vmatpush1.bf16.msra.mxu0 %v3607
    %3801 = vmatprep.subr.bf16.mxu0 %v3610
    %3802 = vmatpush1.bf16.msra.mxu0 %v3609
    %3803 = vmatprep.subr.bf16.mxu0 %v3612
    %3804 = vmatpush1.bf16.msra.mxu0 %v3611
    %3805 = vmatprep.subr.bf16.mxu0 %v3614
    %3806 = vmatpush1.bf16.msra.mxu0 %v3613
    %3807 = vmatprep.subr.bf16.mxu0 %v3616
    %3808 = vmatpush1.bf16.msra.mxu0 %v3615
    %3809 = vmatprep.subr.bf16.mxu0 %v3618
    %3810 = vmatpush1.bf16.msra.mxu0 %v3617
    %3811 = vmatprep.subr.bf16.mxu0 %v3620
    %3812 = vmatpush1.bf16.msra.mxu0 %v3619
    %3813 = vmatprep.subr.bf16.mxu0 %v3622
    %3814 = vmatpush1.bf16.msra.mxu0 %v3621
    %3815 = vmatprep.subr.bf16.mxu0 %v3624
    %3816 = vmatpush1.bf16.msra.mxu0 %v3623
    %3817 = vmatprep.subr.bf16.mxu0 %v3626
    %3818 = vmatpush1.bf16.msra.mxu0 %v3625
    %3819 = vmatprep.subr.bf16.mxu0 %v3628
    %3820 = vmatpush1.bf16.msra.mxu0 %v3627
    %3821 = vmatprep.subr.bf16.mxu0 %v3630
    %3822 = vmatpush1.bf16.msra.mxu0 %v3629
    %3823 = vmatprep.subr.bf16.mxu0 %v3632
    %3824 = vmatpush1.bf16.msra.mxu0 %v3631
    %3825 = vmatprep.subr.bf16.mxu0 %v3634
    %3826 = vmatpush1.bf16.msra.mxu0 %v3633
    %3827 = vmatprep.mubr.bf16.mxu0 %v3214
    %3828 = vmatmul.mubr.bf16.gmra.mrb[0].mxu0 %v3213
    %v3829 = vpop.f32.mrb[0].mxu0
    %v3830 = vadd.f32 0.0, %v3829
    %v3831 = vpop.f32.mrb[0].mxu0
    %v3832 = vadd.f32 0.0, %v3831
    %v3833 = vpop.f32.mrb[0].mxu0
    %v3834 = vadd.f32 0.0, %v3833
    %v3835 = vpop.f32.mrb[0].mxu0
    %v3836 = vadd.f32 0.0, %v3835
    %3837 = vdwg.mxu0
    %3838 = vmatprep.subr.bf16.mxu0 %v3636
    %3839 = vmatpush1.bf16.msra.mxu0 %v3635
    %3840 = vmatprep.subr.bf16.mxu0 %v3638
    %3841 = vmatpush1.bf16.msra.mxu0 %v3637
    %3842 = vmatprep.subr.bf16.mxu0 %v3640
    %3843 = vmatpush1.bf16.msra.mxu0 %v3639
    %3844 = vmatprep.subr.bf16.mxu0 %v3642
    %3845 = vmatpush1.bf16.msra.mxu0 %v3641
    %3846 = vmatprep.subr.bf16.mxu0 %v3644
    %3847 = vmatpush1.bf16.msra.mxu0 %v3643
    %3848 = vmatprep.subr.bf16.mxu0 %v3646
    %3849 = vmatpush1.bf16.msra.mxu0 %v3645
    %3850 = vmatprep.subr.bf16.mxu0 %v3648
    %3851 = vmatpush1.bf16.msra.mxu0 %v3647
    %3852 = vmatprep.subr.bf16.mxu0 %v3650
    %3853 = vmatpush1.bf16.msra.mxu0 %v3649
    %3854 = vmatprep.subr.bf16.mxu0 %v3652
    %3855 = vmatpush1.bf16.msra.mxu0 %v3651
    %3856 = vmatprep.subr.bf16.mxu0 %v3654
    %3857 = vmatpush1.bf16.msra.mxu0 %v3653
    %3858 = vmatprep.subr.bf16.mxu0 %v3656
    %3859 = vmatpush1.bf16.msra.mxu0 %v3655
    %3860 = vmatprep.subr.bf16.mxu0 %v3658
    %3861 = vmatpush1.bf16.msra.mxu0 %v3657
    %3862 = vmatprep.subr.bf16.mxu0 %v3660
    %3863 = vmatpush1.bf16.msra.mxu0 %v3659
    %3864 = vmatprep.subr.bf16.mxu0 %v3662
    %3865 = vmatpush1.bf16.msra.mxu0 %v3661
    %3866 = vmatprep.subr.bf16.mxu0 %v3664
    %3867 = vmatpush1.bf16.msra.mxu0 %v3663
    %3868 = vmatprep.subr.bf16.mxu0 %v3666
    %3869 = vmatpush1.bf16.msra.mxu0 %v3665
    %3870 = vmatprep.mubr.bf16.mxu0 %v3216
    %3871 = vmatmul.mubr.bf16.gmra.mrb[0].mxu0 %v3215
    %v3872 = vpop.f32.mrb[0].mxu0
    %v3873 = vadd.f32 %v3830, %v3872
    %v3874 = vpop.f32.mrb[0].mxu0
    %v3875 = vadd.f32 %v3832, %v3874
    %v3876 = vpop.f32.mrb[0].mxu0
    %v3877 = vadd.f32 %v3834, %v3876
    %v3878 = vpop.f32.mrb[0].mxu0
    %v3879 = vadd.f32 %v3836, %v3878
    %3880 = vdwg.mxu0
    %3881 = vmatprep.subr.bf16.mxu0 %v3668
    %3882 = vmatpush1.bf16.msra.mxu0 %v3667
    %3883 = vmatprep.subr.bf16.mxu0 %v3670
    %3884 = vmatpush1.bf16.msra.mxu0 %v3669
    %3885 = vmatprep.subr.bf16.mxu0 %v3672
    %3886 = vmatpush1.bf16.msra.mxu0 %v3671
    %3887 = vmatprep.subr.bf16.mxu0 %v3674
    %3888 = vmatpush1.bf16.msra.mxu0 %v3673
    %3889 = vmatprep.subr.bf16.mxu0 %v3676
    %3890 = vmatpush1.bf16.msra.mxu0 %v3675
    %3891 = vmatprep.subr.bf16.mxu0 %v3678
    %3892 = vmatpush1.bf16.msra.mxu0 %v3677
    %3893 = vmatprep.subr.bf16.mxu0 %v3680
    %3894 = vmatpush1.bf16.msra.mxu0 %v3679
    %3895 = vmatprep.subr.bf16.mxu0 %v3682
    %3896 = vmatpush1.bf16.msra.mxu0 %v3681
    %3897 = vmatprep.subr.bf16.mxu0 %v3684
    %3898 = vmatpush1.bf16.msra.mxu0 %v3683
    %3899 = vmatprep.subr.bf16.mxu0 %v3686
    %3900 = vmatpush1.bf16.msra.mxu0 %v3685
    %3901 = vmatprep.subr.bf16.mxu0 %v3688
    %3902 = vmatpush1.bf16.msra.mxu0 %v3687
    %3903 = vmatprep.subr.bf16.mxu0 %v3690
    %3904 = vmatpush1.bf16.msra.mxu0 %v3689
    %3905 = vmatprep.subr.bf16.mxu0 %v3692
    %3906 = vmatpush1.bf16.msra.mxu0 %v3691
    %3907 = vmatprep.subr.bf16.mxu0 %v3694
    %3908 = vmatpush1.bf16.msra.mxu0 %v3693
    %3909 = vmatprep.subr.bf16.mxu0 %v3696
    %3910 = vmatpush1.bf16.msra.mxu0 %v3695
    %3911 = vmatprep.subr.bf16.mxu0 %v3698
    %3912 = vmatpush1.bf16.msra.mxu0 %v3697
    %3913 = vmatprep.mubr.bf16.mxu0 %v3218
    %3914 = vmatmul.mubr.bf16.gmra.mrb[0].mxu0 %v3217
    %v3915 = vpop.f32.mrb[0].mxu0
    %v3916 = vadd.f32 %v3873, %v3915
    %v3917 = vpop.f32.mrb[0].mxu0
    %v3918 = vadd.f32 %v3875, %v3917
    %v3919 = vpop.f32.mrb[0].mxu0
    %v3920 = vadd.f32 %v3877, %v3919
    %v3921 = vpop.f32.mrb[0].mxu0
    %v3922 = vadd.f32 %v3879, %v3921
    %3923 = vdwg.mxu0
    %v3924 = vadd.f32 %v1665, %v3916
    %v3925 = vadd.f32 %v1666, %v3918
    %v3926 = vadd.f32 %v1667, %v3920
    %v3927 = vadd.f32 %v1668, %v3922
    %3928 = vst [vmem:[#allocation19] sm:$0xff] %v3924
    %3929 = vst [vmem:[#allocation19 + $0x8] sm:$0xff] %v3925
    %3930 = vst [vmem:[#allocation19 + $0x10] sm:$0xff] %v3926
    %3931 = vst [vmem:[#allocation19 + $0x18] sm:$0xff] %v3927
    // Predicated region
    $region90: #{tpu_custom_call.1} parent=1 // pred_check
      _
    $region91: #{tpu_custom_call.1} parent=1 // pred_check_branch
      %3933 = sbr.rel (0) target = $region93
    $region92: #{tpu_custom_call.1} parent=1 // pred_region
      %s3935 = ssub.s32 512, 512
      %3936 = vsyncadd [#allocation4], %s3935
      %s3937 = sshll.u32 [#allocation19], 4
      %s3938 = int_to_ptr.vmem [resolvable:$true] %s3937
      %3943 = dma.vmem_to_hbm [thread:$0]  %s3938, 512, %s12, [#allocation4], 256, 256, 16
    $region93: #{tpu_custom_call.1} parent=1 // pred_fallthru
      _
    // Predicated region
    $region94: #{tpu_custom_call.1} parent=1 // pred_check
      _
    $region95: #{tpu_custom_call.1} parent=1 // pred_check_branch
      %3945 = sbr.rel (0) target = $region97
    $region96: #{tpu_custom_call.1} parent=1 // pred_region
      %3946 = dma.done [#allocation4], 512
    $region97: #{tpu_custom_call.1} parent=1 // pred_fallthru
      _
    %3947 = vsyncpa [#allocation3], 1
    %3948 = vsyncpa [#allocation6], 1
    %3949 = vsyncpa [#allocation9], 1
    %3950 = vsyncpa [#allocation12], 1
    %3951 = vsyncpa [#allocation15], 1
    %3952 = vsyncpa [#allocation18], 1
    %3953 = vsyncpa [#allocation4], 1

</llo_original>
